<compile_context>
chip_gen: v7x
topology: tpu7x:2x2x1
jax: 0.10.0
libtpu: 0.0.40
codegen_flags: <defaults>
</compile_context>

<pallas_src>
import functools
import math

import jax
import jax.numpy as jnp
from jax.experimental import pallas as pl
from jax.experimental.pallas import tpu as pltpu


# ----------------------------- small config ---------------------------------
class SmallCFG:
    vocab_size = 100
    max_position = 64
    type_vocab = 2
    hidden = 32            # scaled-down text_dim (768 in the original)
    num_heads = 2
    num_layers = 2
    intermediate = 64
    img_dim = 64           # scaled-down img_dim (2048 in the original)
    clf_dims = (512, 256)  # classifier hidden sizes kept as in the original
    num_labels = 13        # len(labels)
    ln_eps = 1e-12
    text_seq = 8
    batch = 2


M_PAD = 8          # pooled/classifier rows padded to an f32 sublane tile
LABEL_PAD = 128    # classifier output padded lane-dense (13 -> 128)
DH_PAD = 128       # each head's Q/K/V chunk padded to a whole 128-lane vreg
I_PAD = 128        # lane slot reserved for the intermediate weight in the layer slab


# ------------------------------- fused kernel --------------------------------
def _gelu(x):
    # TODO(synk): HF VisualBERT uses exact erf-GELU; tanh approximation used
    # here for guaranteed EUP lowering on TPU.
    c = math.sqrt(2.0 / math.pi)
    return 0.5 * x * (1.0 + jnp.tanh(c * (x + 0.044715 * x * x * x)))


def _visualbert_kernel(
    emb_ref, img_ref, key_code_ref, row_code_ref,
    lw_a_ref, lw_b_ref, lbias_ref,
    misc_w_ref, clf_w2_ref, clf_w3_ref, gbias_ref,
    out_ref,
    *, num_layers, num_heads, head_dim, seq_len, batch,
    img_dim, inter_dim, clf1, clf2, eps):
    f32, bf16 = jnp.float32, jnp.bfloat16
    H = num_heads * head_dim
    N = batch * seq_len
    QKV_W = num_heads * 3 * DH_PAD
    scale = 1.0 / math.sqrt(head_dim)

    def ln(x, g, b):  # fused one-pass LayerNorm: var = E[x^2] - mu^2
        mu = jnp.mean(x, axis=-1, keepdims=True)
        mu2 = jnp.mean(x * x, axis=-1, keepdims=True)
        var = jnp.maximum(mu2 - mu * mu, 0.0)
        return (x - mu) * jax.lax.rsqrt(var + eps) * g + b

    gb = gbias_ref[...]          # (8, clf1) f32 global bias/LN slab
    mw = misc_w_ref[...]         # (img_dim + 2H, clf1) bf16 misc weight slab

    # ---- embeddings: add projected visual token to the visual-token rows via an
    # iota-built 0/1 scatter matmul (no unaligned stores, no wrapper constant).
    vis_w = mw[0:img_dim, :H]
    vis_proj = jnp.dot(img_ref[...].astype(bf16), vis_w,
                       preferred_element_type=f32)                      # (B, H)
    r_nb = jax.lax.broadcasted_iota(jnp.int32, (N, batch), 0)
    c_nb = jax.lax.broadcasted_iota(jnp.int32, (N, batch), 1)
    vis_scatter = (r_nb == c_nb * seq_len + (seq_len - 1)).astype(f32)  # (N, B)
    emb = emb_ref[...] + jnp.dot(vis_scatter, vis_proj,
                                 preferred_element_type=f32)            # (N, H)
    h = ln(emb, gb[0:1, :H], gb[1:2, :H])
    # dropout: inference-mode identity

    # ---- block-diagonal + key-padding additive mask, built in-kernel from a
    # (N,1) row-code (constant) and a (1,N) key-code (depends on attention_mask).
    allowed = row_code_ref[...] == key_code_ref[...]                    # (N, N)
    mask = jnp.where(allowed, 0.0, -1e9).astype(f32)

    for li in range(num_layers):                                        # unrolled (L=2)
        wa = lw_a_ref[li]                     # (H, QKV_W + I_PAD) bf16: [wqkv_pad | i_w]
        wb = lw_b_ref[li]                     # (NH*128 + I, H) bf16: [ao_w_pad ; o_w]
        bs = lbias_ref[li]                    # (8, QKV_W) f32 bias/LN slab

        # fused QKV projection with lane-aligned per-head chunks; cast to bf16 once
        qkv = jnp.dot(h.astype(bf16), wa[:, :QKV_W],
                      preferred_element_type=f32) + bs[0:1, :]          # (N, QKV_W)
        qkv = qkv.astype(bf16)

        attn = jnp.zeros((N, H), f32)
        for hd in range(num_heads):
            base = hd * 3 * DH_PAD
            q = qkv[:, base:base + DH_PAD]                              # (N, 128) bf16
            k = qkv[:, base + DH_PAD:base + 2 * DH_PAD]
            v = qkv[:, base + 2 * DH_PAD:base + 3 * DH_PAD]
            # bf16 score matmul, contracting dim 1 of q with dim 1 of k (no k.T)
            s = jax.lax.dot_general(q, k, (((1,), (1,)), ((), ())),
                                    preferred_element_type=f32) * scale + mask
            s = s - jnp.max(s, axis=-1, keepdims=True)
            p = jnp.exp(s)
            p = p * pl.reciprocal(jnp.sum(p, axis=-1, keepdims=True), approx=True)
            ctx = jnp.dot(p.astype(bf16), v, preferred_element_type=f32)  # (N, 128)
            # per-head accumulation into the output projection (no lane concat)
            attn = attn + jnp.dot(ctx.astype(bf16),
                                  wb[hd * DH_PAD:(hd + 1) * DH_PAD, :],
                                  preferred_element_type=f32)           # (N, H)
        h = ln(attn + bs[1:2, :H] + h, bs[2:3, :H], bs[3:4, :H])

        inter = _gelu(jnp.dot(h.astype(bf16), wa[:, QKV_W:QKV_W + inter_dim],
                              preferred_element_type=f32) + bs[4:5, :inter_dim])
        ffn = jnp.dot(inter.astype(bf16),
                      wb[num_heads * DH_PAD:num_heads * DH_PAD + inter_dim, :],
                      preferred_element_type=f32) + bs[5:6, :H]
        h = ln(ffn + h, bs[6:7, :H], bs[7:8, :H])

    # ---- pooler: gather each batch's [CLS] row with an iota-built 0/1 matmul
    # (rows padded to 8) -> dense -> tanh  == transformer(...)[1]
    r_mn = jax.lax.broadcasted_iota(jnp.int32, (M_PAD, N), 0)
    c_mn = jax.lax.broadcasted_iota(jnp.int32, (M_PAD, N), 1)
    cls_gather = ((c_mn == r_mn * seq_len) & (r_mn < batch)).astype(f32)  # (8, N)
    pooled_in = jnp.dot(cls_gather, h, preferred_element_type=f32)        # (8, H)
    pool_w = mw[img_dim:img_dim + H, :H]
    pooled = jnp.tanh(jnp.dot(pooled_in.astype(bf16), pool_w,
                              preferred_element_type=f32) + gb[2:3, :H])

    # ---- dropout (eval identity) + 3-layer classifier, lane-dense padded output
    clf_w1 = mw[img_dim + H:img_dim + 2 * H, :clf1]
    z = jnp.dot(pooled.astype(bf16), clf_w1, preferred_element_type=f32) + gb[3:4, :clf1]
    z = jnp.dot(z.astype(bf16), clf_w2_ref[...], preferred_element_type=f32) + gb[4:5, :clf2]
    z = jnp.dot(z.astype(bf16), clf_w3_ref[...], preferred_element_type=f32) + gb[5:6, :LABEL_PAD]
    out_ref[...] = z.astype(out_ref.dtype)                               # (8, 128)


# ----------------------------- parameters ------------------------------------
def init_params(key, cfg):
    H, I, L = cfg.hidden, cfg.intermediate, cfg.num_layers

    def nxt():
        nonlocal key
        key, sub = jax.random.split(key)
        return sub

    def w(shape, scale=0.02):
        return (scale * jax.random.normal(nxt(), shape)).astype(jnp.float32)

    return {
        "word_emb": w((cfg.vocab_size, H)),
        "pos_emb": w((cfg.max_position, H)),
        "type_emb": w((cfg.type_vocab, H)),
        "emb_ln_g": jnp.ones((H,), jnp.float32),
        "emb_ln_b": jnp.zeros((H,), jnp.float32),
        "vis_w": w((cfg.img_dim, H)),
        "vis_b": jnp.zeros((H,), jnp.float32),
        # per-layer weights stacked along a leading L axis; fused QKV is [Q|K|V]
        "wqkv": w((L, H, 3 * H)),
        "bqkv": jnp.zeros((L, 1, 3 * H), jnp.float32),
        "ao_w": w((L, H, H)),
        "ao_b": jnp.zeros((L, 1, H), jnp.float32),
        "ln1_g": jnp.ones((L, 1, H), jnp.float32),
        "ln1_b": jnp.zeros((L, 1, H), jnp.float32),
        "i_w": w((L, H, I)),
        "i_b": jnp.zeros((L, 1, I), jnp.float32),
        "o_w": w((L, I, H)),
        "o_b": jnp.zeros((L, 1, H), jnp.float32),
        "ln2_g": jnp.ones((L, 1, H), jnp.float32),
        "ln2_b": jnp.zeros((L, 1, H), jnp.float32),
        "pool_w": w((H, H)),
        "pool_b": jnp.zeros((H,), jnp.float32),
        "clf_w1": w((H, cfg.clf_dims[0])),
        "clf_b1": jnp.zeros((cfg.clf_dims[0],), jnp.float32),
        "clf_w2": w((cfg.clf_dims[0], cfg.clf_dims[1])),
        "clf_b2": jnp.zeros((cfg.clf_dims[1],), jnp.float32),
        "clf_w3": w((cfg.clf_dims[1], cfg.num_labels)),
        "clf_b3": jnp.zeros((cfg.num_labels,), jnp.float32),
    }


def pack_params(params, cfg):
    """One-time prep: pack/cast everything constant into a few VMEM-friendly slabs."""
    H, I, L = cfg.hidden, cfg.intermediate, cfg.num_layers
    NH = cfg.num_heads
    Dh = H // NH
    QKV_W = NH * 3 * DH_PAD
    clf1, clf2 = cfg.clf_dims
    f32, bf16 = jnp.float32, jnp.bfloat16

    # lane-aligned per-head QKV layout: chunk (head hd, matrix m in {Q,K,V})
    # occupies lanes [(hd*3+m)*128, (hd*3+m)*128 + Dh); pad lanes are zero.
    wqkv_pad = jnp.zeros((L, H, QKV_W), f32)
    bqkv_pad = jnp.zeros((L, 1, QKV_W), f32)
    ao_w_pad = jnp.zeros((L, NH * DH_PAD, H), f32)
    for hd in range(NH):
        for m in range(3):
            src_lo = m * H + hd * Dh
            dst_lo = (hd * 3 + m) * DH_PAD
            wqkv_pad = wqkv_pad.at[:, :, dst_lo:dst_lo + Dh].set(
                params["wqkv"][:, :, src_lo:src_lo + Dh])
            bqkv_pad = bqkv_pad.at[:, :, dst_lo:dst_lo + Dh].set(
                params["bqkv"][:, :, src_lo:src_lo + Dh])
        ao_w_pad = ao_w_pad.at[:, hd * DH_PAD:hd * DH_PAD + Dh, :].set(
            params["ao_w"][:, hd * Dh:(hd + 1) * Dh, :])

    # per-layer weight slab A (lanes): [wqkv_pad | i_w]
    lw_a = jnp.zeros((L, H, QKV_W + I_PAD), f32)
    lw_a = lw_a.at[:, :, :QKV_W].set(wqkv_pad)
    lw_a = lw_a.at[:, :, QKV_W:QKV_W + I].set(params["i_w"])
    # per-layer weight slab B (rows): [ao_w_pad ; o_w]
    lw_b = jnp.zeros((L, NH * DH_PAD + I, H), f32)
    lw_b = lw_b.at[:, :NH * DH_PAD, :].set(ao_w_pad)
    lw_b = lw_b.at[:, NH * DH_PAD:, :].set(params["o_w"])
    # per-layer bias/LN slab (f32), one row per vector, lanes start at 0
    lbias = jnp.zeros((L, 8, QKV_W), f32)
    lbias = lbias.at[:, 0:1, :].set(bqkv_pad)
    lbias = lbias.at[:, 1, :H].set(params["ao_b"][:, 0, :])
    lbias = lbias.at[:, 2, :H].set(params["ln1_g"][:, 0, :])
    lbias = lbias.at[:, 3, :H].set(params["ln1_b"][:, 0, :])
    lbias = lbias.at[:, 4, :I].set(params["i_b"][:, 0, :])
    lbias = lbias.at[:, 5, :H].set(params["o_b"][:, 0, :])
    lbias = lbias.at[:, 6, :H].set(params["ln2_g"][:, 0, :])
    lbias = lbias.at[:, 7, :H].set(params["ln2_b"][:, 0, :])

    # misc weight slab (rows): [vis_w ; pool_w ; clf_w1]
    misc_w = jnp.zeros((cfg.img_dim + 2 * H, clf1), f32)
    misc_w = misc_w.at[:cfg.img_dim, :H].set(params["vis_w"])
    misc_w = misc_w.at[cfg.img_dim:cfg.img_dim + H, :H].set(params["pool_w"])
    misc_w = misc_w.at[cfg.img_dim + H:, :].set(params["clf_w1"])

    # lane-dense classifier head: pad labels 13 -> 128 once, here
    clf_w3p = jnp.zeros((clf2, LABEL_PAD), f32).at[:, :cfg.num_labels].set(params["clf_w3"])

    # global bias/LN slab
    gbias = jnp.zeros((8, clf1), f32)
    gbias = gbias.at[0, :H].set(params["emb_ln_g"])
    gbias = gbias.at[1, :H].set(params["emb_ln_b"])
    gbias = gbias.at[2, :H].set(params["pool_b"])
    gbias = gbias.at[3, :].set(params["clf_b1"])
    gbias = gbias.at[4, :clf2].set(params["clf_b2"])
    gbias = gbias.at[5, :cfg.num_labels].set(params["clf_b3"])

    # attention-mask row codes (constant for fixed B, S): batch_id + 1 per query row
    S = cfg.text_seq + 1
    N = cfg.batch * S
    row_code = (jnp.arange(N, dtype=jnp.int32) // S + 1).astype(f32).reshape(N, 1)

    # visual-token additive embedding (bias + type-1 + position-0), summed once.
    # TODO(synk): verify the reference VisualBERT visual position-embedding id.
    vis_bias = params["vis_b"] + params["type_emb"][1] + params["pos_emb"][0]

    return {
        "lw_a": lw_a.astype(bf16), "lw_b": lw_b.astype(bf16), "lbias": lbias,
        "misc_w": misc_w.astype(bf16), "clf_w2": params["clf_w2"].astype(bf16),
        "clf_w3p": clf_w3p.astype(bf16), "gbias": gbias,
        "row_code": row_code, "vis_bias": vis_bias,
        "word_emb": params["word_emb"], "pos_emb": params["pos_emb"],
        "type_emb": params["type_emb"],
    }


# ----------------------------- forward pass -----------------------------------
def model_forward(packed, input_ids, token_type_ids, attention_mask, img, cfg=SmallCFG):
    B, S_t = input_ids.shape
    S = S_t + 1                      # text tokens + one visual token
    N = B * S
    H = cfg.hidden
    f32 = jnp.float32

    # ---- per-call glue (input-dependent only): embedding gathers + key codes ----
    word = jnp.take(packed["word_emb"], input_ids, axis=0)               # (B,S_t,H)
    pos = packed["pos_emb"][:S_t][None, :, :]
    tok = jnp.take(packed["type_emb"], token_type_ids, axis=0)
    text_emb = word + pos + tok
    emb_base = jnp.concatenate(
        [text_emb, jnp.broadcast_to(packed["vis_bias"][None, None, :], (B, 1, H))],
        axis=1).reshape(N, H)                                            # (N,H)

    # key_code[c] = batch_id+1 for valid keys, 0 for masked keys (visual token valid)
    key_valid = jnp.concatenate(
        [attention_mask.astype(f32), jnp.ones((B, 1), f32)], axis=1)     # (B,S)
    key_code = (key_valid * (jnp.arange(B, dtype=f32) + 1.0)[:, None]).reshape(1, N)

    args = (emb_base, img.astype(f32), key_code, packed["row_code"],
            packed["lw_a"], packed["lw_b"], packed["lbias"],
            packed["misc_w"], packed["clf_w2"], packed["clf_w3p"], packed["gbias"])

    in_specs = [pl.BlockSpec(a.shape, lambda i, n=a.ndim: (0,) * n) for a in args]

    kernel = functools.partial(
        _visualbert_kernel,
        num_layers=cfg.num_layers, num_heads=cfg.num_heads,
        head_dim=H // cfg.num_heads, seq_len=S, batch=B,
        img_dim=cfg.img_dim, inter_dim=cfg.intermediate,
        clf1=cfg.clf_dims[0], clf2=cfg.clf_dims[1], eps=cfg.ln_eps)

    out = pl.pallas_call(
        kernel,
        out_shape=jax.ShapeDtypeStruct((M_PAD, LABEL_PAD), f32),
        grid=(1,),
        in_specs=in_specs,
        out_specs=pl.BlockSpec((M_PAD, LABEL_PAD), lambda i: (0, 0)),
        compiler_params=pltpu.CompilerParams(dimension_semantics=("arbitrary",)),
    )(*args)

    return out[:B, :cfg.num_labels]                                      # (B, 13)


# ----------------------------------- main --------------------------------------
if __name__ == "__main__":
    cfg = SmallCFG
    key = jax.random.PRNGKey(0)
    k_param, k_ids, k_img = jax.random.split(key, 3)

    params = init_params(k_param, cfg)
    packed = pack_params(params, cfg)        # one-time prep, hoisted out of the step

    input_ids = jax.random.randint(k_ids, (cfg.batch, cfg.text_seq), 0,
                                   cfg.vocab_size, dtype=jnp.int32)
    token_type_ids = jnp.zeros((cfg.batch, cfg.text_seq), jnp.int32)
    attention_mask = jnp.ones((cfg.batch, cfg.text_seq), jnp.int32)
    img = jax.random.normal(k_img, (cfg.batch, cfg.img_dim), dtype=jnp.float32)

    fwd = jax.jit(lambda pk, ids, tt, am, im: model_forward(pk, ids, tt, am, im, cfg))
    out = fwd(packed, input_ids, token_type_ids, attention_mask, img)
    out = jax.block_until_ready(out)
    assert out.shape == (cfg.batch, cfg.num_labels)
    print("KERNEL_OK")
</pallas_src>

<mosaic_0001>
module attributes {stable_mosaic.version = 11 : i64} {
  func.func @_visualbert_kernel(%arg0: i32, %arg1: memref<18x32xf32, #tpu.memory_space<vmem>>, %arg2: memref<2x64xf32, #tpu.memory_space<vmem>>, %arg3: memref<1x18xf32, #tpu.memory_space<vmem>>, %arg4: memref<18x1xf32, #tpu.memory_space<vmem>>, %arg5: memref<2x32x896xbf16, #tpu.memory_space<vmem>>, %arg6: memref<2x320x32xbf16, #tpu.memory_space<vmem>>, %arg7: memref<2x8x768xf32, #tpu.memory_space<vmem>>, %arg8: memref<128x512xbf16, #tpu.memory_space<vmem>>, %arg9: memref<512x256xbf16, #tpu.memory_space<vmem>>, %arg10: memref<256x128xbf16, #tpu.memory_space<vmem>>, %arg11: memref<8x512xf32, #tpu.memory_space<vmem>>, %arg12: memref<8x128xf32, #tpu.memory_space<vmem>>) attributes {dimension_semantics = [#tpu.dimension_semantics<arbitrary>], iteration_bounds = array<i64: 1>, scalar_prefetch = 0 : i64, scratch_operands = 0 : i64, tpu.core_type = #tpu.core_type<tc>, window_params = [{pipeline_mode = #tpu.pipeline_mode<synchronous>, transform_indices = @transform_0, window_bounds = array<i64: 18, 32>}, {pipeline_mode = #tpu.pipeline_mode<synchronous>, transform_indices = @transform_1, window_bounds = array<i64: 2, 64>}, {pipeline_mode = #tpu.pipeline_mode<synchronous>, transform_indices = @transform_2, window_bounds = array<i64: 1, 18>}, {pipeline_mode = #tpu.pipeline_mode<synchronous>, transform_indices = @transform_3, window_bounds = array<i64: 18, 1>}, {pipeline_mode = #tpu.pipeline_mode<synchronous>, transform_indices = @transform_4, window_bounds = array<i64: 2, 32, 896>}, {pipeline_mode = #tpu.pipeline_mode<synchronous>, transform_indices = @transform_5, window_bounds = array<i64: 2, 320, 32>}, {pipeline_mode = #tpu.pipeline_mode<synchronous>, transform_indices = @transform_6, window_bounds = array<i64: 2, 8, 768>}, {pipeline_mode = #tpu.pipeline_mode<synchronous>, transform_indices = @transform_7, window_bounds = array<i64: 128, 512>}, {pipeline_mode = #tpu.pipeline_mode<synchronous>, transform_indices = @transform_8, window_bounds = array<i64: 512, 256>}, {pipeline_mode = #tpu.pipeline_mode<synchronous>, transform_indices = @transform_9, window_bounds = array<i64: 256, 128>}, {pipeline_mode = #tpu.pipeline_mode<synchronous>, transform_indices = @transform_10, window_bounds = array<i64: 8, 512>}, {pipeline_mode = #tpu.pipeline_mode<synchronous>, transform_indices = @transform_11, window_bounds = array<i64: 8, 128>}]} {
    %c0 = arith.constant 0 : index
    %c0_0 = arith.constant 0 : index
    %0 = vector.load %arg11[%c0, %c0_0] : memref<8x512xf32, #tpu.memory_space<vmem>>, vector<8x512xf32>
    %c0_1 = arith.constant 0 : index
    %c0_2 = arith.constant 0 : index
    %1 = vector.load %arg8[%c0_1, %c0_2] : memref<128x512xbf16, #tpu.memory_space<vmem>>, vector<128x512xbf16>
    %2 = vector.extract_strided_slice %1 {offsets = [0, 0], sizes = [64, 32], strides = [1, 1]} : vector<128x512xbf16> to vector<64x32xbf16>
    %c0_3 = arith.constant 0 : index
    %c0_4 = arith.constant 0 : index
    %3 = vector.load %arg2[%c0_3, %c0_4] : memref<2x64xf32, #tpu.memory_space<vmem>>, vector<2x64xf32>
    %4 = arith.truncf %3 : vector<2x64xf32> to vector<2x64xbf16>
    %cst = arith.constant dense<0.000000e+00> : vector<2x32xf32>
    %5 = tpu.matmul %4, %2, %cst {dimension_numbers = #tpu.dot_dimension_numbers<[1], [0], [0], [1], [0, 0, 1, 1], [], []>} : vector<2x64xbf16>, vector<64x32xbf16>, vector<2x32xf32> -> vector<2x32xf32>
    %6 = tpu.iota {dimensions = array<i32: 0>} : vector<18x2xi32>
    %7 = tpu.iota {dimensions = array<i32: 1>} : vector<18x2xi32>
    %c9_i32 = arith.constant 9 : i32
    %8 = vector.broadcast %c9_i32 : i32 to vector<18x2xi32>
    %9 = arith.muli %7, %8 : vector<18x2xi32>
    %c8_i32 = arith.constant 8 : i32
    %10 = vector.broadcast %c8_i32 : i32 to vector<18x2xi32>
    %11 = arith.addi %9, %10 : vector<18x2xi32>
    %12 = arith.cmpi eq, %6, %11 : vector<18x2xi32>
    %13 = arith.extui %12 : vector<18x2xi1> to vector<18x2xi32>
    %14 = arith.sitofp %13 : vector<18x2xi32> to vector<18x2xf32>
    %c0_5 = arith.constant 0 : index
    %c0_6 = arith.constant 0 : index
    %15 = vector.load %arg1[%c0_5, %c0_6] : memref<18x32xf32, #tpu.memory_space<vmem>>, vector<18x32xf32>
    %cst_7 = arith.constant dense<0.000000e+00> : vector<18x32xf32>
    %16 = tpu.matmul %14, %5, %cst_7 {dimension_numbers = #tpu.dot_dimension_numbers<[1], [0], [0], [1], [0, 0, 1, 1], [], []>} : vector<18x2xf32>, vector<2x32xf32>, vector<18x32xf32> -> vector<18x32xf32>
    %17 = arith.addf %15, %16 : vector<18x32xf32>
    %18 = vector.extract_strided_slice %0 {offsets = [0, 0], sizes = [1, 32], strides = [1, 1]} : vector<8x512xf32> to vector<1x32xf32>
    %19 = vector.extract_strided_slice %0 {offsets = [1, 0], sizes = [1, 32], strides = [1, 1]} : vector<8x512xf32> to vector<1x32xf32>
    %cst_8 = arith.constant dense<0.000000e+00> : vector<18xf32>
    %20 = vector.multi_reduction <add>, %17, %cst_8 [1] : vector<18x32xf32> to vector<18xf32>
    %21 = vector.shape_cast %20 : vector<18xf32> to vector<18x1xf32>
    %cst_9 = arith.constant 3.200000e+01 : f32
    %22 = vector.broadcast %cst_9 : f32 to vector<18x1xf32>
    %23 = arith.divf %21, %22 : vector<18x1xf32>
    %24 = arith.mulf %17, %17 : vector<18x32xf32>
    %cst_10 = arith.constant dense<0.000000e+00> : vector<18xf32>
    %25 = vector.multi_reduction <add>, %24, %cst_10 [1] : vector<18x32xf32> to vector<18xf32>
    %26 = vector.shape_cast %25 : vector<18xf32> to vector<18x1xf32>
    %cst_11 = arith.constant 3.200000e+01 : f32
    %27 = vector.broadcast %cst_11 : f32 to vector<18x1xf32>
    %28 = arith.divf %26, %27 : vector<18x1xf32>
    %29 = arith.mulf %23, %23 : vector<18x1xf32>
    %30 = arith.subf %28, %29 : vector<18x1xf32>
    %cst_12 = arith.constant 0.000000e+00 : f32
    %31 = vector.broadcast %cst_12 : f32 to vector<18x1xf32>
    %32 = arith.maximumf %30, %31 : vector<18x1xf32>
    %33 = vector.broadcast %23 : vector<18x1xf32> to vector<18x32xf32>
    %34 = arith.subf %17, %33 : vector<18x32xf32>
    %cst_13 = arith.constant 9.99999996E-13 : f32
    %35 = vector.broadcast %cst_13 : f32 to vector<18x1xf32>
    %36 = arith.addf %32, %35 : vector<18x1xf32>
    %37 = math.rsqrt %36 : vector<18x1xf32>
    %38 = vector.broadcast %37 : vector<18x1xf32> to vector<18x32xf32>
    %39 = arith.mulf %34, %38 : vector<18x32xf32>
    %40 = vector.broadcast %18 : vector<1x32xf32> to vector<18x32xf32>
    %41 = arith.mulf %39, %40 : vector<18x32xf32>
    %42 = vector.broadcast %19 : vector<1x32xf32> to vector<18x32xf32>
    %43 = arith.addf %41, %42 : vector<18x32xf32>
    %c0_14 = arith.constant 0 : index
    %c0_15 = arith.constant 0 : index
    %44 = vector.load %arg4[%c0_14, %c0_15] : memref<18x1xf32, #tpu.memory_space<vmem>>, vector<18x1xf32>
    %c0_16 = arith.constant 0 : index
    %c0_17 = arith.constant 0 : index
    %45 = vector.load %arg3[%c0_16, %c0_17] : memref<1x18xf32, #tpu.memory_space<vmem>>, vector<1x18xf32>
    %46 = vector.broadcast %44 : vector<18x1xf32> to vector<18x18xf32>
    %47 = vector.broadcast %45 : vector<1x18xf32> to vector<18x18xf32>
    %48 = arith.cmpf oeq, %46, %47 : vector<18x18xf32>
    %cst_18 = arith.constant 0.000000e+00 : f32
    %cst_19 = arith.constant -1.000000e+09 : f32
    %49 = vector.broadcast %cst_18 : f32 to vector<18x18xf32>
    %50 = vector.broadcast %cst_19 : f32 to vector<18x18xf32>
    %51 = arith.select %48, %49, %50 : vector<18x18xi1>, vector<18x18xf32>
    %c0_20 = arith.constant 0 : index
    %c0_21 = arith.constant 0 : index
    %c0_22 = arith.constant 0 : index
    %52 = vector.load %arg5[%c0_20, %c0_21, %c0_22] : memref<2x32x896xbf16, #tpu.memory_space<vmem>>, vector<1x32x896xbf16>
    %53 = vector.shape_cast %52 : vector<1x32x896xbf16> to vector<32x896xbf16>
    %c0_23 = arith.constant 0 : index
    %c0_24 = arith.constant 0 : index
    %c0_25 = arith.constant 0 : index
    %54 = vector.load %arg6[%c0_23, %c0_24, %c0_25] : memref<2x320x32xbf16, #tpu.memory_space<vmem>>, vector<1x320x32xbf16>
    %55 = vector.shape_cast %54 : vector<1x320x32xbf16> to vector<320x32xbf16>
    %c0_26 = arith.constant 0 : index
    %c0_27 = arith.constant 0 : index
    %c0_28 = arith.constant 0 : index
    %56 = vector.load %arg7[%c0_26, %c0_27, %c0_28] : memref<2x8x768xf32, #tpu.memory_space<vmem>>, vector<1x8x768xf32>
    %57 = vector.shape_cast %56 : vector<1x8x768xf32> to vector<8x768xf32>
    %58 = arith.truncf %43 : vector<18x32xf32> to vector<18x32xbf16>
    %59 = vector.extract_strided_slice %53 {offsets = [0, 0], sizes = [32, 768], strides = [1, 1]} : vector<32x896xbf16> to vector<32x768xbf16>
    %cst_29 = arith.constant dense<0.000000e+00> : vector<18x768xf32>
    %60 = tpu.matmul %58, %59, %cst_29 {dimension_numbers = #tpu.dot_dimension_numbers<[1], [0], [0], [1], [0, 0, 1, 1], [], []>} : vector<18x32xbf16>, vector<32x768xbf16>, vector<18x768xf32> -> vector<18x768xf32>
    %61 = vector.extract_strided_slice %57 {offsets = [0, 0], sizes = [1, 768], strides = [1, 1]} : vector<8x768xf32> to vector<1x768xf32>
    %62 = vector.broadcast %61 : vector<1x768xf32> to vector<18x768xf32>
    %63 = arith.addf %60, %62 : vector<18x768xf32>
    %64 = arith.truncf %63 : vector<18x768xf32> to vector<18x768xbf16>
    %cst_30 = arith.constant 0.000000e+00 : f32
    %65 = vector.broadcast %cst_30 : f32 to vector<18x32xf32>
    %66 = vector.extract_strided_slice %64 {offsets = [0, 0], sizes = [18, 128], strides = [1, 1]} : vector<18x768xbf16> to vector<18x128xbf16>
    %67 = vector.extract_strided_slice %64 {offsets = [0, 128], sizes = [18, 128], strides = [1, 1]} : vector<18x768xbf16> to vector<18x128xbf16>
    %68 = vector.extract_strided_slice %64 {offsets = [0, 256], sizes = [18, 128], strides = [1, 1]} : vector<18x768xbf16> to vector<18x128xbf16>
    %cst_31 = arith.constant dense<0.000000e+00> : vector<18x18xf32>
    %69 = tpu.matmul %66, %67, %cst_31 {dimension_numbers = #tpu.dot_dimension_numbers<[1], [1], [0], [0], [0, 0, 1, 0], [], []>} : vector<18x128xbf16>, vector<18x128xbf16>, vector<18x18xf32> -> vector<18x18xf32>
    %cst_32 = arith.constant 2.500000e-01 : f32
    %70 = vector.broadcast %cst_32 : f32 to vector<18x18xf32>
    %71 = arith.mulf %69, %70 : vector<18x18xf32>
    %72 = arith.addf %71, %51 : vector<18x18xf32>
    %cst_33 = arith.constant dense<0xFF800000> : vector<18xf32>
    %73 = vector.multi_reduction <maximumf>, %72, %cst_33 [1] : vector<18x18xf32> to vector<18xf32>
    %74 = vector.shape_cast %73 : vector<18xf32> to vector<18x1xf32>
    %75 = vector.broadcast %74 : vector<18x1xf32> to vector<18x18xf32>
    %76 = arith.subf %72, %75 : vector<18x18xf32>
    %77 = math.exp %76 : vector<18x18xf32>
    %cst_34 = arith.constant dense<0.000000e+00> : vector<18xf32>
    %78 = vector.multi_reduction <add>, %77, %cst_34 [1] : vector<18x18xf32> to vector<18xf32>
    %79 = vector.shape_cast %78 : vector<18xf32> to vector<18x1xf32>
    %80 = tpu.reciprocal %79 {approx = true} : vector<18x1xf32> -> vector<18x1xf32>
    %81 = vector.broadcast %80 : vector<18x1xf32> to vector<18x18xf32>
    %82 = arith.mulf %77, %81 : vector<18x18xf32>
    %83 = arith.truncf %82 : vector<18x18xf32> to vector<18x18xbf16>
    %cst_35 = arith.constant dense<0.000000e+00> : vector<18x128xf32>
    %84 = tpu.matmul %83, %68, %cst_35 {dimension_numbers = #tpu.dot_dimension_numbers<[1], [0], [0], [1], [0, 0, 1, 1], [], []>} : vector<18x18xbf16>, vector<18x128xbf16>, vector<18x128xf32> -> vector<18x128xf32>
    %85 = arith.truncf %84 : vector<18x128xf32> to vector<18x128xbf16>
    %86 = vector.extract_strided_slice %55 {offsets = [0, 0], sizes = [128, 32], strides = [1, 1]} : vector<320x32xbf16> to vector<128x32xbf16>
    %cst_36 = arith.constant dense<0.000000e+00> : vector<18x32xf32>
    %87 = tpu.matmul %85, %86, %cst_36 {dimension_numbers = #tpu.dot_dimension_numbers<[1], [0], [0], [1], [0, 0, 1, 1], [], []>} : vector<18x128xbf16>, vector<128x32xbf16>, vector<18x32xf32> -> vector<18x32xf32>
    %88 = arith.addf %65, %87 : vector<18x32xf32>
    %89 = vector.extract_strided_slice %64 {offsets = [0, 384], sizes = [18, 128], strides = [1, 1]} : vector<18x768xbf16> to vector<18x128xbf16>
    %90 = vector.extract_strided_slice %64 {offsets = [0, 512], sizes = [18, 128], strides = [1, 1]} : vector<18x768xbf16> to vector<18x128xbf16>
    %91 = vector.extract_strided_slice %64 {offsets = [0, 640], sizes = [18, 128], strides = [1, 1]} : vector<18x768xbf16> to vector<18x128xbf16>
    %cst_37 = arith.constant dense<0.000000e+00> : vector<18x18xf32>
    %92 = tpu.matmul %89, %90, %cst_37 {dimension_numbers = #tpu.dot_dimension_numbers<[1], [1], [0], [0], [0, 0, 1, 0], [], []>} : vector<18x128xbf16>, vector<18x128xbf16>, vector<18x18xf32> -> vector<18x18xf32>
    %cst_38 = arith.constant 2.500000e-01 : f32
    %93 = vector.broadcast %cst_38 : f32 to vector<18x18xf32>
    %94 = arith.mulf %92, %93 : vector<18x18xf32>
    %95 = arith.addf %94, %51 : vector<18x18xf32>
    %cst_39 = arith.constant dense<0xFF800000> : vector<18xf32>
    %96 = vector.multi_reduction <maximumf>, %95, %cst_39 [1] : vector<18x18xf32> to vector<18xf32>
    %97 = vector.shape_cast %96 : vector<18xf32> to vector<18x1xf32>
    %98 = vector.broadcast %97 : vector<18x1xf32> to vector<18x18xf32>
    %99 = arith.subf %95, %98 : vector<18x18xf32>
    %100 = math.exp %99 : vector<18x18xf32>
    %cst_40 = arith.constant dense<0.000000e+00> : vector<18xf32>
    %101 = vector.multi_reduction <add>, %100, %cst_40 [1] : vector<18x18xf32> to vector<18xf32>
    %102 = vector.shape_cast %101 : vector<18xf32> to vector<18x1xf32>
    %103 = tpu.reciprocal %102 {approx = true} : vector<18x1xf32> -> vector<18x1xf32>
    %104 = vector.broadcast %103 : vector<18x1xf32> to vector<18x18xf32>
    %105 = arith.mulf %100, %104 : vector<18x18xf32>
    %106 = arith.truncf %105 : vector<18x18xf32> to vector<18x18xbf16>
    %cst_41 = arith.constant dense<0.000000e+00> : vector<18x128xf32>
    %107 = tpu.matmul %106, %91, %cst_41 {dimension_numbers = #tpu.dot_dimension_numbers<[1], [0], [0], [1], [0, 0, 1, 1], [], []>} : vector<18x18xbf16>, vector<18x128xbf16>, vector<18x128xf32> -> vector<18x128xf32>
    %108 = arith.truncf %107 : vector<18x128xf32> to vector<18x128xbf16>
    %109 = vector.extract_strided_slice %55 {offsets = [128, 0], sizes = [128, 32], strides = [1, 1]} : vector<320x32xbf16> to vector<128x32xbf16>
    %cst_42 = arith.constant dense<0.000000e+00> : vector<18x32xf32>
    %110 = tpu.matmul %108, %109, %cst_42 {dimension_numbers = #tpu.dot_dimension_numbers<[1], [0], [0], [1], [0, 0, 1, 1], [], []>} : vector<18x128xbf16>, vector<128x32xbf16>, vector<18x32xf32> -> vector<18x32xf32>
    %111 = arith.addf %88, %110 : vector<18x32xf32>
    %112 = vector.extract_strided_slice %57 {offsets = [1, 0], sizes = [1, 32], strides = [1, 1]} : vector<8x768xf32> to vector<1x32xf32>
    %113 = vector.broadcast %112 : vector<1x32xf32> to vector<18x32xf32>
    %114 = arith.addf %111, %113 : vector<18x32xf32>
    %115 = arith.addf %114, %43 : vector<18x32xf32>
    %116 = vector.extract_strided_slice %57 {offsets = [2, 0], sizes = [1, 32], strides = [1, 1]} : vector<8x768xf32> to vector<1x32xf32>
    %117 = vector.extract_strided_slice %57 {offsets = [3, 0], sizes = [1, 32], strides = [1, 1]} : vector<8x768xf32> to vector<1x32xf32>
    %cst_43 = arith.constant dense<0.000000e+00> : vector<18xf32>
    %118 = vector.multi_reduction <add>, %115, %cst_43 [1] : vector<18x32xf32> to vector<18xf32>
    %119 = vector.shape_cast %118 : vector<18xf32> to vector<18x1xf32>
    %cst_44 = arith.constant 3.200000e+01 : f32
    %120 = vector.broadcast %cst_44 : f32 to vector<18x1xf32>
    %121 = arith.divf %119, %120 : vector<18x1xf32>
    %122 = arith.mulf %115, %115 : vector<18x32xf32>
    %cst_45 = arith.constant dense<0.000000e+00> : vector<18xf32>
    %123 = vector.multi_reduction <add>, %122, %cst_45 [1] : vector<18x32xf32> to vector<18xf32>
    %124 = vector.shape_cast %123 : vector<18xf32> to vector<18x1xf32>
    %cst_46 = arith.constant 3.200000e+01 : f32
    %125 = vector.broadcast %cst_46 : f32 to vector<18x1xf32>
    %126 = arith.divf %124, %125 : vector<18x1xf32>
    %127 = arith.mulf %121, %121 : vector<18x1xf32>
    %128 = arith.subf %126, %127 : vector<18x1xf32>
    %cst_47 = arith.constant 0.000000e+00 : f32
    %129 = vector.broadcast %cst_47 : f32 to vector<18x1xf32>
    %130 = arith.maximumf %128, %129 : vector<18x1xf32>
    %131 = vector.broadcast %121 : vector<18x1xf32> to vector<18x32xf32>
    %132 = arith.subf %115, %131 : vector<18x32xf32>
    %cst_48 = arith.constant 9.99999996E-13 : f32
    %133 = vector.broadcast %cst_48 : f32 to vector<18x1xf32>
    %134 = arith.addf %130, %133 : vector<18x1xf32>
    %135 = math.rsqrt %134 : vector<18x1xf32>
    %136 = vector.broadcast %135 : vector<18x1xf32> to vector<18x32xf32>
    %137 = arith.mulf %132, %136 : vector<18x32xf32>
    %138 = vector.broadcast %116 : vector<1x32xf32> to vector<18x32xf32>
    %139 = arith.mulf %137, %138 : vector<18x32xf32>
    %140 = vector.broadcast %117 : vector<1x32xf32> to vector<18x32xf32>
    %141 = arith.addf %139, %140 : vector<18x32xf32>
    %142 = arith.truncf %141 : vector<18x32xf32> to vector<18x32xbf16>
    %143 = vector.extract_strided_slice %53 {offsets = [0, 768], sizes = [32, 64], strides = [1, 1]} : vector<32x896xbf16> to vector<32x64xbf16>
    %cst_49 = arith.constant dense<0.000000e+00> : vector<18x64xf32>
    %144 = tpu.matmul %142, %143, %cst_49 {dimension_numbers = #tpu.dot_dimension_numbers<[1], [0], [0], [1], [0, 0, 1, 1], [], []>} : vector<18x32xbf16>, vector<32x64xbf16>, vector<18x64xf32> -> vector<18x64xf32>
    %145 = vector.extract_strided_slice %57 {offsets = [4, 0], sizes = [1, 64], strides = [1, 1]} : vector<8x768xf32> to vector<1x64xf32>
    %146 = vector.broadcast %145 : vector<1x64xf32> to vector<18x64xf32>
    %147 = arith.addf %144, %146 : vector<18x64xf32>
    %cst_50 = arith.constant 5.000000e-01 : f32
    %148 = vector.broadcast %cst_50 : f32 to vector<18x64xf32>
    %149 = arith.mulf %148, %147 : vector<18x64xf32>
    %cst_51 = arith.constant 4.471500e-02 : f32
    %150 = vector.broadcast %cst_51 : f32 to vector<18x64xf32>
    %151 = arith.mulf %150, %147 : vector<18x64xf32>
    %152 = arith.mulf %151, %147 : vector<18x64xf32>
    %153 = arith.mulf %152, %147 : vector<18x64xf32>
    %154 = arith.addf %147, %153 : vector<18x64xf32>
    %cst_52 = arith.constant 0.797884583 : f32
    %155 = vector.broadcast %cst_52 : f32 to vector<18x64xf32>
    %156 = arith.mulf %155, %154 : vector<18x64xf32>
    %157 = math.tanh %156 : vector<18x64xf32>
    %cst_53 = arith.constant 1.000000e+00 : f32
    %158 = vector.broadcast %cst_53 : f32 to vector<18x64xf32>
    %159 = arith.addf %158, %157 : vector<18x64xf32>
    %160 = arith.mulf %149, %159 : vector<18x64xf32>
    %161 = arith.truncf %160 : vector<18x64xf32> to vector<18x64xbf16>
    %162 = vector.extract_strided_slice %55 {offsets = [256, 0], sizes = [64, 32], strides = [1, 1]} : vector<320x32xbf16> to vector<64x32xbf16>
    %cst_54 = arith.constant dense<0.000000e+00> : vector<18x32xf32>
    %163 = tpu.matmul %161, %162, %cst_54 {dimension_numbers = #tpu.dot_dimension_numbers<[1], [0], [0], [1], [0, 0, 1, 1], [], []>} : vector<18x64xbf16>, vector<64x32xbf16>, vector<18x32xf32> -> vector<18x32xf32>
    %164 = vector.extract_strided_slice %57 {offsets = [5, 0], sizes = [1, 32], strides = [1, 1]} : vector<8x768xf32> to vector<1x32xf32>
    %165 = vector.broadcast %164 : vector<1x32xf32> to vector<18x32xf32>
    %166 = arith.addf %163, %165 : vector<18x32xf32>
    %167 = arith.addf %166, %141 : vector<18x32xf32>
    %168 = vector.extract_strided_slice %57 {offsets = [6, 0], sizes = [1, 32], strides = [1, 1]} : vector<8x768xf32> to vector<1x32xf32>
    %169 = vector.extract_strided_slice %57 {offsets = [7, 0], sizes = [1, 32], strides = [1, 1]} : vector<8x768xf32> to vector<1x32xf32>
    %cst_55 = arith.constant dense<0.000000e+00> : vector<18xf32>
    %170 = vector.multi_reduction <add>, %167, %cst_55 [1] : vector<18x32xf32> to vector<18xf32>
    %171 = vector.shape_cast %170 : vector<18xf32> to vector<18x1xf32>
    %cst_56 = arith.constant 3.200000e+01 : f32
    %172 = vector.broadcast %cst_56 : f32 to vector<18x1xf32>
    %173 = arith.divf %171, %172 : vector<18x1xf32>
    %174 = arith.mulf %167, %167 : vector<18x32xf32>
    %cst_57 = arith.constant dense<0.000000e+00> : vector<18xf32>
    %175 = vector.multi_reduction <add>, %174, %cst_57 [1] : vector<18x32xf32> to vector<18xf32>
    %176 = vector.shape_cast %175 : vector<18xf32> to vector<18x1xf32>
    %cst_58 = arith.constant 3.200000e+01 : f32
    %177 = vector.broadcast %cst_58 : f32 to vector<18x1xf32>
    %178 = arith.divf %176, %177 : vector<18x1xf32>
    %179 = arith.mulf %173, %173 : vector<18x1xf32>
    %180 = arith.subf %178, %179 : vector<18x1xf32>
    %cst_59 = arith.constant 0.000000e+00 : f32
    %181 = vector.broadcast %cst_59 : f32 to vector<18x1xf32>
    %182 = arith.maximumf %180, %181 : vector<18x1xf32>
    %183 = vector.broadcast %173 : vector<18x1xf32> to vector<18x32xf32>
    %184 = arith.subf %167, %183 : vector<18x32xf32>
    %cst_60 = arith.constant 9.99999996E-13 : f32
    %185 = vector.broadcast %cst_60 : f32 to vector<18x1xf32>
    %186 = arith.addf %182, %185 : vector<18x1xf32>
    %187 = math.rsqrt %186 : vector<18x1xf32>
    %188 = vector.broadcast %187 : vector<18x1xf32> to vector<18x32xf32>
    %189 = arith.mulf %184, %188 : vector<18x32xf32>
    %190 = vector.broadcast %168 : vector<1x32xf32> to vector<18x32xf32>
    %191 = arith.mulf %189, %190 : vector<18x32xf32>
    %192 = vector.broadcast %169 : vector<1x32xf32> to vector<18x32xf32>
    %193 = arith.addf %191, %192 : vector<18x32xf32>
    %c1 = arith.constant 1 : index
    %c0_61 = arith.constant 0 : index
    %c0_62 = arith.constant 0 : index
    %194 = vector.load %arg5[%c1, %c0_61, %c0_62] : memref<2x32x896xbf16, #tpu.memory_space<vmem>>, vector<1x32x896xbf16>
    %195 = vector.shape_cast %194 : vector<1x32x896xbf16> to vector<32x896xbf16>
    %c1_63 = arith.constant 1 : index
    %c0_64 = arith.constant 0 : index
    %c0_65 = arith.constant 0 : index
    %196 = vector.load %arg6[%c1_63, %c0_64, %c0_65] : memref<2x320x32xbf16, #tpu.memory_space<vmem>>, vector<1x320x32xbf16>
    %197 = vector.shape_cast %196 : vector<1x320x32xbf16> to vector<320x32xbf16>
    %c1_66 = arith.constant 1 : index
    %c0_67 = arith.constant 0 : index
    %c0_68 = arith.constant 0 : index
    %198 = vector.load %arg7[%c1_66, %c0_67, %c0_68] : memref<2x8x768xf32, #tpu.memory_space<vmem>>, vector<1x8x768xf32>
    %199 = vector.shape_cast %198 : vector<1x8x768xf32> to vector<8x768xf32>
    %200 = arith.truncf %193 : vector<18x32xf32> to vector<18x32xbf16>
    %201 = vector.extract_strided_slice %195 {offsets = [0, 0], sizes = [32, 768], strides = [1, 1]} : vector<32x896xbf16> to vector<32x768xbf16>
    %cst_69 = arith.constant dense<0.000000e+00> : vector<18x768xf32>
    %202 = tpu.matmul %200, %201, %cst_69 {dimension_numbers = #tpu.dot_dimension_numbers<[1], [0], [0], [1], [0, 0, 1, 1], [], []>} : vector<18x32xbf16>, vector<32x768xbf16>, vector<18x768xf32> -> vector<18x768xf32>
    %203 = vector.extract_strided_slice %199 {offsets = [0, 0], sizes = [1, 768], strides = [1, 1]} : vector<8x768xf32> to vector<1x768xf32>
    %204 = vector.broadcast %203 : vector<1x768xf32> to vector<18x768xf32>
    %205 = arith.addf %202, %204 : vector<18x768xf32>
    %206 = arith.truncf %205 : vector<18x768xf32> to vector<18x768xbf16>
    %cst_70 = arith.constant 0.000000e+00 : f32
    %207 = vector.broadcast %cst_70 : f32 to vector<18x32xf32>
    %208 = vector.extract_strided_slice %206 {offsets = [0, 0], sizes = [18, 128], strides = [1, 1]} : vector<18x768xbf16> to vector<18x128xbf16>
    %209 = vector.extract_strided_slice %206 {offsets = [0, 128], sizes = [18, 128], strides = [1, 1]} : vector<18x768xbf16> to vector<18x128xbf16>
    %210 = vector.extract_strided_slice %206 {offsets = [0, 256], sizes = [18, 128], strides = [1, 1]} : vector<18x768xbf16> to vector<18x128xbf16>
    %cst_71 = arith.constant dense<0.000000e+00> : vector<18x18xf32>
    %211 = tpu.matmul %208, %209, %cst_71 {dimension_numbers = #tpu.dot_dimension_numbers<[1], [1], [0], [0], [0, 0, 1, 0], [], []>} : vector<18x128xbf16>, vector<18x128xbf16>, vector<18x18xf32> -> vector<18x18xf32>
    %cst_72 = arith.constant 2.500000e-01 : f32
    %212 = vector.broadcast %cst_72 : f32 to vector<18x18xf32>
    %213 = arith.mulf %211, %212 : vector<18x18xf32>
    %214 = arith.addf %213, %51 : vector<18x18xf32>
    %cst_73 = arith.constant dense<0xFF800000> : vector<18xf32>
    %215 = vector.multi_reduction <maximumf>, %214, %cst_73 [1] : vector<18x18xf32> to vector<18xf32>
    %216 = vector.shape_cast %215 : vector<18xf32> to vector<18x1xf32>
    %217 = vector.broadcast %216 : vector<18x1xf32> to vector<18x18xf32>
    %218 = arith.subf %214, %217 : vector<18x18xf32>
    %219 = math.exp %218 : vector<18x18xf32>
    %cst_74 = arith.constant dense<0.000000e+00> : vector<18xf32>
    %220 = vector.multi_reduction <add>, %219, %cst_74 [1] : vector<18x18xf32> to vector<18xf32>
    %221 = vector.shape_cast %220 : vector<18xf32> to vector<18x1xf32>
    %222 = tpu.reciprocal %221 {approx = true} : vector<18x1xf32> -> vector<18x1xf32>
    %223 = vector.broadcast %222 : vector<18x1xf32> to vector<18x18xf32>
    %224 = arith.mulf %219, %223 : vector<18x18xf32>
    %225 = arith.truncf %224 : vector<18x18xf32> to vector<18x18xbf16>
    %cst_75 = arith.constant dense<0.000000e+00> : vector<18x128xf32>
    %226 = tpu.matmul %225, %210, %cst_75 {dimension_numbers = #tpu.dot_dimension_numbers<[1], [0], [0], [1], [0, 0, 1, 1], [], []>} : vector<18x18xbf16>, vector<18x128xbf16>, vector<18x128xf32> -> vector<18x128xf32>
    %227 = arith.truncf %226 : vector<18x128xf32> to vector<18x128xbf16>
    %228 = vector.extract_strided_slice %197 {offsets = [0, 0], sizes = [128, 32], strides = [1, 1]} : vector<320x32xbf16> to vector<128x32xbf16>
    %cst_76 = arith.constant dense<0.000000e+00> : vector<18x32xf32>
    %229 = tpu.matmul %227, %228, %cst_76 {dimension_numbers = #tpu.dot_dimension_numbers<[1], [0], [0], [1], [0, 0, 1, 1], [], []>} : vector<18x128xbf16>, vector<128x32xbf16>, vector<18x32xf32> -> vector<18x32xf32>
    %230 = arith.addf %207, %229 : vector<18x32xf32>
    %231 = vector.extract_strided_slice %206 {offsets = [0, 384], sizes = [18, 128], strides = [1, 1]} : vector<18x768xbf16> to vector<18x128xbf16>
    %232 = vector.extract_strided_slice %206 {offsets = [0, 512], sizes = [18, 128], strides = [1, 1]} : vector<18x768xbf16> to vector<18x128xbf16>
    %233 = vector.extract_strided_slice %206 {offsets = [0, 640], sizes = [18, 128], strides = [1, 1]} : vector<18x768xbf16> to vector<18x128xbf16>
    %cst_77 = arith.constant dense<0.000000e+00> : vector<18x18xf32>
    %234 = tpu.matmul %231, %232, %cst_77 {dimension_numbers = #tpu.dot_dimension_numbers<[1], [1], [0], [0], [0, 0, 1, 0], [], []>} : vector<18x128xbf16>, vector<18x128xbf16>, vector<18x18xf32> -> vector<18x18xf32>
    %cst_78 = arith.constant 2.500000e-01 : f32
    %235 = vector.broadcast %cst_78 : f32 to vector<18x18xf32>
    %236 = arith.mulf %234, %235 : vector<18x18xf32>
    %237 = arith.addf %236, %51 : vector<18x18xf32>
    %cst_79 = arith.constant dense<0xFF800000> : vector<18xf32>
    %238 = vector.multi_reduction <maximumf>, %237, %cst_79 [1] : vector<18x18xf32> to vector<18xf32>
    %239 = vector.shape_cast %238 : vector<18xf32> to vector<18x1xf32>
    %240 = vector.broadcast %239 : vector<18x1xf32> to vector<18x18xf32>
    %241 = arith.subf %237, %240 : vector<18x18xf32>
    %242 = math.exp %241 : vector<18x18xf32>
    %cst_80 = arith.constant dense<0.000000e+00> : vector<18xf32>
    %243 = vector.multi_reduction <add>, %242, %cst_80 [1] : vector<18x18xf32> to vector<18xf32>
    %244 = vector.shape_cast %243 : vector<18xf32> to vector<18x1xf32>
    %245 = tpu.reciprocal %244 {approx = true} : vector<18x1xf32> -> vector<18x1xf32>
    %246 = vector.broadcast %245 : vector<18x1xf32> to vector<18x18xf32>
    %247 = arith.mulf %242, %246 : vector<18x18xf32>
    %248 = arith.truncf %247 : vector<18x18xf32> to vector<18x18xbf16>
    %cst_81 = arith.constant dense<0.000000e+00> : vector<18x128xf32>
    %249 = tpu.matmul %248, %233, %cst_81 {dimension_numbers = #tpu.dot_dimension_numbers<[1], [0], [0], [1], [0, 0, 1, 1], [], []>} : vector<18x18xbf16>, vector<18x128xbf16>, vector<18x128xf32> -> vector<18x128xf32>
    %250 = arith.truncf %249 : vector<18x128xf32> to vector<18x128xbf16>
    %251 = vector.extract_strided_slice %197 {offsets = [128, 0], sizes = [128, 32], strides = [1, 1]} : vector<320x32xbf16> to vector<128x32xbf16>
    %cst_82 = arith.constant dense<0.000000e+00> : vector<18x32xf32>
    %252 = tpu.matmul %250, %251, %cst_82 {dimension_numbers = #tpu.dot_dimension_numbers<[1], [0], [0], [1], [0, 0, 1, 1], [], []>} : vector<18x128xbf16>, vector<128x32xbf16>, vector<18x32xf32> -> vector<18x32xf32>
    %253 = arith.addf %230, %252 : vector<18x32xf32>
    %254 = vector.extract_strided_slice %199 {offsets = [1, 0], sizes = [1, 32], strides = [1, 1]} : vector<8x768xf32> to vector<1x32xf32>
    %255 = vector.broadcast %254 : vector<1x32xf32> to vector<18x32xf32>
    %256 = arith.addf %253, %255 : vector<18x32xf32>
    %257 = arith.addf %256, %193 : vector<18x32xf32>
    %258 = vector.extract_strided_slice %199 {offsets = [2, 0], sizes = [1, 32], strides = [1, 1]} : vector<8x768xf32> to vector<1x32xf32>
    %259 = vector.extract_strided_slice %199 {offsets = [3, 0], sizes = [1, 32], strides = [1, 1]} : vector<8x768xf32> to vector<1x32xf32>
    %cst_83 = arith.constant dense<0.000000e+00> : vector<18xf32>
    %260 = vector.multi_reduction <add>, %257, %cst_83 [1] : vector<18x32xf32> to vector<18xf32>
    %261 = vector.shape_cast %260 : vector<18xf32> to vector<18x1xf32>
    %cst_84 = arith.constant 3.200000e+01 : f32
    %262 = vector.broadcast %cst_84 : f32 to vector<18x1xf32>
    %263 = arith.divf %261, %262 : vector<18x1xf32>
    %264 = arith.mulf %257, %257 : vector<18x32xf32>
    %cst_85 = arith.constant dense<0.000000e+00> : vector<18xf32>
    %265 = vector.multi_reduction <add>, %264, %cst_85 [1] : vector<18x32xf32> to vector<18xf32>
    %266 = vector.shape_cast %265 : vector<18xf32> to vector<18x1xf32>
    %cst_86 = arith.constant 3.200000e+01 : f32
    %267 = vector.broadcast %cst_86 : f32 to vector<18x1xf32>
    %268 = arith.divf %266, %267 : vector<18x1xf32>
    %269 = arith.mulf %263, %263 : vector<18x1xf32>
    %270 = arith.subf %268, %269 : vector<18x1xf32>
    %cst_87 = arith.constant 0.000000e+00 : f32
    %271 = vector.broadcast %cst_87 : f32 to vector<18x1xf32>
    %272 = arith.maximumf %270, %271 : vector<18x1xf32>
    %273 = vector.broadcast %263 : vector<18x1xf32> to vector<18x32xf32>
    %274 = arith.subf %257, %273 : vector<18x32xf32>
    %cst_88 = arith.constant 9.99999996E-13 : f32
    %275 = vector.broadcast %cst_88 : f32 to vector<18x1xf32>
    %276 = arith.addf %272, %275 : vector<18x1xf32>
    %277 = math.rsqrt %276 : vector<18x1xf32>
    %278 = vector.broadcast %277 : vector<18x1xf32> to vector<18x32xf32>
    %279 = arith.mulf %274, %278 : vector<18x32xf32>
    %280 = vector.broadcast %258 : vector<1x32xf32> to vector<18x32xf32>
    %281 = arith.mulf %279, %280 : vector<18x32xf32>
    %282 = vector.broadcast %259 : vector<1x32xf32> to vector<18x32xf32>
    %283 = arith.addf %281, %282 : vector<18x32xf32>
    %284 = arith.truncf %283 : vector<18x32xf32> to vector<18x32xbf16>
    %285 = vector.extract_strided_slice %195 {offsets = [0, 768], sizes = [32, 64], strides = [1, 1]} : vector<32x896xbf16> to vector<32x64xbf16>
    %cst_89 = arith.constant dense<0.000000e+00> : vector<18x64xf32>
    %286 = tpu.matmul %284, %285, %cst_89 {dimension_numbers = #tpu.dot_dimension_numbers<[1], [0], [0], [1], [0, 0, 1, 1], [], []>} : vector<18x32xbf16>, vector<32x64xbf16>, vector<18x64xf32> -> vector<18x64xf32>
    %287 = vector.extract_strided_slice %199 {offsets = [4, 0], sizes = [1, 64], strides = [1, 1]} : vector<8x768xf32> to vector<1x64xf32>
    %288 = vector.broadcast %287 : vector<1x64xf32> to vector<18x64xf32>
    %289 = arith.addf %286, %288 : vector<18x64xf32>
    %cst_90 = arith.constant 5.000000e-01 : f32
    %290 = vector.broadcast %cst_90 : f32 to vector<18x64xf32>
    %291 = arith.mulf %290, %289 : vector<18x64xf32>
    %cst_91 = arith.constant 4.471500e-02 : f32
    %292 = vector.broadcast %cst_91 : f32 to vector<18x64xf32>
    %293 = arith.mulf %292, %289 : vector<18x64xf32>
    %294 = arith.mulf %293, %289 : vector<18x64xf32>
    %295 = arith.mulf %294, %289 : vector<18x64xf32>
    %296 = arith.addf %289, %295 : vector<18x64xf32>
    %cst_92 = arith.constant 0.797884583 : f32
    %297 = vector.broadcast %cst_92 : f32 to vector<18x64xf32>
    %298 = arith.mulf %297, %296 : vector<18x64xf32>
    %299 = math.tanh %298 : vector<18x64xf32>
    %cst_93 = arith.constant 1.000000e+00 : f32
    %300 = vector.broadcast %cst_93 : f32 to vector<18x64xf32>
    %301 = arith.addf %300, %299 : vector<18x64xf32>
    %302 = arith.mulf %291, %301 : vector<18x64xf32>
    %303 = arith.truncf %302 : vector<18x64xf32> to vector<18x64xbf16>
    %304 = vector.extract_strided_slice %197 {offsets = [256, 0], sizes = [64, 32], strides = [1, 1]} : vector<320x32xbf16> to vector<64x32xbf16>
    %cst_94 = arith.constant dense<0.000000e+00> : vector<18x32xf32>
    %305 = tpu.matmul %303, %304, %cst_94 {dimension_numbers = #tpu.dot_dimension_numbers<[1], [0], [0], [1], [0, 0, 1, 1], [], []>} : vector<18x64xbf16>, vector<64x32xbf16>, vector<18x32xf32> -> vector<18x32xf32>
    %306 = vector.extract_strided_slice %199 {offsets = [5, 0], sizes = [1, 32], strides = [1, 1]} : vector<8x768xf32> to vector<1x32xf32>
    %307 = vector.broadcast %306 : vector<1x32xf32> to vector<18x32xf32>
    %308 = arith.addf %305, %307 : vector<18x32xf32>
    %309 = arith.addf %308, %283 : vector<18x32xf32>
    %310 = vector.extract_strided_slice %199 {offsets = [6, 0], sizes = [1, 32], strides = [1, 1]} : vector<8x768xf32> to vector<1x32xf32>
    %311 = vector.extract_strided_slice %199 {offsets = [7, 0], sizes = [1, 32], strides = [1, 1]} : vector<8x768xf32> to vector<1x32xf32>
    %cst_95 = arith.constant dense<0.000000e+00> : vector<18xf32>
    %312 = vector.multi_reduction <add>, %309, %cst_95 [1] : vector<18x32xf32> to vector<18xf32>
    %313 = vector.shape_cast %312 : vector<18xf32> to vector<18x1xf32>
    %cst_96 = arith.constant 3.200000e+01 : f32
    %314 = vector.broadcast %cst_96 : f32 to vector<18x1xf32>
    %315 = arith.divf %313, %314 : vector<18x1xf32>
    %316 = arith.mulf %309, %309 : vector<18x32xf32>
    %cst_97 = arith.constant dense<0.000000e+00> : vector<18xf32>
    %317 = vector.multi_reduction <add>, %316, %cst_97 [1] : vector<18x32xf32> to vector<18xf32>
    %318 = vector.shape_cast %317 : vector<18xf32> to vector<18x1xf32>
    %cst_98 = arith.constant 3.200000e+01 : f32
    %319 = vector.broadcast %cst_98 : f32 to vector<18x1xf32>
    %320 = arith.divf %318, %319 : vector<18x1xf32>
    %321 = arith.mulf %315, %315 : vector<18x1xf32>
    %322 = arith.subf %320, %321 : vector<18x1xf32>
    %cst_99 = arith.constant 0.000000e+00 : f32
    %323 = vector.broadcast %cst_99 : f32 to vector<18x1xf32>
    %324 = arith.maximumf %322, %323 : vector<18x1xf32>
    %325 = vector.broadcast %315 : vector<18x1xf32> to vector<18x32xf32>
    %326 = arith.subf %309, %325 : vector<18x32xf32>
    %cst_100 = arith.constant 9.99999996E-13 : f32
    %327 = vector.broadcast %cst_100 : f32 to vector<18x1xf32>
    %328 = arith.addf %324, %327 : vector<18x1xf32>
    %329 = math.rsqrt %328 : vector<18x1xf32>
    %330 = vector.broadcast %329 : vector<18x1xf32> to vector<18x32xf32>
    %331 = arith.mulf %326, %330 : vector<18x32xf32>
    %332 = vector.broadcast %310 : vector<1x32xf32> to vector<18x32xf32>
    %333 = arith.mulf %331, %332 : vector<18x32xf32>
    %334 = vector.broadcast %311 : vector<1x32xf32> to vector<18x32xf32>
    %335 = arith.addf %333, %334 : vector<18x32xf32>
    %336 = tpu.iota {dimensions = array<i32: 0>} : vector<8x18xi32>
    %337 = tpu.iota {dimensions = array<i32: 1>} : vector<8x18xi32>
    %c9_i32_101 = arith.constant 9 : i32
    %338 = vector.broadcast %c9_i32_101 : i32 to vector<8x18xi32>
    %339 = arith.muli %336, %338 : vector<8x18xi32>
    %340 = arith.cmpi eq, %337, %339 : vector<8x18xi32>
    %c2_i32 = arith.constant 2 : i32
    %341 = vector.broadcast %c2_i32 : i32 to vector<8x18xi32>
    %342 = arith.cmpi slt, %336, %341 : vector<8x18xi32>
    %343 = arith.andi %340, %342 : vector<8x18xi1>
    %344 = arith.extui %343 : vector<8x18xi1> to vector<8x18xi32>
    %345 = arith.sitofp %344 : vector<8x18xi32> to vector<8x18xf32>
    %cst_102 = arith.constant dense<0.000000e+00> : vector<8x32xf32>
    %346 = tpu.matmul %345, %335, %cst_102 {dimension_numbers = #tpu.dot_dimension_numbers<[1], [0], [0], [1], [0, 0, 1, 1], [], []>} : vector<8x18xf32>, vector<18x32xf32>, vector<8x32xf32> -> vector<8x32xf32>
    %347 = vector.extract_strided_slice %1 {offsets = [64, 0], sizes = [32, 32], strides = [1, 1]} : vector<128x512xbf16> to vector<32x32xbf16>
    %348 = arith.truncf %346 : vector<8x32xf32> to vector<8x32xbf16>
    %cst_103 = arith.constant dense<0.000000e+00> : vector<8x32xf32>
    %349 = tpu.matmul %348, %347, %cst_103 {dimension_numbers = #tpu.dot_dimension_numbers<[1], [0], [0], [1], [0, 0, 1, 1], [], []>} : vector<8x32xbf16>, vector<32x32xbf16>, vector<8x32xf32> -> vector<8x32xf32>
    %350 = vector.extract_strided_slice %0 {offsets = [2, 0], sizes = [1, 32], strides = [1, 1]} : vector<8x512xf32> to vector<1x32xf32>
    %351 = vector.broadcast %350 : vector<1x32xf32> to vector<8x32xf32>
    %352 = arith.addf %349, %351 : vector<8x32xf32>
    %353 = math.tanh %352 : vector<8x32xf32>
    %354 = vector.extract_strided_slice %1 {offsets = [96, 0], sizes = [32, 512], strides = [1, 1]} : vector<128x512xbf16> to vector<32x512xbf16>
    %355 = arith.truncf %353 : vector<8x32xf32> to vector<8x32xbf16>
    %cst_104 = arith.constant dense<0.000000e+00> : vector<8x512xf32>
    %356 = tpu.matmul %355, %354, %cst_104 {dimension_numbers = #tpu.dot_dimension_numbers<[1], [0], [0], [1], [0, 0, 1, 1], [], []>} : vector<8x32xbf16>, vector<32x512xbf16>, vector<8x512xf32> -> vector<8x512xf32>
    %357 = vector.extract_strided_slice %0 {offsets = [3, 0], sizes = [1, 512], strides = [1, 1]} : vector<8x512xf32> to vector<1x512xf32>
    %358 = vector.broadcast %357 : vector<1x512xf32> to vector<8x512xf32>
    %359 = arith.addf %356, %358 : vector<8x512xf32>
    %360 = arith.truncf %359 : vector<8x512xf32> to vector<8x512xbf16>
    %c0_105 = arith.constant 0 : index
    %c0_106 = arith.constant 0 : index
    %361 = vector.load %arg9[%c0_105, %c0_106] : memref<512x256xbf16, #tpu.memory_space<vmem>>, vector<512x256xbf16>
    %cst_107 = arith.constant dense<0.000000e+00> : vector<8x256xf32>
    %362 = tpu.matmul %360, %361, %cst_107 {dimension_numbers = #tpu.dot_dimension_numbers<[1], [0], [0], [1], [0, 0, 1, 1], [], []>} : vector<8x512xbf16>, vector<512x256xbf16>, vector<8x256xf32> -> vector<8x256xf32>
    %363 = vector.extract_strided_slice %0 {offsets = [4, 0], sizes = [1, 256], strides = [1, 1]} : vector<8x512xf32> to vector<1x256xf32>
    %364 = vector.broadcast %363 : vector<1x256xf32> to vector<8x256xf32>
    %365 = arith.addf %362, %364 : vector<8x256xf32>
    %366 = arith.truncf %365 : vector<8x256xf32> to vector<8x256xbf16>
    %c0_108 = arith.constant 0 : index
    %c0_109 = arith.constant 0 : index
    %367 = vector.load %arg10[%c0_108, %c0_109] : memref<256x128xbf16, #tpu.memory_space<vmem>>, vector<256x128xbf16>
    %cst_110 = arith.constant dense<0.000000e+00> : vector<8x128xf32>
    %368 = tpu.matmul %366, %367, %cst_110 {dimension_numbers = #tpu.dot_dimension_numbers<[1], [0], [0], [1], [0, 0, 1, 1], [], []>} : vector<8x256xbf16>, vector<256x128xbf16>, vector<8x128xf32> -> vector<8x128xf32>
    %369 = vector.extract_strided_slice %0 {offsets = [5, 0], sizes = [1, 128], strides = [1, 1]} : vector<8x512xf32> to vector<1x128xf32>
    %370 = vector.broadcast %369 : vector<1x128xf32> to vector<8x128xf32>
    %371 = arith.addf %368, %370 : vector<8x128xf32>
    %c0_111 = arith.constant 0 : index
    %c0_112 = arith.constant 0 : index
    %372 = vector.load %arg12[%c0_111, %c0_112] : memref<8x128xf32, #tpu.memory_space<vmem>>, vector<8x128xf32>
    tpu.vector_store %arg12[%c0_111, %c0_112], %371 {strides = array<i32>} : memref<8x128xf32, #tpu.memory_space<vmem>>, vector<8x128xf32>,
    return
  }
  func.func @transform_0(%arg0: i32) -> (i32, i32) {
    %c0_i32 = arith.constant 0 : i32
    %c0_i32_0 = arith.constant 0 : i32
    %c0_i32_1 = arith.constant 0 : i32
    return %c0_i32, %c0_i32_0 : i32, i32
  }
  func.func @transform_1(%arg0: i32) -> (i32, i32) {
    %c0_i32 = arith.constant 0 : i32
    %c0_i32_0 = arith.constant 0 : i32
    %c0_i32_1 = arith.constant 0 : i32
    return %c0_i32, %c0_i32_0 : i32, i32
  }
  func.func @transform_2(%arg0: i32) -> (i32, i32) {
    %c0_i32 = arith.constant 0 : i32
    %c0_i32_0 = arith.constant 0 : i32
    %c0_i32_1 = arith.constant 0 : i32
    return %c0_i32, %c0_i32_0 : i32, i32
  }
  func.func @transform_3(%arg0: i32) -> (i32, i32) {
    %c0_i32 = arith.constant 0 : i32
    %c0_i32_0 = arith.constant 0 : i32
    %c0_i32_1 = arith.constant 0 : i32
    return %c0_i32, %c0_i32_0 : i32, i32
  }
  func.func @transform_4(%arg0: i32) -> (i32, i32, i32) {
    %c0_i32 = arith.constant 0 : i32
    %c0_i32_0 = arith.constant 0 : i32
    %c0_i32_1 = arith.constant 0 : i32
    %c0_i32_2 = arith.constant 0 : i32
    return %c0_i32, %c0_i32_0, %c0_i32_1 : i32, i32, i32
  }
  func.func @transform_5(%arg0: i32) -> (i32, i32, i32) {
    %c0_i32 = arith.constant 0 : i32
    %c0_i32_0 = arith.constant 0 : i32
    %c0_i32_1 = arith.constant 0 : i32
    %c0_i32_2 = arith.constant 0 : i32
    return %c0_i32, %c0_i32_0, %c0_i32_1 : i32, i32, i32
  }
  func.func @transform_6(%arg0: i32) -> (i32, i32, i32) {
    %c0_i32 = arith.constant 0 : i32
    %c0_i32_0 = arith.constant 0 : i32
    %c0_i32_1 = arith.constant 0 : i32
    %c0_i32_2 = arith.constant 0 : i32
    return %c0_i32, %c0_i32_0, %c0_i32_1 : i32, i32, i32
  }
  func.func @transform_7(%arg0: i32) -> (i32, i32) {
    %c0_i32 = arith.constant 0 : i32
    %c0_i32_0 = arith.constant 0 : i32
    %c0_i32_1 = arith.constant 0 : i32
    return %c0_i32, %c0_i32_0 : i32, i32
  }
  func.func @transform_8(%arg0: i32) -> (i32, i32) {
    %c0_i32 = arith.constant 0 : i32
    %c0_i32_0 = arith.constant 0 : i32
    %c0_i32_1 = arith.constant 0 : i32
    return %c0_i32, %c0_i32_0 : i32, i32
  }
  func.func @transform_9(%arg0: i32) -> (i32, i32) {
    %c0_i32 = arith.constant 0 : i32
    %c0_i32_0 = arith.constant 0 : i32
    %c0_i32_1 = arith.constant 0 : i32
    return %c0_i32, %c0_i32_0 : i32, i32
  }
  func.func @transform_10(%arg0: i32) -> (i32, i32) {
    %c0_i32 = arith.constant 0 : i32
    %c0_i32_0 = arith.constant 0 : i32
    %c0_i32_1 = arith.constant 0 : i32
    return %c0_i32, %c0_i32_0 : i32, i32
  }
  func.func @transform_11(%arg0: i32) -> (i32, i32) {
    %c0_i32 = arith.constant 0 : i32
    %c0_i32_0 = arith.constant 0 : i32
    %c0_i32_1 = arith.constant 0 : i32
    return %c0_i32, %c0_i32_0 : i32, i32
  }
}

</mosaic_0001>

<llo_original>
// kernel: _lambda_.1
$region0: #{_lambda_.1}
  #allocation0 [shape = 'u32[]', space=smem, size = 0x4, offset = 0x4, fixed_abs, tag = 'smem constant byte address 0x4 - core index']
  #allocation1 [shape = 'u32[144,128]{1,0:T(1,128)}', space=vmem, size = 0x12000, scoped, tag = 'internal scratch']
  %s0 = inlined_call_operand.vmem [shape: f32[18,32], index: 0, kind: input, shape index: {}]
  %s1 = inlined_call_operand.vmem [shape: f32[2,64], index: 1, kind: input, shape index: {}]
  %s2 = inlined_call_operand.vmem [shape: f32[1,18], index: 2, kind: input, shape index: {}]
  %s3 = inlined_call_operand.vmem [shape: f32[18,1], index: 3, kind: input, shape index: {}]
  %s4 = inlined_call_operand.vmem [shape: bf16[2,32,896], index: 4, kind: input, shape index: {}]
  %s5 = inlined_call_operand.vmem [shape: bf16[2,320,32], index: 5, kind: input, shape index: {}]
  %s6 = inlined_call_operand.hbm [shape: f32[2,8,768], index: 6, kind: input, shape index: {}]
  %s7 = inlined_call_operand.vmem [shape: bf16[128,512], index: 7, kind: input, shape index: {}]
  %s8 = inlined_call_operand.vmem [shape: bf16[512,256], index: 8, kind: input, shape index: {}]
  %s9 = inlined_call_operand.vmem [shape: bf16[256,128], index: 9, kind: input, shape index: {}]
  %s10 = inlined_call_operand.hbm [shape: f32[8,512], index: 10, kind: input, shape index: {}]
  %s11 = inlined_call_operand.vmem [shape: f32[8,128], index: 11, kind: output, shape index: {}]
  %s12 = sld [smem:[#allocation0]]
  $region62: #{_lambda_.1} parent=0
    _
  %s14 = ssub.s32 1, %s12
  %s15 = scalar_select 0, %s14, %s12
  $region1: #{_lambda_.1} parent=0
    #allocation2 [shape = 'u8[49152]{0}', space=vmem, size = 0xc000, scoped, tag = 'input window, operand 6, single buffered']
    #allocation3 [shape = 's32[1]{0}', space=sflag, size = 0x4, scoped, tag = 'scoped memory for _lambda_.1']
    #allocation4 [shape = 'u8[16384]{0}', space=vmem, size = 0x4000, scoped, tag = 'input window, operand 10, single buffered']
    #allocation5 [shape = 's32[1]{0}', space=sflag, size = 0x4, scoped, tag = 'scoped memory for _lambda_.1']
    %16 = vsyncpa [#allocation3], 0
    %17 = vsyncpa [#allocation5], 0
    // Predicated region
    $region2: #{_lambda_.1} parent=1 // pred_check
      _
    $region3: #{_lambda_.1} parent=1 // pred_check_branch
      %19 = sbr.rel (0) target = $region5
    $region4: #{_lambda_.1} parent=1 // pred_region
      _
    $region5: #{_lambda_.1} parent=1 // pred_fallthru
      _
    // Predicated region
    $region6: #{_lambda_.1} parent=1 // pred_check
      _
    $region7: #{_lambda_.1} parent=1 // pred_check_branch
      %21 = sbr.rel (0) target = $region9
    $region8: #{_lambda_.1} parent=1 // pred_region
      _
    $region9: #{_lambda_.1} parent=1 // pred_fallthru
      _
    // Predicated region
    $region10: #{_lambda_.1} parent=1 // pred_check
      _
    $region11: #{_lambda_.1} parent=1 // pred_check_branch
      %23 = sbr.rel (0) target = $region13
    $region12: #{_lambda_.1} parent=1 // pred_region
      _
    $region13: #{_lambda_.1} parent=1 // pred_fallthru
      _
    // Predicated region
    $region14: #{_lambda_.1} parent=1 // pred_check
      _
    $region15: #{_lambda_.1} parent=1 // pred_check_branch
      %25 = sbr.rel (0) target = $region17
    $region16: #{_lambda_.1} parent=1 // pred_region
      _
    $region17: #{_lambda_.1} parent=1 // pred_fallthru
      _
    // Predicated region
    $region18: #{_lambda_.1} parent=1 // pred_check
      _
    $region19: #{_lambda_.1} parent=1 // pred_check_branch
      %27 = sbr.rel (0) target = $region21
    $region20: #{_lambda_.1} parent=1 // pred_region
      _
    $region21: #{_lambda_.1} parent=1 // pred_fallthru
      _
    // Predicated region
    $region22: #{_lambda_.1} parent=1 // pred_check
      _
    $region23: #{_lambda_.1} parent=1 // pred_check_branch
      %29 = sbr.rel (0) target = $region25
    $region24: #{_lambda_.1} parent=1 // pred_region
      _
    $region25: #{_lambda_.1} parent=1 // pred_fallthru
      _
    // Predicated region
    $region26: #{_lambda_.1} parent=1 // pred_check
      _
    $region27: #{_lambda_.1} parent=1 // pred_check_branch
      %31 = sbr.rel (0) target = $region29
    $region28: #{_lambda_.1} parent=1 // pred_region
      %s33 = ssub.s32 1536, 1536
      %34 = vsyncadd [#allocation3], %s33
      %s35 = sshll.u32 [#allocation2], 4
      %s36 = int_to_ptr.vmem [resolvable:$true] %s35
      %41 = dma.hbm_to_vmem [thread:$0]  %s6, 1536, %s36, [#allocation3], 768, 768, 48
    $region29: #{_lambda_.1} parent=1 // pred_fallthru
      _
    // Predicated region
    $region30: #{_lambda_.1} parent=1 // pred_check
      _
    $region31: #{_lambda_.1} parent=1 // pred_check_branch
      %43 = sbr.rel (0) target = $region33
    $region32: #{_lambda_.1} parent=1 // pred_region
      _
    $region33: #{_lambda_.1} parent=1 // pred_fallthru
      _
    // Predicated region
    $region34: #{_lambda_.1} parent=1 // pred_check
      _
    $region35: #{_lambda_.1} parent=1 // pred_check_branch
      %45 = sbr.rel (0) target = $region37
    $region36: #{_lambda_.1} parent=1 // pred_region
      _
    $region37: #{_lambda_.1} parent=1 // pred_fallthru
      _
    // Predicated region
    $region38: #{_lambda_.1} parent=1 // pred_check
      _
    $region39: #{_lambda_.1} parent=1 // pred_check_branch
      %47 = sbr.rel (0) target = $region41
    $region40: #{_lambda_.1} parent=1 // pred_region
      _
    $region41: #{_lambda_.1} parent=1 // pred_fallthru
      _
    // Predicated region
    $region42: #{_lambda_.1} parent=1 // pred_check
      _
    $region43: #{_lambda_.1} parent=1 // pred_check_branch
      %49 = sbr.rel (0) target = $region45
    $region44: #{_lambda_.1} parent=1 // pred_region
      %s51 = ssub.s32 512, 512
      %52 = vsyncadd [#allocation5], %s51
      %s54 = sshll.u32 [#allocation4], 4
      %s55 = int_to_ptr.vmem [resolvable:$true] %s54
      %57 = dma.hbm_to_vmem [thread:$0]  %s10, 512, %s55, [#allocation5]
    $region45: #{_lambda_.1} parent=1 // pred_fallthru
      _
    // Predicated region
    $region46: #{_lambda_.1} parent=1 // pred_check
      _
    $region47: #{_lambda_.1} parent=1 // pred_check_branch
      %59 = sbr.rel (0) target = $region49
    $region48: #{_lambda_.1} parent=1 // pred_region
      %60 = dma.done [#allocation3], 1536
    $region49: #{_lambda_.1} parent=1 // pred_fallthru
      _
    // Predicated region
    $region50: #{_lambda_.1} parent=1 // pred_check
      _
    $region51: #{_lambda_.1} parent=1 // pred_check_branch
      %62 = sbr.rel (0) target = $region53
    $region52: #{_lambda_.1} parent=1 // pred_region
      %63 = dma.done [#allocation5], 512
    $region53: #{_lambda_.1} parent=1 // pred_fallthru
      _
    %v65 = vld [vmem:[#allocation4] sm:$0xff]
    %v66 = vld [vmem:[#allocation4 + $0x8] sm:$0xff]
    %v67 = vld [vmem:[#allocation4 + $0x10] sm:$0xff]
    %v68 = vld [vmem:[#allocation4 + $0x18] sm:$0xff]
    %v69 = vld [vmem:[%s7] sm:$0xff]
    %v70 = vld [vmem:[%s7 + $0x10] sm:$0xff]
    %v71 = vld [vmem:[%s7 + $0x20] sm:$0xff]
    %v72 = vld [vmem:[%s7 + $0x30] sm:$0xff]
    %v73 = vld [vmem:[%s7 + $0x40] sm:$0xff]
    %v74 = vld [vmem:[%s7 + $0x50] sm:$0xff]
    %v75 = vld [vmem:[%s7 + $0x60] sm:$0xff]
    %v76 = vld [vmem:[%s7 + $0x70] sm:$0xff]
    %v77 = vld [vmem:[%s7 + $0x80] sm:$0xff]
    %v78 = vld [vmem:[%s7 + $0x90] sm:$0xff]
    %v79 = vld [vmem:[%s7 + $0xa0] sm:$0xff]
    %v80 = vld [vmem:[%s7 + $0xb0] sm:$0xff]
    %v81 = vld [vmem:[%s7 + $0xc0] sm:$0xff]
    %v82 = vld [vmem:[%s7 + $0xc8] sm:$0xff]
    %v83 = vld [vmem:[%s7 + $0xd0] sm:$0xff]
    %v84 = vld [vmem:[%s7 + $0xd8] sm:$0xff]
    %v85 = vld [vmem:[%s7 + $0xe0] sm:$0xff]
    %v86 = vld [vmem:[%s7 + $0xe8] sm:$0xff]
    %v87 = vld [vmem:[%s7 + $0xf0] sm:$0xff]
    %v88 = vld [vmem:[%s7 + $0xf8] sm:$0xff]
    %v89 = vld [vmem:[%s1] sm:$0x3]
    %v90 = vpack.c.bf16 %v89, %v89
    %v99 = vunpack.c.l.b16 %v69
    %v100 = vunpack.c.l.b16 %v70
    %v101 = vunpack.c.l.b16 %v71
    %v102 = vunpack.c.l.b16 %v72
    %v103 = vunpack.c.l.b16 %v73
    %v104 = vunpack.c.l.b16 %v74
    %v105 = vunpack.c.l.b16 %v75
    %v106 = vunpack.c.l.b16 %v76
    %v107 = vpack.c.b16 %v100, %v99
    %v108 = vpack.c.b16 %v102, %v101
    %v109 = vpack.c.b16 %v104, %v103
    %v110 = vpack.c.b16 %v106, %v105
    %vm115 = vcmask 523264
    %v117 = vsel %vm115, %v90, 0
    %119 = vmatprep.subr.bf16.mxu0 0
    %120 = vmatpush1.bf16.msra.mxu0 %v107
    %121 = vmatprep.subr.bf16.mxu0 0
    %122 = vmatpush1.bf16.msra.mxu0 %v108
    %123 = vmatprep.subr.bf16.mxu0 0
    %124 = vmatpush1.bf16.msra.mxu0 %v109
    %125 = vmatprep.subr.bf16.mxu0 0
    %126 = vmatpush1.bf16.msra.mxu0 %v110
    %127 = vmatprep.subr.bf16.mxu0 0
    %128 = vmatpush1.bf16.msra.mxu0 0
    %129 = vmatprep.subr.bf16.mxu0 0
    %130 = vmatpush1.bf16.msra.mxu0 0
    %131 = vmatprep.subr.bf16.mxu0 0
    %132 = vmatpush1.bf16.msra.mxu0 0
    %133 = vmatprep.subr.bf16.mxu0 0
    %134 = vmatpush1.bf16.msra.mxu0 0
    %135 = vmatprep.subr.bf16.mxu0 0
    %136 = vmatpush1.bf16.msra.mxu0 0
    %137 = vmatprep.subr.bf16.mxu0 0
    %138 = vmatpush1.bf16.msra.mxu0 0
    %139 = vmatprep.subr.bf16.mxu0 0
    %140 = vmatpush1.bf16.msra.mxu0 0
    %141 = vmatprep.subr.bf16.mxu0 0
    %142 = vmatpush1.bf16.msra.mxu0 0
    %143 = vmatprep.subr.bf16.mxu0 0
    %144 = vmatpush1.bf16.msra.mxu0 0
    %145 = vmatprep.subr.bf16.mxu0 0
    %146 = vmatpush1.bf16.msra.mxu0 0
    %147 = vmatprep.subr.bf16.mxu0 0
    %148 = vmatpush1.bf16.msra.mxu0 0
    %149 = vmatprep.subr.bf16.mxu0 0
    %150 = vmatpush1.bf16.msra.mxu0 0
    %151 = vmatprep.mubr.bf16.mxu0 0
    %152 = vmatmul.mubr.bf16.gmra.mrb[0].mxu0 %v117
    %v153 = vpop.f32.mrb[0].mxu0
    %v154 = vadd.f32 0.0, %v153
    %v155 = vpop.f32.mrb[0].mxu0
    %v156 = vpop.f32.mrb[0].mxu0
    %v157 = vpop.f32.mrb[0].mxu0
    %158 = vdwg.mxu0
    %v159 = vlaneseq
    %v160 = vshrl.u32 %v159, 7
    %v161 = vadd.s32 %v160, 8
    %v162 = vadd.s32 %v160, 16
    %v163 = vlaneseq
    %v164 = vand.u32 %v163, 127
    %v165 = vmul.u32 %v164, 9
    %v166 = vadd.s32 %v165, 8
    %vm167 = vcmp.eq.s32.totalorder %v160, %v166
    %vm168 = vcmp.eq.s32.totalorder %v161, %v166
    %vm169 = vcmp.eq.s32.totalorder %v162, %v166
    %v170 = vsel %vm167, 1, 0
    %v171 = vsel %vm168, 1, 0
    %v172 = vsel %vm169, 1, 0
    %v173 = vcvt.s32.f32 %v170
    %v174 = vcvt.s32.f32 %v171
    %v175 = vcvt.s32.f32 %v172
    %v176 = vld [vmem:[%s0] sm:$0xff]
    %v177 = vld [vmem:[%s0 + $0x8] sm:$0xff]
    %v178 = vld [vmem:[%s0 + $0x10] sm:$0x3]
    %vm179 = vcmask 15360
    %v181 = vsel %vm179, %v173, 0
    %v184 = vsel %vm179, %v174, 0
    %v187 = vsel %vm179, %v175, 0
    %vm189 = vcmask 1041408
    %v191 = vsel %vm189, %v154, 0
    %193 = vmatprep.subr.mxu0 0.0
    %194 = vmatpush1.msra.mxu0 %v191
    %195 = vmatprep.subr.mxu0 0.0
    %196 = vmatpush1.msra.mxu0 0.0
    %197 = vmatprep.subr.mxu0 0.0
    %198 = vmatpush1.msra.mxu0 0.0
    %199 = vmatprep.subr.mxu0 0.0
    %200 = vmatpush1.msra.mxu0 0.0
    %201 = vmatprep.subr.mxu0 0.0
    %202 = vmatpush1.msra.mxu0 0.0
    %203 = vmatprep.subr.mxu0 0.0
    %204 = vmatpush1.msra.mxu0 0.0
    %205 = vmatprep.subr.mxu0 0.0
    %206 = vmatpush1.msra.mxu0 0.0
    %207 = vmatprep.subr.mxu0 0.0
    %208 = vmatpush1.msra.mxu0 0.0
    %209 = vmatprep.subr.mxu0 0.0
    %210 = vmatpush1.msra.mxu0 0.0
    %211 = vmatprep.subr.mxu0 0.0
    %212 = vmatpush1.msra.mxu0 0.0
    %213 = vmatprep.subr.mxu0 0.0
    %214 = vmatpush1.msra.mxu0 0.0
    %215 = vmatprep.subr.mxu0 0.0
    %216 = vmatpush1.msra.mxu0 0.0
    %217 = vmatprep.subr.mxu0 0.0
    %218 = vmatpush1.msra.mxu0 0.0
    %219 = vmatprep.subr.mxu0 0.0
    %220 = vmatpush1.msra.mxu0 0.0
    %221 = vmatprep.subr.mxu0 0.0
    %222 = vmatpush1.msra.mxu0 0.0
    %223 = vmatprep.subr.mxu0 0.0
    %224 = vmatpush1.msra.mxu0 0.0
    %225 = vmatprep.subr.mxu0 0.0
    %226 = vmatpush1.msra.mxu0 0.0
    %227 = vmatprep.subr.mxu0 0.0
    %228 = vmatpush1.msra.mxu0 0.0
    %229 = vmatprep.subr.mxu0 0.0
    %230 = vmatpush1.msra.mxu0 0.0
    %231 = vmatprep.subr.mxu0 0.0
    %232 = vmatpush1.msra.mxu0 0.0
    %233 = vmatprep.subr.mxu0 0.0
    %234 = vmatpush1.msra.mxu0 0.0
    %235 = vmatprep.subr.mxu0 0.0
    %236 = vmatpush1.msra.mxu0 0.0
    %237 = vmatprep.subr.mxu0 0.0
    %238 = vmatpush1.msra.mxu0 0.0
    %239 = vmatprep.subr.mxu0 0.0
    %240 = vmatpush1.msra.mxu0 0.0
    %241 = vmatprep.subr.mxu0 0.0
    %242 = vmatpush1.msra.mxu0 0.0
    %243 = vmatprep.subr.mxu0 0.0
    %244 = vmatpush1.msra.mxu0 0.0
    %245 = vmatprep.subr.mxu0 0.0
    %246 = vmatpush1.msra.mxu0 0.0
    %247 = vmatprep.subr.mxu0 0.0
    %248 = vmatpush1.msra.mxu0 0.0
    %249 = vmatprep.subr.mxu0 0.0
    %250 = vmatpush1.msra.mxu0 0.0
    %251 = vmatprep.subr.mxu0 0.0
    %252 = vmatpush1.msra.mxu0 0.0
    %253 = vmatprep.subr.mxu0 0.0
    %254 = vmatpush1.msra.mxu0 0.0
    %255 = vmatprep.subr.mxu0 0.0
    %256 = vmatpush1.msra.mxu0 0.0
    %257 = vmatprep.mubr.f32.mxu0 0.0
    %258 = vmatmul.mubr.f32.gmra.mrb[0].mxu0 %v181
    %v259 = vpop.f32.mrb[0].mxu0
    %v260 = vadd.f32 0.0, %v259
    %v261 = vpop.f32.mrb[0].mxu0
    %262 = vmatprep.mubr.f32.mxu0 0.0
    %263 = vmatmul.mubr.f32.gmra.mrb[0].mxu0 %v184
    %v264 = vpop.f32.mrb[0].mxu0
    %v265 = vadd.f32 0.0, %v264
    %v266 = vpop.f32.mrb[0].mxu0
    %267 = vmatprep.mubr.f32.mxu0 0.0
    %268 = vmatmul.mubr.f32.gmra.mrb[0].mxu0 %v187
    %v269 = vpop.f32.mrb[0].mxu0
    %v270 = vadd.f32 0.0, %v269
    %v271 = vpop.f32.mrb[0].mxu0
    %272 = vdwg.mxu0
    %v273 = vadd.f32 %v176, %v260
    %v274 = vadd.f32 %v177, %v265
    %v275 = vadd.f32 %v178, %v270
    %vm276 = vcmask 261120
    %v277 = vsel %vm276, %v273, 0.0
    %278 = vadd.xlane.f32.xlu0 %v277
    %v279 = vpop.xlane.xlu0 %278
    %v280 = vsel %vm276, %v274, 0.0
    %281 = vadd.xlane.f32.xlu0 %v280
    %v282 = vpop.xlane.xlu0 %281
    %vm283 = vcmask 254976
    %v284 = vsel %vm283, %v275, 0.0
    %285 = vadd.xlane.f32.xlu0 %v284
    %v286 = vpop.xlane.xlu0 %285
    %v287 = vrcp.pop 32.0
    %v288 = vmul.f32 %v279, %v287
    %v289 = vmul.f32 %v282, %v287
    %v290 = vmul.f32 %v286, %v287
    %v291 = vmul.f32 %v273, %v273
    %v292 = vmul.f32 %v274, %v274
    %v293 = vmul.f32 %v275, %v275
    %v294 = vsel %vm276, %v291, 0.0
    %295 = vadd.xlane.f32.xlu0 %v294
    %v296 = vpop.xlane.xlu0 %295
    %v297 = vsel %vm276, %v292, 0.0
    %298 = vadd.xlane.f32.xlu0 %v297
    %v299 = vpop.xlane.xlu0 %298
    %v300 = vsel %vm283, %v293, 0.0
    %301 = vadd.xlane.f32.xlu0 %v300
    %v302 = vpop.xlane.xlu0 %301
    %v303 = vmul.f32 %v296, %v287
    %v304 = vmul.f32 %v299, %v287
    %v305 = vmul.f32 %v302, %v287
    %v306 = vmul.f32 %v288, %v288
    %v307 = vmul.f32 %v289, %v289
    %v308 = vmul.f32 %v290, %v290
    %v309 = vsub.f32 %v303, %v306
    %v310 = vsub.f32 %v304, %v307
    %v311 = vsub.f32 %v305, %v308
    %v312 = vmax.f32 %v309, 0.0
    %v313 = vmax.f32 %v310, 0.0
    %v314 = vmax.f32 %v311, 0.0
    %v315 = vsub.f32 %v273, %v288
    %v316 = vsub.f32 %v274, %v289
    %v317 = vsub.f32 %v275, %v290
    %v318 = vadd.f32 %v312, 1e-12
    %v319 = vadd.f32 %v313, 1e-12
    %v320 = vadd.f32 %v314, 1e-12
    %v321 = vrsqrt.pop %v318
    %v322 = vrsqrt.pop %v319
    %v323 = vrsqrt.pop %v320
    %v324 = vmul.f32 %v315, %v321
    %v325 = vmul.f32 %v316, %v322
    %v326 = vmul.f32 %v317, %v323
    %v327 = vlaneseq
    %v328 = vshrl.u32 %v327, 7
    %v329 = vsub.s32 0, %v328
    %v330 = vrot.slane %v65, %v329
    %v331 = vmul.f32 %v324, %v330
    %v332 = vmul.f32 %v325, %v330
    %v333 = vmul.f32 %v326, %v330
    %v334 = vlaneseq
    %v335 = vshrl.u32 %v334, 7
    %v336 = vsub.s32 1, %v335
    %v337 = vrot.slane %v65, %v336
    %v338 = vadd.f32 %v331, %v337
    %v339 = vadd.f32 %v332, %v337
    %v340 = vadd.f32 %v333, %v337
    %v341 = vld [vmem:[%s3] sm:$0xff]
    %v342 = vld [vmem:[%s3 + $0x8] sm:$0xff]
    %v343 = vld [vmem:[%s3 + $0x10] sm:$0x3]
    %v344 = vld [vmem:[%s2] sm:$0x1]
    %346 = vset.pattern.permute.xlu0 0
    %347 = vperm.xlu0 %346, %v341
    %v348 = vpop.permute.xlu0 %347
    %351 = vset.pattern.permute.xlu0 0
    %352 = vperm.xlu0 %351, %v342
    %v353 = vpop.permute.xlu0 %352
    %356 = vset.pattern.permute.xlu0 0
    %357 = vperm.xlu0 %356, %v343
    %v358 = vpop.permute.xlu0 %357
    %v361 = vlaneseq
    %v362 = vshrl.u32 %v361, 7
    %v363 = vsub.s32 0, %v362
    %v364 = vrot.slane %v344, %v363
    %vm366 = vcmp.eq.f32.partialorder %v348, %v364
    %vm367 = vcmp.eq.f32.partialorder %v353, %v364
    %vm368 = vcmp.eq.f32.partialorder %v358, %v364
    %v369 = vsel %vm366, 0.0, -1e+09
    %v370 = vsel %vm367, 0.0, -1e+09
    %v371 = vsel %vm368, 0.0, -1e+09
    %v372 = vld [vmem:[%s4] sm:$0xff]
    %v373 = vld [vmem:[%s4 + $0x8] sm:$0xff]
    %v374 = vld [vmem:[%s4 + $0x10] sm:$0xff]
    %v375 = vld [vmem:[%s4 + $0x18] sm:$0xf]
    %v376 = vld [vmem:[%s4 + $0x1c] sm:$0xff]
    %v377 = vld [vmem:[%s4 + $0x24] sm:$0xff]
    %v378 = vld [vmem:[%s4 + $0x2c] sm:$0xff]
    %v379 = vld [vmem:[%s4 + $0x34] sm:$0xf]
    %v380 = vld [vmem:[%s4 + $0x38] sm:$0xff]
    %v381 = vld [vmem:[%s4 + $0x40] sm:$0xff]
    %v382 = vld [vmem:[%s4 + $0x48] sm:$0xff]
    %v383 = vld [vmem:[%s4 + $0x50] sm:$0xf]
    %v384 = vld [vmem:[%s4 + $0x54] sm:$0xff]
    %v385 = vld [vmem:[%s4 + $0x5c] sm:$0xff]
    %v386 = vld [vmem:[%s4 + $0x64] sm:$0xff]
    %v387 = vld [vmem:[%s4 + $0x6c] sm:$0xf]
    %v388 = vld [vmem:[%s5] sm:$0xf]
    %v389 = vld [vmem:[%s5 + $0x4] sm:$0xf]
    %v390 = vld [vmem:[%s5 + $0x8] sm:$0xf]
    %v391 = vld [vmem:[%s5 + $0xc] sm:$0xf]
    %v392 = vld [vmem:[%s5 + $0x10] sm:$0xf]
    %v393 = vld [vmem:[%s5 + $0x14] sm:$0xf]
    %v394 = vld [vmem:[%s5 + $0x18] sm:$0xf]
    %v395 = vld [vmem:[%s5 + $0x1c] sm:$0xf]
    %v396 = vld [vmem:[%s5 + $0x20] sm:$0xf]
    %v397 = vld [vmem:[%s5 + $0x24] sm:$0xf]
    %v398 = vld [vmem:[%s5 + $0x28] sm:$0xf]
    %v399 = vld [vmem:[%s5 + $0x2c] sm:$0xf]
    %v400 = vld [vmem:[%s5 + $0x30] sm:$0xf]
    %v401 = vld [vmem:[%s5 + $0x34] sm:$0xf]
    %v402 = vld [vmem:[%s5 + $0x38] sm:$0xf]
    %v403 = vld [vmem:[%s5 + $0x3c] sm:$0xf]
    %v404 = vld [vmem:[%s5 + $0x40] sm:$0xf]
    %v405 = vld [vmem:[%s5 + $0x44] sm:$0xf]
    %v406 = vld [vmem:[%s5 + $0x48] sm:$0xf]
    %v407 = vld [vmem:[%s5 + $0x4c] sm:$0xf]
    %v408 = vld [vmem:[%s5 + $0x50] sm:$0xf]
    %v409 = vld [vmem:[%s5 + $0x54] sm:$0xf]
    %v410 = vld [vmem:[%s5 + $0x58] sm:$0xf]
    %v411 = vld [vmem:[%s5 + $0x5c] sm:$0xf]
    %v412 = vld [vmem:[%s5 + $0x60] sm:$0xf]
    %v413 = vld [vmem:[%s5 + $0x64] sm:$0xf]
    %v414 = vld [vmem:[%s5 + $0x68] sm:$0xf]
    %v415 = vld [vmem:[%s5 + $0x6c] sm:$0xf]
    %v416 = vld [vmem:[%s5 + $0x70] sm:$0xf]
    %v417 = vld [vmem:[%s5 + $0x74] sm:$0xf]
    %v418 = vld [vmem:[%s5 + $0x78] sm:$0xf]
    %v419 = vld [vmem:[%s5 + $0x7c] sm:$0xf]
    %v420 = vld [vmem:[%s5 + $0x80] sm:$0xf]
    %v421 = vld [vmem:[%s5 + $0x84] sm:$0xf]
    %v422 = vld [vmem:[%s5 + $0x88] sm:$0xf]
    %v423 = vld [vmem:[%s5 + $0x8c] sm:$0xf]
    %v424 = vld [vmem:[%s5 + $0x90] sm:$0xf]
    %v425 = vld [vmem:[%s5 + $0x94] sm:$0xf]
    %v426 = vld [vmem:[%s5 + $0x98] sm:$0xf]
    %v427 = vld [vmem:[%s5 + $0x9c] sm:$0xf]
    %v428 = vld [vmem:[#allocation2] sm:$0xff]
    %v429 = vld [vmem:[#allocation2 + $0x8] sm:$0xff]
    %v430 = vld [vmem:[#allocation2 + $0x10] sm:$0xff]
    %v431 = vld [vmem:[#allocation2 + $0x18] sm:$0xff]
    %v432 = vld [vmem:[#allocation2 + $0x20] sm:$0xff]
    %v433 = vld [vmem:[#allocation2 + $0x28] sm:$0xff]
    %v434 = vpack.c.bf16 %v339, %v338
    %v435 = vpack.c.bf16 %v340, %v340
    %v436 = vlaneseq
    %v437 = vshrl.u32 %v436, 7
    %v438 = vsub.s32 0, %v437
    %v439 = vrot.slane %v428, %v438
    %v440 = vlaneseq
    %v441 = vshrl.u32 %v440, 7
    %v442 = vsub.s32 0, %v441
    %v443 = vrot.slane %v429, %v442
    %v444 = vlaneseq
    %v445 = vshrl.u32 %v444, 7
    %v446 = vsub.s32 0, %v445
    %v447 = vrot.slane %v430, %v446
    %v448 = vlaneseq
    %v449 = vshrl.u32 %v448, 7
    %v450 = vsub.s32 0, %v449
    %v451 = vrot.slane %v431, %v450
    %v452 = vlaneseq
    %v453 = vshrl.u32 %v452, 7
    %v454 = vsub.s32 0, %v453
    %v455 = vrot.slane %v432, %v454
    %v456 = vlaneseq
    %v457 = vshrl.u32 %v456, 7
    %v458 = vsub.s32 0, %v457
    %v459 = vrot.slane %v433, %v458
    %v472 = vunpack.c.l.b16 %v372
    %v473 = vunpack.c.h.b16 %v372
    %v474 = vunpack.c.l.b16 %v373
    %v475 = vunpack.c.h.b16 %v373
    %v476 = vunpack.c.l.b16 %v374
    %v477 = vunpack.c.h.b16 %v374
    %v478 = vunpack.c.l.b16 %v376
    %v479 = vunpack.c.h.b16 %v376
    %v480 = vunpack.c.l.b16 %v377
    %v481 = vunpack.c.h.b16 %v377
    %v482 = vunpack.c.l.b16 %v378
    %v483 = vunpack.c.h.b16 %v378
    %v484 = vunpack.c.l.b16 %v380
    %v485 = vunpack.c.h.b16 %v380
    %v486 = vunpack.c.l.b16 %v381
    %v487 = vunpack.c.h.b16 %v381
    %v488 = vunpack.c.l.b16 %v382
    %v489 = vunpack.c.h.b16 %v382
    %v490 = vunpack.c.l.b16 %v384
    %v491 = vunpack.c.h.b16 %v384
    %v492 = vunpack.c.l.b16 %v385
    %v493 = vunpack.c.h.b16 %v385
    %v494 = vunpack.c.l.b16 %v386
    %v495 = vunpack.c.h.b16 %v386
    %v496 = vpack.c.b16 %v478, %v472
    %v497 = vpack.c.b16 %v479, %v473
    %v498 = vpack.c.b16 %v480, %v474
    %v499 = vpack.c.b16 %v481, %v475
    %v500 = vpack.c.b16 %v482, %v476
    %v501 = vpack.c.b16 %v483, %v477
    %v502 = vpack.c.b16 %v490, %v484
    %v503 = vpack.c.b16 %v491, %v485
    %v504 = vpack.c.b16 %v492, %v486
    %v505 = vpack.c.b16 %v493, %v487
    %v506 = vpack.c.b16 %v494, %v488
    %v507 = vpack.c.b16 %v495, %v489
    %v521 = vsel %vm276, %v434, 0
    %v524 = vsel %vm276, %v435, 0
    %526 = vmatprep.subr.bf16.mxu0 %v497
    %527 = vmatpush1.bf16.msra.mxu0 %v496
    %528 = vmatprep.subr.bf16.mxu0 %v503
    %529 = vmatpush1.bf16.msra.mxu0 %v502
    %530 = vmatprep.subr.bf16.mxu0 0
    %531 = vmatpush1.bf16.msra.mxu0 0
    %532 = vmatprep.subr.bf16.mxu0 0
    %533 = vmatpush1.bf16.msra.mxu0 0
    %534 = vmatprep.subr.bf16.mxu0 0
    %535 = vmatpush1.bf16.msra.mxu0 0
    %536 = vmatprep.subr.bf16.mxu0 0
    %537 = vmatpush1.bf16.msra.mxu0 0
    %538 = vmatprep.subr.bf16.mxu0 0
    %539 = vmatpush1.bf16.msra.mxu0 0
    %540 = vmatprep.subr.bf16.mxu0 0
    %541 = vmatpush1.bf16.msra.mxu0 0
    %542 = vmatprep.subr.bf16.mxu0 0
    %543 = vmatpush1.bf16.msra.mxu0 0
    %544 = vmatprep.subr.bf16.mxu0 0
    %545 = vmatpush1.bf16.msra.mxu0 0
    %546 = vmatprep.subr.bf16.mxu0 0
    %547 = vmatpush1.bf16.msra.mxu0 0
    %548 = vmatprep.subr.bf16.mxu0 0
    %549 = vmatpush1.bf16.msra.mxu0 0
    %550 = vmatprep.subr.bf16.mxu0 0
    %551 = vmatpush1.bf16.msra.mxu0 0
    %552 = vmatprep.subr.bf16.mxu0 0
    %553 = vmatpush1.bf16.msra.mxu0 0
    %554 = vmatprep.subr.bf16.mxu0 0
    %555 = vmatpush1.bf16.msra.mxu0 0
    %556 = vmatprep.subr.bf16.mxu0 0
    %557 = vmatpush1.bf16.msra.mxu0 0
    %558 = vmatprep.mubr.bf16.mxu0 0
    %559 = vmatmul.mubr.bf16.gmra.mrb[0].mxu0 %v521
    %v560 = vpop.f32.mrb[0].mxu0
    %v561 = vadd.f32 %v439, %v560
    %v562 = vpop.f32.mrb[0].mxu0
    %v563 = vadd.f32 %v443, %v562
    %v564 = vpop.f32.mrb[0].mxu0
    %v565 = vadd.f32 %v439, %v564
    %v566 = vpop.f32.mrb[0].mxu0
    %v567 = vadd.f32 %v443, %v566
    %568 = vmatprep.mubr.bf16.mxu0 0
    %569 = vmatmul.mubr.bf16.gmra.mrb[0].mxu0 %v524
    %v570 = vpop.f32.mrb[0].mxu0
    %v571 = vadd.f32 %v439, %v570
    %v572 = vpop.f32.mrb[0].mxu0
    %v573 = vadd.f32 %v443, %v572
    %v574 = vpop.f32.mrb[0].mxu0
    %v575 = vpop.f32.mrb[0].mxu0
    %576 = vdwg.mxu0
    %577 = vmatprep.subr.bf16.mxu0 %v499
    %578 = vmatpush1.bf16.msra.mxu0 %v498
    %579 = vmatprep.subr.bf16.mxu0 %v505
    %580 = vmatpush1.bf16.msra.mxu0 %v504
    %581 = vmatprep.subr.bf16.mxu0 0
    %582 = vmatpush1.bf16.msra.mxu0 0
    %583 = vmatprep.subr.bf16.mxu0 0
    %584 = vmatpush1.bf16.msra.mxu0 0
    %585 = vmatprep.subr.bf16.mxu0 0
    %586 = vmatpush1.bf16.msra.mxu0 0
    %587 = vmatprep.subr.bf16.mxu0 0
    %588 = vmatpush1.bf16.msra.mxu0 0
    %589 = vmatprep.subr.bf16.mxu0 0
    %590 = vmatpush1.bf16.msra.mxu0 0
    %591 = vmatprep.subr.bf16.mxu0 0
    %592 = vmatpush1.bf16.msra.mxu0 0
    %593 = vmatprep.subr.bf16.mxu0 0
    %594 = vmatpush1.bf16.msra.mxu0 0
    %595 = vmatprep.subr.bf16.mxu0 0
    %596 = vmatpush1.bf16.msra.mxu0 0
    %597 = vmatprep.subr.bf16.mxu0 0
    %598 = vmatpush1.bf16.msra.mxu0 0
    %599 = vmatprep.subr.bf16.mxu0 0
    %600 = vmatpush1.bf16.msra.mxu0 0
    %601 = vmatprep.subr.bf16.mxu0 0
    %602 = vmatpush1.bf16.msra.mxu0 0
    %603 = vmatprep.subr.bf16.mxu0 0
    %604 = vmatpush1.bf16.msra.mxu0 0
    %605 = vmatprep.subr.bf16.mxu0 0
    %606 = vmatpush1.bf16.msra.mxu0 0
    %607 = vmatprep.subr.bf16.mxu0 0
    %608 = vmatpush1.bf16.msra.mxu0 0
    %609 = vmatprep.mubr.bf16.mxu0 0
    %610 = vmatmul.mubr.bf16.gmra.mrb[0].mxu0 %v521
    %v611 = vpop.f32.mrb[0].mxu0
    %v612 = vadd.f32 %v447, %v611
    %v613 = vpop.f32.mrb[0].mxu0
    %v614 = vadd.f32 %v451, %v613
    %v615 = vpop.f32.mrb[0].mxu0
    %v616 = vadd.f32 %v447, %v615
    %v617 = vpop.f32.mrb[0].mxu0
    %v618 = vadd.f32 %v451, %v617
    %619 = vmatprep.mubr.bf16.mxu0 0
    %620 = vmatmul.mubr.bf16.gmra.mrb[0].mxu0 %v524
    %v621 = vpop.f32.mrb[0].mxu0
    %v622 = vadd.f32 %v447, %v621
    %v623 = vpop.f32.mrb[0].mxu0
    %v624 = vadd.f32 %v451, %v623
    %v625 = vpop.f32.mrb[0].mxu0
    %v626 = vpop.f32.mrb[0].mxu0
    %627 = vdwg.mxu0
    %628 = vmatprep.subr.bf16.mxu0 %v501
    %629 = vmatpush1.bf16.msra.mxu0 %v500
    %630 = vmatprep.subr.bf16.mxu0 %v507
    %631 = vmatpush1.bf16.msra.mxu0 %v506
    %632 = vmatprep.subr.bf16.mxu0 0
    %633 = vmatpush1.bf16.msra.mxu0 0
    %634 = vmatprep.subr.bf16.mxu0 0
    %635 = vmatpush1.bf16.msra.mxu0 0
    %636 = vmatprep.subr.bf16.mxu0 0
    %637 = vmatpush1.bf16.msra.mxu0 0
    %638 = vmatprep.subr.bf16.mxu0 0
    %639 = vmatpush1.bf16.msra.mxu0 0
    %640 = vmatprep.subr.bf16.mxu0 0
    %641 = vmatpush1.bf16.msra.mxu0 0
    %642 = vmatprep.subr.bf16.mxu0 0
    %643 = vmatpush1.bf16.msra.mxu0 0
    %644 = vmatprep.subr.bf16.mxu0 0
    %645 = vmatpush1.bf16.msra.mxu0 0
    %646 = vmatprep.subr.bf16.mxu0 0
    %647 = vmatpush1.bf16.msra.mxu0 0
    %648 = vmatprep.subr.bf16.mxu0 0
    %649 = vmatpush1.bf16.msra.mxu0 0
    %650 = vmatprep.subr.bf16.mxu0 0
    %651 = vmatpush1.bf16.msra.mxu0 0
    %652 = vmatprep.subr.bf16.mxu0 0
    %653 = vmatpush1.bf16.msra.mxu0 0
    %654 = vmatprep.subr.bf16.mxu0 0
    %655 = vmatpush1.bf16.msra.mxu0 0
    %656 = vmatprep.subr.bf16.mxu0 0
    %657 = vmatpush1.bf16.msra.mxu0 0
    %658 = vmatprep.subr.bf16.mxu0 0
    %659 = vmatpush1.bf16.msra.mxu0 0
    %660 = vmatprep.mubr.bf16.mxu0 0
    %661 = vmatmul.mubr.bf16.gmra.mrb[0].mxu0 %v521
    %v662 = vpop.f32.mrb[0].mxu0
    %v663 = vadd.f32 %v455, %v662
    %v664 = vpop.f32.mrb[0].mxu0
    %v665 = vadd.f32 %v459, %v664
    %v666 = vpop.f32.mrb[0].mxu0
    %v667 = vadd.f32 %v455, %v666
    %v668 = vpop.f32.mrb[0].mxu0
    %v669 = vadd.f32 %v459, %v668
    %670 = vmatprep.mubr.bf16.mxu0 0
    %671 = vmatmul.mubr.bf16.gmra.mrb[0].mxu0 %v524
    %v672 = vpop.f32.mrb[0].mxu0
    %v673 = vadd.f32 %v455, %v672
    %v674 = vpop.f32.mrb[0].mxu0
    %v675 = vadd.f32 %v459, %v674
    %v676 = vpop.f32.mrb[0].mxu0
    %v677 = vpop.f32.mrb[0].mxu0
    %678 = vdwg.mxu0
    %v679 = vpack.c.bf16 %v565, %v561
    %v680 = vpack.c.bf16 %v567, %v563
    %v681 = vpack.c.bf16 %v616, %v612
    %v682 = vpack.c.bf16 %v618, %v614
    %v683 = vpack.c.bf16 %v667, %v663
    %v684 = vpack.c.bf16 %v669, %v665
    %v685 = vpack.c.bf16 %v571, %v571
    %v686 = vpack.c.bf16 %v573, %v573
    %v687 = vpack.c.bf16 %v622, %v622
    %v688 = vpack.c.bf16 %v624, %v624
    %v689 = vpack.c.bf16 %v673, %v673
    %v690 = vpack.c.bf16 %v675, %v675
    %691 = vmatprep.subr.bf16.mxu0 0
    %692 = vmatpush1.bf16.xpose.msra.mxu0 %v680
    %693 = vmatprep.subr.bf16.mxu0 0
    %694 = vmatpush1.bf16.xpose.msra.mxu0 %v686
    %695 = vmatprep.subr.bf16.mxu0 0
    %696 = vmatpush1.bf16.xpose.msra.mxu0 0
    %697 = vmatprep.subr.bf16.mxu0 0
    %698 = vmatpush1.bf16.xpose.msra.mxu0 0
    %699 = vmatprep.subr.bf16.mxu0 0
    %700 = vmatpush1.bf16.xpose.msra.mxu0 0
    %701 = vmatprep.subr.bf16.mxu0 0
    %702 = vmatpush1.bf16.xpose.msra.mxu0 0
    %703 = vmatprep.subr.bf16.mxu0 0
    %704 = vmatpush1.bf16.xpose.msra.mxu0 0
    %705 = vmatprep.subr.bf16.mxu0 0
    %706 = vmatpush1.bf16.xpose.msra.mxu0 0
    %707 = vmatprep.subr.bf16.mxu0 0
    %708 = vmatpush1.bf16.xpose.msra.mxu0 0
    %709 = vmatprep.subr.bf16.mxu0 0
    %710 = vmatpush1.bf16.xpose.msra.mxu0 0
    %711 = vmatprep.subr.bf16.mxu0 0
    %712 = vmatpush1.bf16.xpose.msra.mxu0 0
    %713 = vmatprep.subr.bf16.mxu0 0
    %714 = vmatpush1.bf16.xpose.msra.mxu0 0
    %715 = vmatprep.subr.bf16.mxu0 0
    %716 = vmatpush1.bf16.xpose.msra.mxu0 0
    %717 = vmatprep.subr.bf16.mxu0 0
    %718 = vmatpush1.bf16.xpose.msra.mxu0 0
    %719 = vmatprep.subr.bf16.mxu0 0
    %720 = vmatpush1.bf16.xpose.msra.mxu0 0
    %721 = vmatprep.subr.bf16.mxu0 0
    %722 = vmatpush1.bf16.xpose.msra.mxu0 0
    %723 = vmatprep.mubr.bf16.mxu0 0
    %724 = vmatmul.mubr.bf16.gmra.mrb[0].mxu0 %v679
    %v725 = vpop.f32.mrb[0].mxu0
    %v726 = vadd.f32 0.0, %v725
    %v727 = vpop.f32.mrb[0].mxu0
    %v728 = vpop.f32.mrb[0].mxu0
    %v729 = vadd.f32 0.0, %v728
    %v730 = vpop.f32.mrb[0].mxu0
    %731 = vmatprep.mubr.bf16.mxu0 0
    %732 = vmatmul.mubr.bf16.gmra.mrb[0].mxu0 %v685
    %v733 = vpop.f32.mrb[0].mxu0
    %v734 = vadd.f32 0.0, %v733
    %v735 = vpop.f32.mrb[0].mxu0
    %v736 = vpop.f32.mrb[0].mxu0
    %v737 = vpop.f32.mrb[0].mxu0
    %738 = vdwg.mxu0
    %v739 = vmul.f32 %v726, 0.25
    %v740 = vmul.f32 %v729, 0.25
    %v741 = vmul.f32 %v734, 0.25
    %v742 = vadd.f32 %v739, %v369
    %v743 = vadd.f32 %v740, %v370
    %v744 = vadd.f32 %v741, %v371
    %vm745 = vcmask 146432
    %v746 = vsel %vm745, %v742, -inf
    %747 = vmax.xlane.f32.xlu0 %v746
    %v748 = vpop.xlane.xlu0 %747
    %v749 = vsel %vm745, %v743, -inf
    %750 = vmax.xlane.f32.xlu0 %v749
    %v751 = vpop.xlane.xlu0 %750
    %vm752 = vcmask 140288
    %v753 = vsel %vm752, %v744, -inf
    %754 = vmax.xlane.f32.xlu0 %v753
    %v755 = vpop.xlane.xlu0 %754
    %v756 = vsub.f32 %v742, %v748
    %v757 = vsub.f32 %v743, %v751
    %v758 = vsub.f32 %v744, %v755
    %v759 = vmul.f32 %v756, 1.442695
    %v760 = vpow.pop %v759
    %v761 = vmul.f32 %v757, 1.442695
    %v762 = vpow.pop %v761
    %v763 = vmul.f32 %v758, 1.442695
    %v764 = vpow.pop %v763
    %v765 = vsel %vm745, %v760, 0.0
    %766 = vadd.xlane.f32.xlu0 %v765
    %v767 = vpop.xlane.xlu0 %766
    %v768 = vsel %vm745, %v762, 0.0
    %769 = vadd.xlane.f32.xlu0 %v768
    %v770 = vpop.xlane.xlu0 %769
    %v771 = vsel %vm752, %v764, 0.0
    %772 = vadd.xlane.f32.xlu0 %v771
    %v773 = vpop.xlane.xlu0 %772
    %v774 = vrcp.pop %v767
    %v775 = vrcp.pop %v770
    %v776 = vrcp.pop %v773
    %v777 = vmul.f32 %v760, %v774
    %v778 = vmul.f32 %v762, %v775
    %v779 = vmul.f32 %v764, %v776
    %v780 = vpack.c.bf16 %v778, %v777
    %v781 = vpack.c.bf16 %v779, %v779
    %v783 = vsel %vm745, %v780, 0
    %v786 = vsel %vm745, %v781, 0
    %vm788 = vcmask 1040384
    %v790 = vsel %vm788, %v687, 0
    %792 = vmatprep.subr.bf16.mxu0 0
    %793 = vmatpush1.bf16.msra.mxu0 %v681
    %794 = vmatprep.subr.bf16.mxu0 0
    %795 = vmatpush1.bf16.msra.mxu0 %v790
    %796 = vmatprep.subr.bf16.mxu0 0
    %797 = vmatpush1.bf16.msra.mxu0 0
    %798 = vmatprep.subr.bf16.mxu0 0
    %799 = vmatpush1.bf16.msra.mxu0 0
    %800 = vmatprep.subr.bf16.mxu0 0
    %801 = vmatpush1.bf16.msra.mxu0 0
    %802 = vmatprep.subr.bf16.mxu0 0
    %803 = vmatpush1.bf16.msra.mxu0 0
    %804 = vmatprep.subr.bf16.mxu0 0
    %805 = vmatpush1.bf16.msra.mxu0 0
    %806 = vmatprep.subr.bf16.mxu0 0
    %807 = vmatpush1.bf16.msra.mxu0 0
    %808 = vmatprep.subr.bf16.mxu0 0
    %809 = vmatpush1.bf16.msra.mxu0 0
    %810 = vmatprep.subr.bf16.mxu0 0
    %811 = vmatpush1.bf16.msra.mxu0 0
    %812 = vmatprep.subr.bf16.mxu0 0
    %813 = vmatpush1.bf16.msra.mxu0 0
    %814 = vmatprep.subr.bf16.mxu0 0
    %815 = vmatpush1.bf16.msra.mxu0 0
    %816 = vmatprep.subr.bf16.mxu0 0
    %817 = vmatpush1.bf16.msra.mxu0 0
    %818 = vmatprep.subr.bf16.mxu0 0
    %819 = vmatpush1.bf16.msra.mxu0 0
    %820 = vmatprep.subr.bf16.mxu0 0
    %821 = vmatpush1.bf16.msra.mxu0 0
    %822 = vmatprep.subr.bf16.mxu0 0
    %823 = vmatpush1.bf16.msra.mxu0 0
    %824 = vmatprep.mubr.bf16.mxu0 0
    %825 = vmatmul.mubr.bf16.gmra.mrb[0].mxu0 %v783
    %v826 = vpop.f32.mrb[0].mxu0
    %v827 = vadd.f32 0.0, %v826
    %v828 = vpop.f32.mrb[0].mxu0
    %v829 = vpop.f32.mrb[0].mxu0
    %v830 = vadd.f32 0.0, %v829
    %v831 = vpop.f32.mrb[0].mxu0
    %832 = vmatprep.mubr.bf16.mxu0 0
    %833 = vmatmul.mubr.bf16.gmra.mrb[0].mxu0 %v786
    %v834 = vpop.f32.mrb[0].mxu0
    %v835 = vadd.f32 0.0, %v834
    %v836 = vpop.f32.mrb[0].mxu0
    %v837 = vpop.f32.mrb[0].mxu0
    %v838 = vpop.f32.mrb[0].mxu0
    %839 = vdwg.mxu0
    %v840 = vpack.c.bf16 %v830, %v827
    %v841 = vpack.c.bf16 %v835, %v835
    %842 = vmatprep.subr.bf16.mxu0 0
    %843 = vmatpush1.bf16.xpose.msra.mxu0 %v683
    %844 = vmatprep.subr.bf16.mxu0 0
    %845 = vmatpush1.bf16.xpose.msra.mxu0 %v689
    %846 = vmatprep.subr.bf16.mxu0 0
    %847 = vmatpush1.bf16.xpose.msra.mxu0 0
    %848 = vmatprep.subr.bf16.mxu0 0
    %849 = vmatpush1.bf16.xpose.msra.mxu0 0
    %850 = vmatprep.subr.bf16.mxu0 0
    %851 = vmatpush1.bf16.xpose.msra.mxu0 0
    %852 = vmatprep.subr.bf16.mxu0 0
    %853 = vmatpush1.bf16.xpose.msra.mxu0 0
    %854 = vmatprep.subr.bf16.mxu0 0
    %855 = vmatpush1.bf16.xpose.msra.mxu0 0
    %856 = vmatprep.subr.bf16.mxu0 0
    %857 = vmatpush1.bf16.xpose.msra.mxu0 0
    %858 = vmatprep.subr.bf16.mxu0 0
    %859 = vmatpush1.bf16.xpose.msra.mxu0 0
    %860 = vmatprep.subr.bf16.mxu0 0
    %861 = vmatpush1.bf16.xpose.msra.mxu0 0
    %862 = vmatprep.subr.bf16.mxu0 0
    %863 = vmatpush1.bf16.xpose.msra.mxu0 0
    %864 = vmatprep.subr.bf16.mxu0 0
    %865 = vmatpush1.bf16.xpose.msra.mxu0 0
    %866 = vmatprep.subr.bf16.mxu0 0
    %867 = vmatpush1.bf16.xpose.msra.mxu0 0
    %868 = vmatprep.subr.bf16.mxu0 0
    %869 = vmatpush1.bf16.xpose.msra.mxu0 0
    %870 = vmatprep.subr.bf16.mxu0 0
    %871 = vmatpush1.bf16.xpose.msra.mxu0 0
    %872 = vmatprep.subr.bf16.mxu0 0
    %873 = vmatpush1.bf16.xpose.msra.mxu0 0
    %874 = vmatprep.mubr.bf16.mxu0 0
    %875 = vmatmul.mubr.bf16.gmra.mrb[0].mxu0 %v682
    %v876 = vpop.f32.mrb[0].mxu0
    %v877 = vadd.f32 0.0, %v876
    %v878 = vpop.f32.mrb[0].mxu0
    %v879 = vpop.f32.mrb[0].mxu0
    %v880 = vadd.f32 0.0, %v879
    %v881 = vpop.f32.mrb[0].mxu0
    %882 = vmatprep.mubr.bf16.mxu0 0
    %883 = vmatmul.mubr.bf16.gmra.mrb[0].mxu0 %v688
    %v884 = vpop.f32.mrb[0].mxu0
    %v885 = vadd.f32 0.0, %v884
    %v886 = vpop.f32.mrb[0].mxu0
    %v887 = vpop.f32.mrb[0].mxu0
    %v888 = vpop.f32.mrb[0].mxu0
    %889 = vdwg.mxu0
    %v890 = vmul.f32 %v877, 0.25
    %v891 = vmul.f32 %v880, 0.25
    %v892 = vmul.f32 %v885, 0.25
    %v893 = vadd.f32 %v890, %v369
    %v894 = vadd.f32 %v891, %v370
    %v895 = vadd.f32 %v892, %v371
    %v896 = vsel %vm745, %v893, -inf
    %897 = vmax.xlane.f32.xlu0 %v896
    %v898 = vpop.xlane.xlu0 %897
    %v899 = vsel %vm745, %v894, -inf
    %900 = vmax.xlane.f32.xlu0 %v899
    %v901 = vpop.xlane.xlu0 %900
    %v902 = vsel %vm752, %v895, -inf
    %903 = vmax.xlane.f32.xlu0 %v902
    %v904 = vpop.xlane.xlu0 %903
    %v905 = vsub.f32 %v893, %v898
    %v906 = vsub.f32 %v894, %v901
    %v907 = vsub.f32 %v895, %v904
    %v908 = vmul.f32 %v905, 1.442695
    %v909 = vpow.pop %v908
    %v910 = vmul.f32 %v906, 1.442695
    %v911 = vpow.pop %v910
    %v912 = vmul.f32 %v907, 1.442695
    %v913 = vpow.pop %v912
    %v914 = vsel %vm745, %v909, 0.0
    %915 = vadd.xlane.f32.xlu0 %v914
    %v916 = vpop.xlane.xlu0 %915
    %v917 = vsel %vm745, %v911, 0.0
    %918 = vadd.xlane.f32.xlu0 %v917
    %v919 = vpop.xlane.xlu0 %918
    %v920 = vsel %vm752, %v913, 0.0
    %921 = vadd.xlane.f32.xlu0 %v920
    %v922 = vpop.xlane.xlu0 %921
    %v923 = vrcp.pop %v916
    %v924 = vrcp.pop %v919
    %v925 = vrcp.pop %v922
    %v926 = vmul.f32 %v909, %v923
    %v927 = vmul.f32 %v911, %v924
    %v928 = vmul.f32 %v913, %v925
    %v929 = vpack.c.bf16 %v927, %v926
    %v930 = vpack.c.bf16 %v928, %v928
    %v932 = vsel %vm745, %v929, 0
    %v935 = vsel %vm745, %v930, 0
    %v938 = vsel %vm788, %v690, 0
    %940 = vmatprep.subr.bf16.mxu0 0
    %941 = vmatpush1.bf16.msra.mxu0 %v684
    %942 = vmatprep.subr.bf16.mxu0 0
    %943 = vmatpush1.bf16.msra.mxu0 %v938
    %944 = vmatprep.subr.bf16.mxu0 0
    %945 = vmatpush1.bf16.msra.mxu0 0
    %946 = vmatprep.subr.bf16.mxu0 0
    %947 = vmatpush1.bf16.msra.mxu0 0
    %948 = vmatprep.subr.bf16.mxu0 0
    %949 = vmatpush1.bf16.msra.mxu0 0
    %950 = vmatprep.subr.bf16.mxu0 0
    %951 = vmatpush1.bf16.msra.mxu0 0
    %952 = vmatprep.subr.bf16.mxu0 0
    %953 = vmatpush1.bf16.msra.mxu0 0
    %954 = vmatprep.subr.bf16.mxu0 0
    %955 = vmatpush1.bf16.msra.mxu0 0
    %956 = vmatprep.subr.bf16.mxu0 0
    %957 = vmatpush1.bf16.msra.mxu0 0
    %958 = vmatprep.subr.bf16.mxu0 0
    %959 = vmatpush1.bf16.msra.mxu0 0
    %960 = vmatprep.subr.bf16.mxu0 0
    %961 = vmatpush1.bf16.msra.mxu0 0
    %962 = vmatprep.subr.bf16.mxu0 0
    %963 = vmatpush1.bf16.msra.mxu0 0
    %964 = vmatprep.subr.bf16.mxu0 0
    %965 = vmatpush1.bf16.msra.mxu0 0
    %966 = vmatprep.subr.bf16.mxu0 0
    %967 = vmatpush1.bf16.msra.mxu0 0
    %968 = vmatprep.subr.bf16.mxu0 0
    %969 = vmatpush1.bf16.msra.mxu0 0
    %970 = vmatprep.subr.bf16.mxu0 0
    %971 = vmatpush1.bf16.msra.mxu0 0
    %972 = vmatprep.mubr.bf16.mxu0 0
    %973 = vmatmul.mubr.bf16.gmra.mrb[0].mxu0 %v932
    %v974 = vpop.f32.mrb[0].mxu0
    %v975 = vadd.f32 0.0, %v974
    %v976 = vpop.f32.mrb[0].mxu0
    %v977 = vpop.f32.mrb[0].mxu0
    %v978 = vadd.f32 0.0, %v977
    %v979 = vpop.f32.mrb[0].mxu0
    %980 = vmatprep.mubr.bf16.mxu0 0
    %981 = vmatmul.mubr.bf16.gmra.mrb[0].mxu0 %v935
    %v982 = vpop.f32.mrb[0].mxu0
    %v983 = vadd.f32 0.0, %v982
    %v984 = vpop.f32.mrb[0].mxu0
    %v985 = vpop.f32.mrb[0].mxu0
    %v986 = vpop.f32.mrb[0].mxu0
    %987 = vdwg.mxu0
    %v988 = vpack.c.bf16 %v978, %v975
    %v989 = vpack.c.bf16 %v983, %v983
    %v1006 = vunpack.c.l.b16 %v404
    %v1007 = vunpack.c.l.b16 %v405
    %v1008 = vunpack.c.l.b16 %v406
    %v1009 = vunpack.c.l.b16 %v407
    %v1010 = vunpack.c.l.b16 %v408
    %v1011 = vunpack.c.l.b16 %v409
    %v1012 = vunpack.c.l.b16 %v410
    %v1013 = vunpack.c.l.b16 %v411
    %v1014 = vunpack.c.l.b16 %v412
    %v1015 = vunpack.c.l.b16 %v413
    %v1016 = vunpack.c.l.b16 %v414
    %v1017 = vunpack.c.l.b16 %v415
    %v1018 = vunpack.c.l.b16 %v416
    %v1019 = vunpack.c.l.b16 %v417
    %v1020 = vunpack.c.l.b16 %v418
    %v1021 = vunpack.c.l.b16 %v419
    %v1022 = vpack.c.b16 %v1007, %v1006
    %v1023 = vpack.c.b16 %v1009, %v1008
    %v1024 = vpack.c.b16 %v1011, %v1010
    %v1025 = vpack.c.b16 %v1013, %v1012
    %v1026 = vpack.c.b16 %v1015, %v1014
    %v1027 = vpack.c.b16 %v1017, %v1016
    %v1028 = vpack.c.b16 %v1019, %v1018
    %v1029 = vpack.c.b16 %v1021, %v1020
    %1038 = vmatprep.subr.bf16.mxu0 0
    %1039 = vmatpush1.bf16.msra.mxu0 %v1022
    %1040 = vmatprep.subr.bf16.mxu0 0
    %1041 = vmatpush1.bf16.msra.mxu0 %v1023
    %1042 = vmatprep.subr.bf16.mxu0 0
    %1043 = vmatpush1.bf16.msra.mxu0 %v1024
    %1044 = vmatprep.subr.bf16.mxu0 0
    %1045 = vmatpush1.bf16.msra.mxu0 %v1025
    %1046 = vmatprep.subr.bf16.mxu0 0
    %1047 = vmatpush1.bf16.msra.mxu0 %v1026
    %1048 = vmatprep.subr.bf16.mxu0 0
    %1049 = vmatpush1.bf16.msra.mxu0 %v1027
    %1050 = vmatprep.subr.bf16.mxu0 0
    %1051 = vmatpush1.bf16.msra.mxu0 %v1028
    %1052 = vmatprep.subr.bf16.mxu0 0
    %1053 = vmatpush1.bf16.msra.mxu0 %v1029
    %1054 = vmatprep.subr.bf16.mxu0 0
    %1055 = vmatpush1.bf16.msra.mxu0 0
    %1056 = vmatprep.subr.bf16.mxu0 0
    %1057 = vmatpush1.bf16.msra.mxu0 0
    %1058 = vmatprep.subr.bf16.mxu0 0
    %1059 = vmatpush1.bf16.msra.mxu0 0
    %1060 = vmatprep.subr.bf16.mxu0 0
    %1061 = vmatpush1.bf16.msra.mxu0 0
    %1062 = vmatprep.subr.bf16.mxu0 0
    %1063 = vmatpush1.bf16.msra.mxu0 0
    %1064 = vmatprep.subr.bf16.mxu0 0
    %1065 = vmatpush1.bf16.msra.mxu0 0
    %1066 = vmatprep.subr.bf16.mxu0 0
    %1067 = vmatpush1.bf16.msra.mxu0 0
    %1068 = vmatprep.subr.bf16.mxu0 0
    %1069 = vmatpush1.bf16.msra.mxu0 0
    %1070 = vmatprep.mubr.bf16.mxu0 0
    %1071 = vmatmul.mubr.bf16.gmra.mrb[0].mxu0 %v988
    %v1072 = vpop.f32.mrb[0].mxu0
    %v1073 = vadd.f32 0.0, %v1072
    %v1074 = vpop.f32.mrb[0].mxu0
    %v1075 = vpop.f32.mrb[0].mxu0
    %v1076 = vadd.f32 0.0, %v1075
    %v1077 = vpop.f32.mrb[0].mxu0
    %1078 = vmatprep.mubr.bf16.mxu0 0
    %1079 = vmatmul.mubr.bf16.gmra.mrb[0].mxu0 %v989
    %v1080 = vpop.f32.mrb[0].mxu0
    %v1081 = vadd.f32 0.0, %v1080
    %v1082 = vpop.f32.mrb[0].mxu0
    %v1083 = vpop.f32.mrb[0].mxu0
    %v1084 = vpop.f32.mrb[0].mxu0
    %1085 = vdwg.mxu0
    %v1102 = vunpack.c.l.b16 %v388
    %v1103 = vunpack.c.l.b16 %v389
    %v1104 = vunpack.c.l.b16 %v390
    %v1105 = vunpack.c.l.b16 %v391
    %v1106 = vunpack.c.l.b16 %v392
    %v1107 = vunpack.c.l.b16 %v393
    %v1108 = vunpack.c.l.b16 %v394
    %v1109 = vunpack.c.l.b16 %v395
    %v1110 = vunpack.c.l.b16 %v396
    %v1111 = vunpack.c.l.b16 %v397
    %v1112 = vunpack.c.l.b16 %v398
    %v1113 = vunpack.c.l.b16 %v399
    %v1114 = vunpack.c.l.b16 %v400
    %v1115 = vunpack.c.l.b16 %v401
    %v1116 = vunpack.c.l.b16 %v402
    %v1117 = vunpack.c.l.b16 %v403
    %v1118 = vpack.c.b16 %v1103, %v1102
    %v1119 = vpack.c.b16 %v1105, %v1104
    %v1120 = vpack.c.b16 %v1107, %v1106
    %v1121 = vpack.c.b16 %v1109, %v1108
    %v1122 = vpack.c.b16 %v1111, %v1110
    %v1123 = vpack.c.b16 %v1113, %v1112
    %v1124 = vpack.c.b16 %v1115, %v1114
    %v1125 = vpack.c.b16 %v1117, %v1116
    %1134 = vmatprep.subr.bf16.mxu0 0
    %1135 = vmatpush1.bf16.msra.mxu0 %v1118
    %1136 = vmatprep.subr.bf16.mxu0 0
    %1137 = vmatpush1.bf16.msra.mxu0 %v1119
    %1138 = vmatprep.subr.bf16.mxu0 0
    %1139 = vmatpush1.bf16.msra.mxu0 %v1120
    %1140 = vmatprep.subr.bf16.mxu0 0
    %1141 = vmatpush1.bf16.msra.mxu0 %v1121
    %1142 = vmatprep.subr.bf16.mxu0 0
    %1143 = vmatpush1.bf16.msra.mxu0 %v1122
    %1144 = vmatprep.subr.bf16.mxu0 0
    %1145 = vmatpush1.bf16.msra.mxu0 %v1123
    %1146 = vmatprep.subr.bf16.mxu0 0
    %1147 = vmatpush1.bf16.msra.mxu0 %v1124
    %1148 = vmatprep.subr.bf16.mxu0 0
    %1149 = vmatpush1.bf16.msra.mxu0 %v1125
    %1150 = vmatprep.subr.bf16.mxu0 0
    %1151 = vmatpush1.bf16.msra.mxu0 0
    %1152 = vmatprep.subr.bf16.mxu0 0
    %1153 = vmatpush1.bf16.msra.mxu0 0
    %1154 = vmatprep.subr.bf16.mxu0 0
    %1155 = vmatpush1.bf16.msra.mxu0 0
    %1156 = vmatprep.subr.bf16.mxu0 0
    %1157 = vmatpush1.bf16.msra.mxu0 0
    %1158 = vmatprep.subr.bf16.mxu0 0
    %1159 = vmatpush1.bf16.msra.mxu0 0
    %1160 = vmatprep.subr.bf16.mxu0 0
    %1161 = vmatpush1.bf16.msra.mxu0 0
    %1162 = vmatprep.subr.bf16.mxu0 0
    %1163 = vmatpush1.bf16.msra.mxu0 0
    %1164 = vmatprep.subr.bf16.mxu0 0
    %1165 = vmatpush1.bf16.msra.mxu0 0
    %1166 = vmatprep.mubr.bf16.mxu0 0
    %1167 = vmatmul.mubr.bf16.gmra.mrb[0].mxu0 %v840
    %v1168 = vpop.f32.mrb[0].mxu0
    %v1169 = vadd.f32 %v1073, %v1168
    %v1170 = vpop.f32.mrb[0].mxu0
    %v1171 = vpop.f32.mrb[0].mxu0
    %v1172 = vadd.f32 %v1076, %v1171
    %v1173 = vpop.f32.mrb[0].mxu0
    %1174 = vmatprep.mubr.bf16.mxu0 0
    %1175 = vmatmul.mubr.bf16.gmra.mrb[0].mxu0 %v841
    %v1176 = vpop.f32.mrb[0].mxu0
    %v1177 = vadd.f32 %v1081, %v1176
    %v1178 = vpop.f32.mrb[0].mxu0
    %v1179 = vpop.f32.mrb[0].mxu0
    %v1180 = vpop.f32.mrb[0].mxu0
    %1181 = vdwg.mxu0
    %v1182 = vlaneseq
    %v1183 = vshrl.u32 %v1182, 7
    %v1184 = vsub.s32 1, %v1183
    %v1185 = vrot.slane %v428, %v1184
    %v1186 = vadd.f32 %v1169, %v1185
    %v1187 = vadd.f32 %v1172, %v1185
    %v1188 = vadd.f32 %v1177, %v1185
    %v1189 = vadd.f32 %v1186, %v338
    %v1190 = vadd.f32 %v1187, %v339
    %v1191 = vadd.f32 %v1188, %v340
    %v1192 = vsel %vm276, %v1189, 0.0
    %1193 = vadd.xlane.f32.xlu0 %v1192
    %v1194 = vpop.xlane.xlu0 %1193
    %v1195 = vsel %vm276, %v1190, 0.0
    %1196 = vadd.xlane.f32.xlu0 %v1195
    %v1197 = vpop.xlane.xlu0 %1196
    %v1198 = vsel %vm283, %v1191, 0.0
    %1199 = vadd.xlane.f32.xlu0 %v1198
    %v1200 = vpop.xlane.xlu0 %1199
    %v1201 = vmul.f32 %v1194, %v287
    %v1202 = vmul.f32 %v1197, %v287
    %v1203 = vmul.f32 %v1200, %v287
    %v1204 = vmul.f32 %v1189, %v1189
    %v1205 = vmul.f32 %v1190, %v1190
    %v1206 = vmul.f32 %v1191, %v1191
    %v1207 = vsel %vm276, %v1204, 0.0
    %1208 = vadd.xlane.f32.xlu0 %v1207
    %v1209 = vpop.xlane.xlu0 %1208
    %v1210 = vsel %vm276, %v1205, 0.0
    %1211 = vadd.xlane.f32.xlu0 %v1210
    %v1212 = vpop.xlane.xlu0 %1211
    %v1213 = vsel %vm283, %v1206, 0.0
    %1214 = vadd.xlane.f32.xlu0 %v1213
    %v1215 = vpop.xlane.xlu0 %1214
    %v1216 = vmul.f32 %v1209, %v287
    %v1217 = vmul.f32 %v1212, %v287
    %v1218 = vmul.f32 %v1215, %v287
    %v1219 = vmul.f32 %v1201, %v1201
    %v1220 = vmul.f32 %v1202, %v1202
    %v1221 = vmul.f32 %v1203, %v1203
    %v1222 = vsub.f32 %v1216, %v1219
    %v1223 = vsub.f32 %v1217, %v1220
    %v1224 = vsub.f32 %v1218, %v1221
    %v1225 = vmax.f32 %v1222, 0.0
    %v1226 = vmax.f32 %v1223, 0.0
    %v1227 = vmax.f32 %v1224, 0.0
    %v1228 = vsub.f32 %v1189, %v1201
    %v1229 = vsub.f32 %v1190, %v1202
    %v1230 = vsub.f32 %v1191, %v1203
    %v1231 = vadd.f32 %v1225, 1e-12
    %v1232 = vadd.f32 %v1226, 1e-12
    %v1233 = vadd.f32 %v1227, 1e-12
    %v1234 = vrsqrt.pop %v1231
    %v1235 = vrsqrt.pop %v1232
    %v1236 = vrsqrt.pop %v1233
    %v1237 = vmul.f32 %v1228, %v1234
    %v1238 = vmul.f32 %v1229, %v1235
    %v1239 = vmul.f32 %v1230, %v1236
    %v1240 = vlaneseq
    %v1241 = vshrl.u32 %v1240, 7
    %v1242 = vsub.s32 2, %v1241
    %v1243 = vrot.slane %v428, %v1242
    %v1244 = vmul.f32 %v1237, %v1243
    %v1245 = vmul.f32 %v1238, %v1243
    %v1246 = vmul.f32 %v1239, %v1243
    %v1247 = vlaneseq
    %v1248 = vshrl.u32 %v1247, 7
    %v1249 = vsub.s32 3, %v1248
    %v1250 = vrot.slane %v428, %v1249
    %v1251 = vadd.f32 %v1244, %v1250
    %v1252 = vadd.f32 %v1245, %v1250
    %v1253 = vadd.f32 %v1246, %v1250
    %v1254 = vpack.c.bf16 %v1252, %v1251
    %v1255 = vpack.c.bf16 %v1253, %v1253
    %v1256 = vlaneseq
    %v1257 = vshrl.u32 %v1256, 7
    %v1258 = vsub.s32 4, %v1257
    %v1259 = vrot.slane %v428, %v1258
    %v1264 = vunpack.c.l.b16 %v375
    %v1265 = vunpack.c.l.b16 %v379
    %v1266 = vunpack.c.l.b16 %v383
    %v1267 = vunpack.c.l.b16 %v387
    %v1268 = vpack.c.b16 %v1265, %v1264
    %v1269 = vpack.c.b16 %v1267, %v1266
    %v1273 = vsel %vm276, %v1254, 0
    %v1276 = vsel %vm276, %v1255, 0
    %1278 = vmatprep.subr.bf16.mxu0 0
    %1279 = vmatpush1.bf16.msra.mxu0 %v1268
    %1280 = vmatprep.subr.bf16.mxu0 0
    %1281 = vmatpush1.bf16.msra.mxu0 %v1269
    %1282 = vmatprep.subr.bf16.mxu0 0
    %1283 = vmatpush1.bf16.msra.mxu0 0
    %1284 = vmatprep.subr.bf16.mxu0 0
    %1285 = vmatpush1.bf16.msra.mxu0 0
    %1286 = vmatprep.subr.bf16.mxu0 0
    %1287 = vmatpush1.bf16.msra.mxu0 0
    %1288 = vmatprep.subr.bf16.mxu0 0
    %1289 = vmatpush1.bf16.msra.mxu0 0
    %1290 = vmatprep.subr.bf16.mxu0 0
    %1291 = vmatpush1.bf16.msra.mxu0 0
    %1292 = vmatprep.subr.bf16.mxu0 0
    %1293 = vmatpush1.bf16.msra.mxu0 0
    %1294 = vmatprep.subr.bf16.mxu0 0
    %1295 = vmatpush1.bf16.msra.mxu0 0
    %1296 = vmatprep.subr.bf16.mxu0 0
    %1297 = vmatpush1.bf16.msra.mxu0 0
    %1298 = vmatprep.subr.bf16.mxu0 0
    %1299 = vmatpush1.bf16.msra.mxu0 0
    %1300 = vmatprep.subr.bf16.mxu0 0
    %1301 = vmatpush1.bf16.msra.mxu0 0
    %1302 = vmatprep.subr.bf16.mxu0 0
    %1303 = vmatpush1.bf16.msra.mxu0 0
    %1304 = vmatprep.subr.bf16.mxu0 0
    %1305 = vmatpush1.bf16.msra.mxu0 0
    %1306 = vmatprep.subr.bf16.mxu0 0
    %1307 = vmatpush1.bf16.msra.mxu0 0
    %1308 = vmatprep.subr.bf16.mxu0 0
    %1309 = vmatpush1.bf16.msra.mxu0 0
    %1310 = vmatprep.mubr.bf16.mxu0 0
    %1311 = vmatmul.mubr.bf16.gmra.mrb[0].mxu0 %v1273
    %v1312 = vpop.f32.mrb[0].mxu0
    %v1313 = vadd.f32 %v1259, %v1312
    %v1314 = vpop.f32.mrb[0].mxu0
    %v1315 = vpop.f32.mrb[0].mxu0
    %v1316 = vadd.f32 %v1259, %v1315
    %v1317 = vpop.f32.mrb[0].mxu0
    %1318 = vmatprep.mubr.bf16.mxu0 0
    %1319 = vmatmul.mubr.bf16.gmra.mrb[0].mxu0 %v1276
    %v1320 = vpop.f32.mrb[0].mxu0
    %v1321 = vadd.f32 %v1259, %v1320
    %v1322 = vpop.f32.mrb[0].mxu0
    %v1323 = vpop.f32.mrb[0].mxu0
    %v1324 = vpop.f32.mrb[0].mxu0
    %1325 = vdwg.mxu0
    %v1326 = vmul.f32 %v1313, 0.5
    %v1327 = vmul.f32 %v1316, 0.5
    %v1328 = vmul.f32 %v1321, 0.5
    %v1329 = vmul.f32 %v1313, 0.044715
    %v1330 = vmul.f32 %v1316, 0.044715
    %v1331 = vmul.f32 %v1321, 0.044715
    %v1332 = vmul.f32 %v1329, %v1313
    %v1333 = vmul.f32 %v1330, %v1316
    %v1334 = vmul.f32 %v1331, %v1321
    %v1335 = vmul.f32 %v1332, %v1313
    %v1336 = vmul.f32 %v1333, %v1316
    %v1337 = vmul.f32 %v1334, %v1321
    %v1338 = vadd.f32 %v1313, %v1335
    %v1339 = vadd.f32 %v1316, %v1336
    %v1340 = vadd.f32 %v1321, %v1337
    %v1341 = vmul.f32 %v1338, 0.7978846
    %v1342 = vmul.f32 %v1339, 0.7978846
    %v1343 = vmul.f32 %v1340, 0.7978846
    %v1344 = vtanh.pop %v1341
    %v1345 = vtanh.pop %v1342
    %v1346 = vtanh.pop %v1343
    %v1347 = vadd.f32 %v1344, 1.0
    %v1348 = vadd.f32 %v1345, 1.0
    %v1349 = vadd.f32 %v1346, 1.0
    %v1350 = vmul.f32 %v1326, %v1347
    %v1351 = vmul.f32 %v1327, %v1348
    %v1352 = vmul.f32 %v1328, %v1349
    %v1353 = vpack.c.bf16 %v1351, %v1350
    %v1354 = vpack.c.bf16 %v1352, %v1352
    %v1355 = vlaneseq
    %v1356 = vshrl.u32 %v1355, 7
    %v1357 = vsub.s32 5, %v1356
    %v1358 = vrot.slane %v428, %v1357
    %v1367 = vunpack.c.l.b16 %v420
    %v1368 = vunpack.c.l.b16 %v421
    %v1369 = vunpack.c.l.b16 %v422
    %v1370 = vunpack.c.l.b16 %v423
    %v1371 = vunpack.c.l.b16 %v424
    %v1372 = vunpack.c.l.b16 %v425
    %v1373 = vunpack.c.l.b16 %v426
    %v1374 = vunpack.c.l.b16 %v427
    %v1375 = vpack.c.b16 %v1368, %v1367
    %v1376 = vpack.c.b16 %v1370, %v1369
    %v1377 = vpack.c.b16 %v1372, %v1371
    %v1378 = vpack.c.b16 %v1374, %v1373
    %v1384 = vsel %vm115, %v1353, 0
    %v1387 = vsel %vm115, %v1354, 0
    %1389 = vmatprep.subr.bf16.mxu0 0
    %1390 = vmatpush1.bf16.msra.mxu0 %v1375
    %1391 = vmatprep.subr.bf16.mxu0 0
    %1392 = vmatpush1.bf16.msra.mxu0 %v1376
    %1393 = vmatprep.subr.bf16.mxu0 0
    %1394 = vmatpush1.bf16.msra.mxu0 %v1377
    %1395 = vmatprep.subr.bf16.mxu0 0
    %1396 = vmatpush1.bf16.msra.mxu0 %v1378
    %1397 = vmatprep.subr.bf16.mxu0 0
    %1398 = vmatpush1.bf16.msra.mxu0 0
    %1399 = vmatprep.subr.bf16.mxu0 0
    %1400 = vmatpush1.bf16.msra.mxu0 0
    %1401 = vmatprep.subr.bf16.mxu0 0
    %1402 = vmatpush1.bf16.msra.mxu0 0
    %1403 = vmatprep.subr.bf16.mxu0 0
    %1404 = vmatpush1.bf16.msra.mxu0 0
    %1405 = vmatprep.subr.bf16.mxu0 0
    %1406 = vmatpush1.bf16.msra.mxu0 0
    %1407 = vmatprep.subr.bf16.mxu0 0
    %1408 = vmatpush1.bf16.msra.mxu0 0
    %1409 = vmatprep.subr.bf16.mxu0 0
    %1410 = vmatpush1.bf16.msra.mxu0 0
    %1411 = vmatprep.subr.bf16.mxu0 0
    %1412 = vmatpush1.bf16.msra.mxu0 0
    %1413 = vmatprep.subr.bf16.mxu0 0
    %1414 = vmatpush1.bf16.msra.mxu0 0
    %1415 = vmatprep.subr.bf16.mxu0 0
    %1416 = vmatpush1.bf16.msra.mxu0 0
    %1417 = vmatprep.subr.bf16.mxu0 0
    %1418 = vmatpush1.bf16.msra.mxu0 0
    %1419 = vmatprep.subr.bf16.mxu0 0
    %1420 = vmatpush1.bf16.msra.mxu0 0
    %1421 = vmatprep.mubr.bf16.mxu0 0
    %1422 = vmatmul.mubr.bf16.gmra.mrb[0].mxu0 %v1384
    %v1423 = vpop.f32.mrb[0].mxu0
    %v1424 = vadd.f32 %v1358, %v1423
    %v1425 = vpop.f32.mrb[0].mxu0
    %v1426 = vpop.f32.mrb[0].mxu0
    %v1427 = vadd.f32 %v1358, %v1426
    %v1428 = vpop.f32.mrb[0].mxu0
    %1429 = vmatprep.mubr.bf16.mxu0 0
    %1430 = vmatmul.mubr.bf16.gmra.mrb[0].mxu0 %v1387
    %v1431 = vpop.f32.mrb[0].mxu0
    %v1432 = vadd.f32 %v1358, %v1431
    %v1433 = vpop.f32.mrb[0].mxu0
    %v1434 = vpop.f32.mrb[0].mxu0
    %v1435 = vpop.f32.mrb[0].mxu0
    %1436 = vdwg.mxu0
    %v1437 = vadd.f32 %v1424, %v1251
    %v1438 = vadd.f32 %v1427, %v1252
    %v1439 = vadd.f32 %v1432, %v1253
    %v1440 = vsel %vm276, %v1437, 0.0
    %1441 = vadd.xlane.f32.xlu0 %v1440
    %v1442 = vpop.xlane.xlu0 %1441
    %v1443 = vsel %vm276, %v1438, 0.0
    %1444 = vadd.xlane.f32.xlu0 %v1443
    %v1445 = vpop.xlane.xlu0 %1444
    %v1446 = vsel %vm283, %v1439, 0.0
    %1447 = vadd.xlane.f32.xlu0 %v1446
    %v1448 = vpop.xlane.xlu0 %1447
    %v1449 = vmul.f32 %v1442, %v287
    %v1450 = vmul.f32 %v1445, %v287
    %v1451 = vmul.f32 %v1448, %v287
    %v1452 = vmul.f32 %v1437, %v1437
    %v1453 = vmul.f32 %v1438, %v1438
    %v1454 = vmul.f32 %v1439, %v1439
    %v1455 = vsel %vm276, %v1452, 0.0
    %1456 = vadd.xlane.f32.xlu0 %v1455
    %v1457 = vpop.xlane.xlu0 %1456
    %v1458 = vsel %vm276, %v1453, 0.0
    %1459 = vadd.xlane.f32.xlu0 %v1458
    %v1460 = vpop.xlane.xlu0 %1459
    %v1461 = vsel %vm283, %v1454, 0.0
    %1462 = vadd.xlane.f32.xlu0 %v1461
    %v1463 = vpop.xlane.xlu0 %1462
    %v1464 = vmul.f32 %v1457, %v287
    %v1465 = vmul.f32 %v1460, %v287
    %v1466 = vmul.f32 %v1463, %v287
    %v1467 = vmul.f32 %v1449, %v1449
    %v1468 = vmul.f32 %v1450, %v1450
    %v1469 = vmul.f32 %v1451, %v1451
    %v1470 = vsub.f32 %v1464, %v1467
    %v1471 = vsub.f32 %v1465, %v1468
    %v1472 = vsub.f32 %v1466, %v1469
    %v1473 = vmax.f32 %v1470, 0.0
    %v1474 = vmax.f32 %v1471, 0.0
    %v1475 = vmax.f32 %v1472, 0.0
    %v1476 = vsub.f32 %v1437, %v1449
    %v1477 = vsub.f32 %v1438, %v1450
    %v1478 = vsub.f32 %v1439, %v1451
    %v1479 = vadd.f32 %v1473, 1e-12
    %v1480 = vadd.f32 %v1474, 1e-12
    %v1481 = vadd.f32 %v1475, 1e-12
    %v1482 = vrsqrt.pop %v1479
    %v1483 = vrsqrt.pop %v1480
    %v1484 = vrsqrt.pop %v1481
    %v1485 = vmul.f32 %v1476, %v1482
    %v1486 = vmul.f32 %v1477, %v1483
    %v1487 = vmul.f32 %v1478, %v1484
    %v1488 = vlaneseq
    %v1489 = vshrl.u32 %v1488, 7
    %v1490 = vsub.s32 6, %v1489
    %v1491 = vrot.slane %v428, %v1490
    %v1492 = vmul.f32 %v1485, %v1491
    %v1493 = vmul.f32 %v1486, %v1491
    %v1494 = vmul.f32 %v1487, %v1491
    %v1495 = vlaneseq
    %v1496 = vshrl.u32 %v1495, 7
    %v1497 = vsub.s32 7, %v1496
    %v1498 = vrot.slane %v428, %v1497
    %v1499 = vadd.f32 %v1492, %v1498
    %v1500 = vadd.f32 %v1493, %v1498
    %v1501 = vadd.f32 %v1494, %v1498
    %s1502 = scalar_lea.vmem %s4, 112
    %v1503 = vld [vmem:[%s1502] sm:$0xff]
    %v1504 = vld [vmem:[%s1502 + $0x8] sm:$0xff]
    %v1505 = vld [vmem:[%s1502 + $0x10] sm:$0xff]
    %v1506 = vld [vmem:[%s1502 + $0x18] sm:$0xf]
    %v1507 = vld [vmem:[%s1502 + $0x1c] sm:$0xff]
    %v1508 = vld [vmem:[%s1502 + $0x24] sm:$0xff]
    %v1509 = vld [vmem:[%s1502 + $0x2c] sm:$0xff]
    %v1510 = vld [vmem:[%s1502 + $0x34] sm:$0xf]
    %v1511 = vld [vmem:[%s1502 + $0x38] sm:$0xff]
    %v1512 = vld [vmem:[%s1502 + $0x40] sm:$0xff]
    %v1513 = vld [vmem:[%s1502 + $0x48] sm:$0xff]
    %v1514 = vld [vmem:[%s1502 + $0x50] sm:$0xf]
    %v1515 = vld [vmem:[%s1502 + $0x54] sm:$0xff]
    %v1516 = vld [vmem:[%s1502 + $0x5c] sm:$0xff]
    %v1517 = vld [vmem:[%s1502 + $0x64] sm:$0xff]
    %v1518 = vld [vmem:[%s1502 + $0x6c] sm:$0xf]
    %s1519 = scalar_lea.vmem %s5, 160
    %v1520 = vld [vmem:[%s1519] sm:$0xf]
    %v1521 = vld [vmem:[%s1519 + $0x4] sm:$0xf]
    %v1522 = vld [vmem:[%s1519 + $0x8] sm:$0xf]
    %v1523 = vld [vmem:[%s1519 + $0xc] sm:$0xf]
    %v1524 = vld [vmem:[%s1519 + $0x10] sm:$0xf]
    %v1525 = vld [vmem:[%s1519 + $0x14] sm:$0xf]
    %v1526 = vld [vmem:[%s1519 + $0x18] sm:$0xf]
    %v1527 = vld [vmem:[%s1519 + $0x1c] sm:$0xf]
    %v1528 = vld [vmem:[%s1519 + $0x20] sm:$0xf]
    %v1529 = vld [vmem:[%s1519 + $0x24] sm:$0xf]
    %v1530 = vld [vmem:[%s1519 + $0x28] sm:$0xf]
    %v1531 = vld [vmem:[%s1519 + $0x2c] sm:$0xf]
    %v1532 = vld [vmem:[%s1519 + $0x30] sm:$0xf]
    %v1533 = vld [vmem:[%s1519 + $0x34] sm:$0xf]
    %v1534 = vld [vmem:[%s1519 + $0x38] sm:$0xf]
    %v1535 = vld [vmem:[%s1519 + $0x3c] sm:$0xf]
    %v1536 = vld [vmem:[%s1519 + $0x40] sm:$0xf]
    %v1537 = vld [vmem:[%s1519 + $0x44] sm:$0xf]
    %v1538 = vld [vmem:[%s1519 + $0x48] sm:$0xf]
    %v1539 = vld [vmem:[%s1519 + $0x4c] sm:$0xf]
    %v1540 = vld [vmem:[%s1519 + $0x50] sm:$0xf]
    %v1541 = vld [vmem:[%s1519 + $0x54] sm:$0xf]
    %v1542 = vld [vmem:[%s1519 + $0x58] sm:$0xf]
    %v1543 = vld [vmem:[%s1519 + $0x5c] sm:$0xf]
    %v1544 = vld [vmem:[%s1519 + $0x60] sm:$0xf]
    %v1545 = vld [vmem:[%s1519 + $0x64] sm:$0xf]
    %v1546 = vld [vmem:[%s1519 + $0x68] sm:$0xf]
    %v1547 = vld [vmem:[%s1519 + $0x6c] sm:$0xf]
    %v1548 = vld [vmem:[%s1519 + $0x70] sm:$0xf]
    %v1549 = vld [vmem:[%s1519 + $0x74] sm:$0xf]
    %v1550 = vld [vmem:[%s1519 + $0x78] sm:$0xf]
    %v1551 = vld [vmem:[%s1519 + $0x7c] sm:$0xf]
    %v1552 = vld [vmem:[%s1519 + $0x80] sm:$0xf]
    %v1553 = vld [vmem:[%s1519 + $0x84] sm:$0xf]
    %v1554 = vld [vmem:[%s1519 + $0x88] sm:$0xf]
    %v1555 = vld [vmem:[%s1519 + $0x8c] sm:$0xf]
    %v1556 = vld [vmem:[%s1519 + $0x90] sm:$0xf]
    %v1557 = vld [vmem:[%s1519 + $0x94] sm:$0xf]
    %v1558 = vld [vmem:[%s1519 + $0x98] sm:$0xf]
    %v1559 = vld [vmem:[%s1519 + $0x9c] sm:$0xf]
    %s1560 = scalar_lea.vmem [#allocation2], 48
    %v1561 = vld [vmem:[%s1560] sm:$0xff]
    %v1562 = vld [vmem:[%s1560 + $0x8] sm:$0xff]
    %v1563 = vld [vmem:[%s1560 + $0x10] sm:$0xff]
    %v1564 = vld [vmem:[%s1560 + $0x18] sm:$0xff]
    %v1565 = vld [vmem:[%s1560 + $0x20] sm:$0xff]
    %v1566 = vld [vmem:[%s1560 + $0x28] sm:$0xff]
    %v1567 = vpack.c.bf16 %v1500, %v1499
    %v1568 = vpack.c.bf16 %v1501, %v1501
    %v1569 = vlaneseq
    %v1570 = vshrl.u32 %v1569, 7
    %v1571 = vsub.s32 0, %v1570
    %v1572 = vrot.slane %v1561, %v1571
    %v1573 = vlaneseq
    %v1574 = vshrl.u32 %v1573, 7
    %v1575 = vsub.s32 0, %v1574
    %v1576 = vrot.slane %v1562, %v1575
    %v1577 = vlaneseq
    %v1578 = vshrl.u32 %v1577, 7
    %v1579 = vsub.s32 0, %v1578
    %v1580 = vrot.slane %v1563, %v1579
    %v1581 = vlaneseq
    %v1582 = vshrl.u32 %v1581, 7
    %v1583 = vsub.s32 0, %v1582
    %v1584 = vrot.slane %v1564, %v1583
    %v1585 = vlaneseq
    %v1586 = vshrl.u32 %v1585, 7
    %v1587 = vsub.s32 0, %v1586
    %v1588 = vrot.slane %v1565, %v1587
    %v1589 = vlaneseq
    %v1590 = vshrl.u32 %v1589, 7
    %v1591 = vsub.s32 0, %v1590
    %v1592 = vrot.slane %v1566, %v1591
    %v1605 = vunpack.c.l.b16 %v1503
    %v1606 = vunpack.c.h.b16 %v1503
    %v1607 = vunpack.c.l.b16 %v1504
    %v1608 = vunpack.c.h.b16 %v1504
    %v1609 = vunpack.c.l.b16 %v1505
    %v1610 = vunpack.c.h.b16 %v1505
    %v1611 = vunpack.c.l.b16 %v1507
    %v1612 = vunpack.c.h.b16 %v1507
    %v1613 = vunpack.c.l.b16 %v1508
    %v1614 = vunpack.c.h.b16 %v1508
    %v1615 = vunpack.c.l.b16 %v1509
    %v1616 = vunpack.c.h.b16 %v1509
    %v1617 = vunpack.c.l.b16 %v1511
    %v1618 = vunpack.c.h.b16 %v1511
    %v1619 = vunpack.c.l.b16 %v1512
    %v1620 = vunpack.c.h.b16 %v1512
    %v1621 = vunpack.c.l.b16 %v1513
    %v1622 = vunpack.c.h.b16 %v1513
    %v1623 = vunpack.c.l.b16 %v1515
    %v1624 = vunpack.c.h.b16 %v1515
    %v1625 = vunpack.c.l.b16 %v1516
    %v1626 = vunpack.c.h.b16 %v1516
    %v1627 = vunpack.c.l.b16 %v1517
    %v1628 = vunpack.c.h.b16 %v1517
    %v1629 = vpack.c.b16 %v1611, %v1605
    %v1630 = vpack.c.b16 %v1612, %v1606
    %v1631 = vpack.c.b16 %v1613, %v1607
    %v1632 = vpack.c.b16 %v1614, %v1608
    %v1633 = vpack.c.b16 %v1615, %v1609
    %v1634 = vpack.c.b16 %v1616, %v1610
    %v1635 = vpack.c.b16 %v1623, %v1617
    %v1636 = vpack.c.b16 %v1624, %v1618
    %v1637 = vpack.c.b16 %v1625, %v1619
    %v1638 = vpack.c.b16 %v1626, %v1620
    %v1639 = vpack.c.b16 %v1627, %v1621
    %v1640 = vpack.c.b16 %v1628, %v1622
    %v1654 = vsel %vm276, %v1567, 0
    %v1657 = vsel %vm276, %v1568, 0
    %1659 = vmatprep.subr.bf16.mxu0 %v1630
    %1660 = vmatpush1.bf16.msra.mxu0 %v1629
    %1661 = vmatprep.subr.bf16.mxu0 %v1636
    %1662 = vmatpush1.bf16.msra.mxu0 %v1635
    %1663 = vmatprep.subr.bf16.mxu0 0
    %1664 = vmatpush1.bf16.msra.mxu0 0
    %1665 = vmatprep.subr.bf16.mxu0 0
    %1666 = vmatpush1.bf16.msra.mxu0 0
    %1667 = vmatprep.subr.bf16.mxu0 0
    %1668 = vmatpush1.bf16.msra.mxu0 0
    %1669 = vmatprep.subr.bf16.mxu0 0
    %1670 = vmatpush1.bf16.msra.mxu0 0
    %1671 = vmatprep.subr.bf16.mxu0 0
    %1672 = vmatpush1.bf16.msra.mxu0 0
    %1673 = vmatprep.subr.bf16.mxu0 0
    %1674 = vmatpush1.bf16.msra.mxu0 0
    %1675 = vmatprep.subr.bf16.mxu0 0
    %1676 = vmatpush1.bf16.msra.mxu0 0
    %1677 = vmatprep.subr.bf16.mxu0 0
    %1678 = vmatpush1.bf16.msra.mxu0 0
    %1679 = vmatprep.subr.bf16.mxu0 0
    %1680 = vmatpush1.bf16.msra.mxu0 0
    %1681 = vmatprep.subr.bf16.mxu0 0
    %1682 = vmatpush1.bf16.msra.mxu0 0
    %1683 = vmatprep.subr.bf16.mxu0 0
    %1684 = vmatpush1.bf16.msra.mxu0 0
    %1685 = vmatprep.subr.bf16.mxu0 0
    %1686 = vmatpush1.bf16.msra.mxu0 0
    %1687 = vmatprep.subr.bf16.mxu0 0
    %1688 = vmatpush1.bf16.msra.mxu0 0
    %1689 = vmatprep.subr.bf16.mxu0 0
    %1690 = vmatpush1.bf16.msra.mxu0 0
    %1691 = vmatprep.mubr.bf16.mxu0 0
    %1692 = vmatmul.mubr.bf16.gmra.mrb[0].mxu0 %v1654
    %v1693 = vpop.f32.mrb[0].mxu0
    %v1694 = vadd.f32 %v1572, %v1693
    %v1695 = vpop.f32.mrb[0].mxu0
    %v1696 = vadd.f32 %v1576, %v1695
    %v1697 = vpop.f32.mrb[0].mxu0
    %v1698 = vadd.f32 %v1572, %v1697
    %v1699 = vpop.f32.mrb[0].mxu0
    %v1700 = vadd.f32 %v1576, %v1699
    %1701 = vmatprep.mubr.bf16.mxu0 0
    %1702 = vmatmul.mubr.bf16.gmra.mrb[0].mxu0 %v1657
    %v1703 = vpop.f32.mrb[0].mxu0
    %v1704 = vadd.f32 %v1572, %v1703
    %v1705 = vpop.f32.mrb[0].mxu0
    %v1706 = vadd.f32 %v1576, %v1705
    %v1707 = vpop.f32.mrb[0].mxu0
    %v1708 = vpop.f32.mrb[0].mxu0
    %1709 = vdwg.mxu0
    %1710 = vmatprep.subr.bf16.mxu0 %v1632
    %1711 = vmatpush1.bf16.msra.mxu0 %v1631
    %1712 = vmatprep.subr.bf16.mxu0 %v1638
    %1713 = vmatpush1.bf16.msra.mxu0 %v1637
    %1714 = vmatprep.subr.bf16.mxu0 0
    %1715 = vmatpush1.bf16.msra.mxu0 0
    %1716 = vmatprep.subr.bf16.mxu0 0
    %1717 = vmatpush1.bf16.msra.mxu0 0
    %1718 = vmatprep.subr.bf16.mxu0 0
    %1719 = vmatpush1.bf16.msra.mxu0 0
    %1720 = vmatprep.subr.bf16.mxu0 0
    %1721 = vmatpush1.bf16.msra.mxu0 0
    %1722 = vmatprep.subr.bf16.mxu0 0
    %1723 = vmatpush1.bf16.msra.mxu0 0
    %1724 = vmatprep.subr.bf16.mxu0 0
    %1725 = vmatpush1.bf16.msra.mxu0 0
    %1726 = vmatprep.subr.bf16.mxu0 0
    %1727 = vmatpush1.bf16.msra.mxu0 0
    %1728 = vmatprep.subr.bf16.mxu0 0
    %1729 = vmatpush1.bf16.msra.mxu0 0
    %1730 = vmatprep.subr.bf16.mxu0 0
    %1731 = vmatpush1.bf16.msra.mxu0 0
    %1732 = vmatprep.subr.bf16.mxu0 0
    %1733 = vmatpush1.bf16.msra.mxu0 0
    %1734 = vmatprep.subr.bf16.mxu0 0
    %1735 = vmatpush1.bf16.msra.mxu0 0
    %1736 = vmatprep.subr.bf16.mxu0 0
    %1737 = vmatpush1.bf16.msra.mxu0 0
    %1738 = vmatprep.subr.bf16.mxu0 0
    %1739 = vmatpush1.bf16.msra.mxu0 0
    %1740 = vmatprep.subr.bf16.mxu0 0
    %1741 = vmatpush1.bf16.msra.mxu0 0
    %1742 = vmatprep.mubr.bf16.mxu0 0
    %1743 = vmatmul.mubr.bf16.gmra.mrb[0].mxu0 %v1654
    %v1744 = vpop.f32.mrb[0].mxu0
    %v1745 = vadd.f32 %v1580, %v1744
    %v1746 = vpop.f32.mrb[0].mxu0
    %v1747 = vadd.f32 %v1584, %v1746
    %v1748 = vpop.f32.mrb[0].mxu0
    %v1749 = vadd.f32 %v1580, %v1748
    %v1750 = vpop.f32.mrb[0].mxu0
    %v1751 = vadd.f32 %v1584, %v1750
    %1752 = vmatprep.mubr.bf16.mxu0 0
    %1753 = vmatmul.mubr.bf16.gmra.mrb[0].mxu0 %v1657
    %v1754 = vpop.f32.mrb[0].mxu0
    %v1755 = vadd.f32 %v1580, %v1754
    %v1756 = vpop.f32.mrb[0].mxu0
    %v1757 = vadd.f32 %v1584, %v1756
    %v1758 = vpop.f32.mrb[0].mxu0
    %v1759 = vpop.f32.mrb[0].mxu0
    %1760 = vdwg.mxu0
    %1761 = vmatprep.subr.bf16.mxu0 %v1634
    %1762 = vmatpush1.bf16.msra.mxu0 %v1633
    %1763 = vmatprep.subr.bf16.mxu0 %v1640
    %1764 = vmatpush1.bf16.msra.mxu0 %v1639
    %1765 = vmatprep.subr.bf16.mxu0 0
    %1766 = vmatpush1.bf16.msra.mxu0 0
    %1767 = vmatprep.subr.bf16.mxu0 0
    %1768 = vmatpush1.bf16.msra.mxu0 0
    %1769 = vmatprep.subr.bf16.mxu0 0
    %1770 = vmatpush1.bf16.msra.mxu0 0
    %1771 = vmatprep.subr.bf16.mxu0 0
    %1772 = vmatpush1.bf16.msra.mxu0 0
    %1773 = vmatprep.subr.bf16.mxu0 0
    %1774 = vmatpush1.bf16.msra.mxu0 0
    %1775 = vmatprep.subr.bf16.mxu0 0
    %1776 = vmatpush1.bf16.msra.mxu0 0
    %1777 = vmatprep.subr.bf16.mxu0 0
    %1778 = vmatpush1.bf16.msra.mxu0 0
    %1779 = vmatprep.subr.bf16.mxu0 0
    %1780 = vmatpush1.bf16.msra.mxu0 0
    %1781 = vmatprep.subr.bf16.mxu0 0
    %1782 = vmatpush1.bf16.msra.mxu0 0
    %1783 = vmatprep.subr.bf16.mxu0 0
    %1784 = vmatpush1.bf16.msra.mxu0 0
    %1785 = vmatprep.subr.bf16.mxu0 0
    %1786 = vmatpush1.bf16.msra.mxu0 0
    %1787 = vmatprep.subr.bf16.mxu0 0
    %1788 = vmatpush1.bf16.msra.mxu0 0
    %1789 = vmatprep.subr.bf16.mxu0 0
    %1790 = vmatpush1.bf16.msra.mxu0 0
    %1791 = vmatprep.subr.bf16.mxu0 0
    %1792 = vmatpush1.bf16.msra.mxu0 0
    %1793 = vmatprep.mubr.bf16.mxu0 0
    %1794 = vmatmul.mubr.bf16.gmra.mrb[0].mxu0 %v1654
    %v1795 = vpop.f32.mrb[0].mxu0
    %v1796 = vadd.f32 %v1588, %v1795
    %v1797 = vpop.f32.mrb[0].mxu0
    %v1798 = vadd.f32 %v1592, %v1797
    %v1799 = vpop.f32.mrb[0].mxu0
    %v1800 = vadd.f32 %v1588, %v1799
    %v1801 = vpop.f32.mrb[0].mxu0
    %v1802 = vadd.f32 %v1592, %v1801
    %1803 = vmatprep.mubr.bf16.mxu0 0
    %1804 = vmatmul.mubr.bf16.gmra.mrb[0].mxu0 %v1657
    %v1805 = vpop.f32.mrb[0].mxu0
    %v1806 = vadd.f32 %v1588, %v1805
    %v1807 = vpop.f32.mrb[0].mxu0
    %v1808 = vadd.f32 %v1592, %v1807
    %v1809 = vpop.f32.mrb[0].mxu0
    %v1810 = vpop.f32.mrb[0].mxu0
    %1811 = vdwg.mxu0
    %v1812 = vpack.c.bf16 %v1698, %v1694
    %v1813 = vpack.c.bf16 %v1700, %v1696
    %v1814 = vpack.c.bf16 %v1749, %v1745
    %v1815 = vpack.c.bf16 %v1751, %v1747
    %v1816 = vpack.c.bf16 %v1800, %v1796
    %v1817 = vpack.c.bf16 %v1802, %v1798
    %v1818 = vpack.c.bf16 %v1704, %v1704
    %v1819 = vpack.c.bf16 %v1706, %v1706
    %v1820 = vpack.c.bf16 %v1755, %v1755
    %v1821 = vpack.c.bf16 %v1757, %v1757
    %v1822 = vpack.c.bf16 %v1806, %v1806
    %v1823 = vpack.c.bf16 %v1808, %v1808
    %1824 = vmatprep.subr.bf16.mxu0 0
    %1825 = vmatpush1.bf16.xpose.msra.mxu0 %v1813
    %1826 = vmatprep.subr.bf16.mxu0 0
    %1827 = vmatpush1.bf16.xpose.msra.mxu0 %v1819
    %1828 = vmatprep.subr.bf16.mxu0 0
    %1829 = vmatpush1.bf16.xpose.msra.mxu0 0
    %1830 = vmatprep.subr.bf16.mxu0 0
    %1831 = vmatpush1.bf16.xpose.msra.mxu0 0
    %1832 = vmatprep.subr.bf16.mxu0 0
    %1833 = vmatpush1.bf16.xpose.msra.mxu0 0
    %1834 = vmatprep.subr.bf16.mxu0 0
    %1835 = vmatpush1.bf16.xpose.msra.mxu0 0
    %1836 = vmatprep.subr.bf16.mxu0 0
    %1837 = vmatpush1.bf16.xpose.msra.mxu0 0
    %1838 = vmatprep.subr.bf16.mxu0 0
    %1839 = vmatpush1.bf16.xpose.msra.mxu0 0
    %1840 = vmatprep.subr.bf16.mxu0 0
    %1841 = vmatpush1.bf16.xpose.msra.mxu0 0
    %1842 = vmatprep.subr.bf16.mxu0 0
    %1843 = vmatpush1.bf16.xpose.msra.mxu0 0
    %1844 = vmatprep.subr.bf16.mxu0 0
    %1845 = vmatpush1.bf16.xpose.msra.mxu0 0
    %1846 = vmatprep.subr.bf16.mxu0 0
    %1847 = vmatpush1.bf16.xpose.msra.mxu0 0
    %1848 = vmatprep.subr.bf16.mxu0 0
    %1849 = vmatpush1.bf16.xpose.msra.mxu0 0
    %1850 = vmatprep.subr.bf16.mxu0 0
    %1851 = vmatpush1.bf16.xpose.msra.mxu0 0
    %1852 = vmatprep.subr.bf16.mxu0 0
    %1853 = vmatpush1.bf16.xpose.msra.mxu0 0
    %1854 = vmatprep.subr.bf16.mxu0 0
    %1855 = vmatpush1.bf16.xpose.msra.mxu0 0
    %1856 = vmatprep.mubr.bf16.mxu0 0
    %1857 = vmatmul.mubr.bf16.gmra.mrb[0].mxu0 %v1812
    %v1858 = vpop.f32.mrb[0].mxu0
    %v1859 = vadd.f32 0.0, %v1858
    %v1860 = vpop.f32.mrb[0].mxu0
    %v1861 = vpop.f32.mrb[0].mxu0
    %v1862 = vadd.f32 0.0, %v1861
    %v1863 = vpop.f32.mrb[0].mxu0
    %1864 = vmatprep.mubr.bf16.mxu0 0
    %1865 = vmatmul.mubr.bf16.gmra.mrb[0].mxu0 %v1818
    %v1866 = vpop.f32.mrb[0].mxu0
    %v1867 = vadd.f32 0.0, %v1866
    %v1868 = vpop.f32.mrb[0].mxu0
    %v1869 = vpop.f32.mrb[0].mxu0
    %v1870 = vpop.f32.mrb[0].mxu0
    %1871 = vdwg.mxu0
    %v1872 = vmul.f32 %v1859, 0.25
    %v1873 = vmul.f32 %v1862, 0.25
    %v1874 = vmul.f32 %v1867, 0.25
    %v1875 = vadd.f32 %v1872, %v369
    %v1876 = vadd.f32 %v1873, %v370
    %v1877 = vadd.f32 %v1874, %v371
    %v1878 = vsel %vm745, %v1875, -inf
    %1879 = vmax.xlane.f32.xlu0 %v1878
    %v1880 = vpop.xlane.xlu0 %1879
    %v1881 = vsel %vm745, %v1876, -inf
    %1882 = vmax.xlane.f32.xlu0 %v1881
    %v1883 = vpop.xlane.xlu0 %1882
    %v1884 = vsel %vm752, %v1877, -inf
    %1885 = vmax.xlane.f32.xlu0 %v1884
    %v1886 = vpop.xlane.xlu0 %1885
    %v1887 = vsub.f32 %v1875, %v1880
    %v1888 = vsub.f32 %v1876, %v1883
    %v1889 = vsub.f32 %v1877, %v1886
    %v1890 = vmul.f32 %v1887, 1.442695
    %v1891 = vpow.pop %v1890
    %v1892 = vmul.f32 %v1888, 1.442695
    %v1893 = vpow.pop %v1892
    %v1894 = vmul.f32 %v1889, 1.442695
    %v1895 = vpow.pop %v1894
    %v1896 = vsel %vm745, %v1891, 0.0
    %1897 = vadd.xlane.f32.xlu0 %v1896
    %v1898 = vpop.xlane.xlu0 %1897
    %v1899 = vsel %vm745, %v1893, 0.0
    %1900 = vadd.xlane.f32.xlu0 %v1899
    %v1901 = vpop.xlane.xlu0 %1900
    %v1902 = vsel %vm752, %v1895, 0.0
    %1903 = vadd.xlane.f32.xlu0 %v1902
    %v1904 = vpop.xlane.xlu0 %1903
    %v1905 = vrcp.pop %v1898
    %v1906 = vrcp.pop %v1901
    %v1907 = vrcp.pop %v1904
    %v1908 = vmul.f32 %v1891, %v1905
    %v1909 = vmul.f32 %v1893, %v1906
    %v1910 = vmul.f32 %v1895, %v1907
    %v1911 = vpack.c.bf16 %v1909, %v1908
    %v1912 = vpack.c.bf16 %v1910, %v1910
    %v1914 = vsel %vm745, %v1911, 0
    %v1917 = vsel %vm745, %v1912, 0
    %v1920 = vsel %vm788, %v1820, 0
    %1922 = vmatprep.subr.bf16.mxu0 0
    %1923 = vmatpush1.bf16.msra.mxu0 %v1814
    %1924 = vmatprep.subr.bf16.mxu0 0
    %1925 = vmatpush1.bf16.msra.mxu0 %v1920
    %1926 = vmatprep.subr.bf16.mxu0 0
    %1927 = vmatpush1.bf16.msra.mxu0 0
    %1928 = vmatprep.subr.bf16.mxu0 0
    %1929 = vmatpush1.bf16.msra.mxu0 0
    %1930 = vmatprep.subr.bf16.mxu0 0
    %1931 = vmatpush1.bf16.msra.mxu0 0
    %1932 = vmatprep.subr.bf16.mxu0 0
    %1933 = vmatpush1.bf16.msra.mxu0 0
    %1934 = vmatprep.subr.bf16.mxu0 0
    %1935 = vmatpush1.bf16.msra.mxu0 0
    %1936 = vmatprep.subr.bf16.mxu0 0
    %1937 = vmatpush1.bf16.msra.mxu0 0
    %1938 = vmatprep.subr.bf16.mxu0 0
    %1939 = vmatpush1.bf16.msra.mxu0 0
    %1940 = vmatprep.subr.bf16.mxu0 0
    %1941 = vmatpush1.bf16.msra.mxu0 0
    %1942 = vmatprep.subr.bf16.mxu0 0
    %1943 = vmatpush1.bf16.msra.mxu0 0
    %1944 = vmatprep.subr.bf16.mxu0 0
    %1945 = vmatpush1.bf16.msra.mxu0 0
    %1946 = vmatprep.subr.bf16.mxu0 0
    %1947 = vmatpush1.bf16.msra.mxu0 0
    %1948 = vmatprep.subr.bf16.mxu0 0
    %1949 = vmatpush1.bf16.msra.mxu0 0
    %1950 = vmatprep.subr.bf16.mxu0 0
    %1951 = vmatpush1.bf16.msra.mxu0 0
    %1952 = vmatprep.subr.bf16.mxu0 0
    %1953 = vmatpush1.bf16.msra.mxu0 0
    %1954 = vmatprep.mubr.bf16.mxu0 0
    %1955 = vmatmul.mubr.bf16.gmra.mrb[0].mxu0 %v1914
    %v1956 = vpop.f32.mrb[0].mxu0
    %v1957 = vadd.f32 0.0, %v1956
    %v1958 = vpop.f32.mrb[0].mxu0
    %v1959 = vpop.f32.mrb[0].mxu0
    %v1960 = vadd.f32 0.0, %v1959
    %v1961 = vpop.f32.mrb[0].mxu0
    %1962 = vmatprep.mubr.bf16.mxu0 0
    %1963 = vmatmul.mubr.bf16.gmra.mrb[0].mxu0 %v1917
    %v1964 = vpop.f32.mrb[0].mxu0
    %v1965 = vadd.f32 0.0, %v1964
    %v1966 = vpop.f32.mrb[0].mxu0
    %v1967 = vpop.f32.mrb[0].mxu0
    %v1968 = vpop.f32.mrb[0].mxu0
    %1969 = vdwg.mxu0
    %v1970 = vpack.c.bf16 %v1960, %v1957
    %v1971 = vpack.c.bf16 %v1965, %v1965
    %1972 = vmatprep.subr.bf16.mxu0 0
    %1973 = vmatpush1.bf16.xpose.msra.mxu0 %v1816
    %1974 = vmatprep.subr.bf16.mxu0 0
    %1975 = vmatpush1.bf16.xpose.msra.mxu0 %v1822
    %1976 = vmatprep.subr.bf16.mxu0 0
    %1977 = vmatpush1.bf16.xpose.msra.mxu0 0
    %1978 = vmatprep.subr.bf16.mxu0 0
    %1979 = vmatpush1.bf16.xpose.msra.mxu0 0
    %1980 = vmatprep.subr.bf16.mxu0 0
    %1981 = vmatpush1.bf16.xpose.msra.mxu0 0
    %1982 = vmatprep.subr.bf16.mxu0 0
    %1983 = vmatpush1.bf16.xpose.msra.mxu0 0
    %1984 = vmatprep.subr.bf16.mxu0 0
    %1985 = vmatpush1.bf16.xpose.msra.mxu0 0
    %1986 = vmatprep.subr.bf16.mxu0 0
    %1987 = vmatpush1.bf16.xpose.msra.mxu0 0
    %1988 = vmatprep.subr.bf16.mxu0 0
    %1989 = vmatpush1.bf16.xpose.msra.mxu0 0
    %1990 = vmatprep.subr.bf16.mxu0 0
    %1991 = vmatpush1.bf16.xpose.msra.mxu0 0
    %1992 = vmatprep.subr.bf16.mxu0 0
    %1993 = vmatpush1.bf16.xpose.msra.mxu0 0
    %1994 = vmatprep.subr.bf16.mxu0 0
    %1995 = vmatpush1.bf16.xpose.msra.mxu0 0
    %1996 = vmatprep.subr.bf16.mxu0 0
    %1997 = vmatpush1.bf16.xpose.msra.mxu0 0
    %1998 = vmatprep.subr.bf16.mxu0 0
    %1999 = vmatpush1.bf16.xpose.msra.mxu0 0
    %2000 = vmatprep.subr.bf16.mxu0 0
    %2001 = vmatpush1.bf16.xpose.msra.mxu0 0
    %2002 = vmatprep.subr.bf16.mxu0 0
    %2003 = vmatpush1.bf16.xpose.msra.mxu0 0
    %2004 = vmatprep.mubr.bf16.mxu0 0
    %2005 = vmatmul.mubr.bf16.gmra.mrb[0].mxu0 %v1815
    %v2006 = vpop.f32.mrb[0].mxu0
    %v2007 = vadd.f32 0.0, %v2006
    %v2008 = vpop.f32.mrb[0].mxu0
    %v2009 = vpop.f32.mrb[0].mxu0
    %v2010 = vadd.f32 0.0, %v2009
    %v2011 = vpop.f32.mrb[0].mxu0
    %2012 = vmatprep.mubr.bf16.mxu0 0
    %2013 = vmatmul.mubr.bf16.gmra.mrb[0].mxu0 %v1821
    %v2014 = vpop.f32.mrb[0].mxu0
    %v2015 = vadd.f32 0.0, %v2014
    %v2016 = vpop.f32.mrb[0].mxu0
    %v2017 = vpop.f32.mrb[0].mxu0
    %v2018 = vpop.f32.mrb[0].mxu0
    %2019 = vdwg.mxu0
    %v2020 = vmul.f32 %v2007, 0.25
    %v2021 = vmul.f32 %v2010, 0.25
    %v2022 = vmul.f32 %v2015, 0.25
    %v2023 = vadd.f32 %v2020, %v369
    %v2024 = vadd.f32 %v2021, %v370
    %v2025 = vadd.f32 %v2022, %v371
    %v2026 = vsel %vm745, %v2023, -inf
    %2027 = vmax.xlane.f32.xlu0 %v2026
    %v2028 = vpop.xlane.xlu0 %2027
    %v2029 = vsel %vm745, %v2024, -inf
    %2030 = vmax.xlane.f32.xlu0 %v2029
    %v2031 = vpop.xlane.xlu0 %2030
    %v2032 = vsel %vm752, %v2025, -inf
    %2033 = vmax.xlane.f32.xlu0 %v2032
    %v2034 = vpop.xlane.xlu0 %2033
    %v2035 = vsub.f32 %v2023, %v2028
    %v2036 = vsub.f32 %v2024, %v2031
    %v2037 = vsub.f32 %v2025, %v2034
    %v2038 = vmul.f32 %v2035, 1.442695
    %v2039 = vpow.pop %v2038
    %v2040 = vmul.f32 %v2036, 1.442695
    %v2041 = vpow.pop %v2040
    %v2042 = vmul.f32 %v2037, 1.442695
    %v2043 = vpow.pop %v2042
    %v2044 = vsel %vm745, %v2039, 0.0
    %2045 = vadd.xlane.f32.xlu0 %v2044
    %v2046 = vpop.xlane.xlu0 %2045
    %v2047 = vsel %vm745, %v2041, 0.0
    %2048 = vadd.xlane.f32.xlu0 %v2047
    %v2049 = vpop.xlane.xlu0 %2048
    %v2050 = vsel %vm752, %v2043, 0.0
    %2051 = vadd.xlane.f32.xlu0 %v2050
    %v2052 = vpop.xlane.xlu0 %2051
    %v2053 = vrcp.pop %v2046
    %v2054 = vrcp.pop %v2049
    %v2055 = vrcp.pop %v2052
    %v2056 = vmul.f32 %v2039, %v2053
    %v2057 = vmul.f32 %v2041, %v2054
    %v2058 = vmul.f32 %v2043, %v2055
    %v2059 = vpack.c.bf16 %v2057, %v2056
    %v2060 = vpack.c.bf16 %v2058, %v2058
    %v2062 = vsel %vm745, %v2059, 0
    %v2065 = vsel %vm745, %v2060, 0
    %v2068 = vsel %vm788, %v1823, 0
    %2070 = vmatprep.subr.bf16.mxu0 0
    %2071 = vmatpush1.bf16.msra.mxu0 %v1817
    %2072 = vmatprep.subr.bf16.mxu0 0
    %2073 = vmatpush1.bf16.msra.mxu0 %v2068
    %2074 = vmatprep.subr.bf16.mxu0 0
    %2075 = vmatpush1.bf16.msra.mxu0 0
    %2076 = vmatprep.subr.bf16.mxu0 0
    %2077 = vmatpush1.bf16.msra.mxu0 0
    %2078 = vmatprep.subr.bf16.mxu0 0
    %2079 = vmatpush1.bf16.msra.mxu0 0
    %2080 = vmatprep.subr.bf16.mxu0 0
    %2081 = vmatpush1.bf16.msra.mxu0 0
    %2082 = vmatprep.subr.bf16.mxu0 0
    %2083 = vmatpush1.bf16.msra.mxu0 0
    %2084 = vmatprep.subr.bf16.mxu0 0
    %2085 = vmatpush1.bf16.msra.mxu0 0
    %2086 = vmatprep.subr.bf16.mxu0 0
    %2087 = vmatpush1.bf16.msra.mxu0 0
    %2088 = vmatprep.subr.bf16.mxu0 0
    %2089 = vmatpush1.bf16.msra.mxu0 0
    %2090 = vmatprep.subr.bf16.mxu0 0
    %2091 = vmatpush1.bf16.msra.mxu0 0
    %2092 = vmatprep.subr.bf16.mxu0 0
    %2093 = vmatpush1.bf16.msra.mxu0 0
    %2094 = vmatprep.subr.bf16.mxu0 0
    %2095 = vmatpush1.bf16.msra.mxu0 0
    %2096 = vmatprep.subr.bf16.mxu0 0
    %2097 = vmatpush1.bf16.msra.mxu0 0
    %2098 = vmatprep.subr.bf16.mxu0 0
    %2099 = vmatpush1.bf16.msra.mxu0 0
    %2100 = vmatprep.subr.bf16.mxu0 0
    %2101 = vmatpush1.bf16.msra.mxu0 0
    %2102 = vmatprep.mubr.bf16.mxu0 0
    %2103 = vmatmul.mubr.bf16.gmra.mrb[0].mxu0 %v2062
    %v2104 = vpop.f32.mrb[0].mxu0
    %v2105 = vadd.f32 0.0, %v2104
    %v2106 = vpop.f32.mrb[0].mxu0
    %v2107 = vpop.f32.mrb[0].mxu0
    %v2108 = vadd.f32 0.0, %v2107
    %v2109 = vpop.f32.mrb[0].mxu0
    %2110 = vmatprep.mubr.bf16.mxu0 0
    %2111 = vmatmul.mubr.bf16.gmra.mrb[0].mxu0 %v2065
    %v2112 = vpop.f32.mrb[0].mxu0
    %v2113 = vadd.f32 0.0, %v2112
    %v2114 = vpop.f32.mrb[0].mxu0
    %v2115 = vpop.f32.mrb[0].mxu0
    %v2116 = vpop.f32.mrb[0].mxu0
    %2117 = vdwg.mxu0
    %v2118 = vpack.c.bf16 %v2108, %v2105
    %v2119 = vpack.c.bf16 %v2113, %v2113
    %v2136 = vunpack.c.l.b16 %v1536
    %v2137 = vunpack.c.l.b16 %v1537
    %v2138 = vunpack.c.l.b16 %v1538
    %v2139 = vunpack.c.l.b16 %v1539
    %v2140 = vunpack.c.l.b16 %v1540
    %v2141 = vunpack.c.l.b16 %v1541
    %v2142 = vunpack.c.l.b16 %v1542
    %v2143 = vunpack.c.l.b16 %v1543
    %v2144 = vunpack.c.l.b16 %v1544
    %v2145 = vunpack.c.l.b16 %v1545
    %v2146 = vunpack.c.l.b16 %v1546
    %v2147 = vunpack.c.l.b16 %v1547
    %v2148 = vunpack.c.l.b16 %v1548
    %v2149 = vunpack.c.l.b16 %v1549
    %v2150 = vunpack.c.l.b16 %v1550
    %v2151 = vunpack.c.l.b16 %v1551
    %v2152 = vpack.c.b16 %v2137, %v2136
    %v2153 = vpack.c.b16 %v2139, %v2138
    %v2154 = vpack.c.b16 %v2141, %v2140
    %v2155 = vpack.c.b16 %v2143, %v2142
    %v2156 = vpack.c.b16 %v2145, %v2144
    %v2157 = vpack.c.b16 %v2147, %v2146
    %v2158 = vpack.c.b16 %v2149, %v2148
    %v2159 = vpack.c.b16 %v2151, %v2150
    %2168 = vmatprep.subr.bf16.mxu0 0
    %2169 = vmatpush1.bf16.msra.mxu0 %v2152
    %2170 = vmatprep.subr.bf16.mxu0 0
    %2171 = vmatpush1.bf16.msra.mxu0 %v2153
    %2172 = vmatprep.subr.bf16.mxu0 0
    %2173 = vmatpush1.bf16.msra.mxu0 %v2154
    %2174 = vmatprep.subr.bf16.mxu0 0
    %2175 = vmatpush1.bf16.msra.mxu0 %v2155
    %2176 = vmatprep.subr.bf16.mxu0 0
    %2177 = vmatpush1.bf16.msra.mxu0 %v2156
    %2178 = vmatprep.subr.bf16.mxu0 0
    %2179 = vmatpush1.bf16.msra.mxu0 %v2157
    %2180 = vmatprep.subr.bf16.mxu0 0
    %2181 = vmatpush1.bf16.msra.mxu0 %v2158
    %2182 = vmatprep.subr.bf16.mxu0 0
    %2183 = vmatpush1.bf16.msra.mxu0 %v2159
    %2184 = vmatprep.subr.bf16.mxu0 0
    %2185 = vmatpush1.bf16.msra.mxu0 0
    %2186 = vmatprep.subr.bf16.mxu0 0
    %2187 = vmatpush1.bf16.msra.mxu0 0
    %2188 = vmatprep.subr.bf16.mxu0 0
    %2189 = vmatpush1.bf16.msra.mxu0 0
    %2190 = vmatprep.subr.bf16.mxu0 0
    %2191 = vmatpush1.bf16.msra.mxu0 0
    %2192 = vmatprep.subr.bf16.mxu0 0
    %2193 = vmatpush1.bf16.msra.mxu0 0
    %2194 = vmatprep.subr.bf16.mxu0 0
    %2195 = vmatpush1.bf16.msra.mxu0 0
    %2196 = vmatprep.subr.bf16.mxu0 0
    %2197 = vmatpush1.bf16.msra.mxu0 0
    %2198 = vmatprep.subr.bf16.mxu0 0
    %2199 = vmatpush1.bf16.msra.mxu0 0
    %2200 = vmatprep.mubr.bf16.mxu0 0
    %2201 = vmatmul.mubr.bf16.gmra.mrb[0].mxu0 %v2118
    %v2202 = vpop.f32.mrb[0].mxu0
    %v2203 = vadd.f32 0.0, %v2202
    %v2204 = vpop.f32.mrb[0].mxu0
    %v2205 = vpop.f32.mrb[0].mxu0
    %v2206 = vadd.f32 0.0, %v2205
    %v2207 = vpop.f32.mrb[0].mxu0
    %2208 = vmatprep.mubr.bf16.mxu0 0
    %2209 = vmatmul.mubr.bf16.gmra.mrb[0].mxu0 %v2119
    %v2210 = vpop.f32.mrb[0].mxu0
    %v2211 = vadd.f32 0.0, %v2210
    %v2212 = vpop.f32.mrb[0].mxu0
    %v2213 = vpop.f32.mrb[0].mxu0
    %v2214 = vpop.f32.mrb[0].mxu0
    %2215 = vdwg.mxu0
    %v2232 = vunpack.c.l.b16 %v1520
    %v2233 = vunpack.c.l.b16 %v1521
    %v2234 = vunpack.c.l.b16 %v1522
    %v2235 = vunpack.c.l.b16 %v1523
    %v2236 = vunpack.c.l.b16 %v1524
    %v2237 = vunpack.c.l.b16 %v1525
    %v2238 = vunpack.c.l.b16 %v1526
    %v2239 = vunpack.c.l.b16 %v1527
    %v2240 = vunpack.c.l.b16 %v1528
    %v2241 = vunpack.c.l.b16 %v1529
    %v2242 = vunpack.c.l.b16 %v1530
    %v2243 = vunpack.c.l.b16 %v1531
    %v2244 = vunpack.c.l.b16 %v1532
    %v2245 = vunpack.c.l.b16 %v1533
    %v2246 = vunpack.c.l.b16 %v1534
    %v2247 = vunpack.c.l.b16 %v1535
    %v2248 = vpack.c.b16 %v2233, %v2232
    %v2249 = vpack.c.b16 %v2235, %v2234
    %v2250 = vpack.c.b16 %v2237, %v2236
    %v2251 = vpack.c.b16 %v2239, %v2238
    %v2252 = vpack.c.b16 %v2241, %v2240
    %v2253 = vpack.c.b16 %v2243, %v2242
    %v2254 = vpack.c.b16 %v2245, %v2244
    %v2255 = vpack.c.b16 %v2247, %v2246
    %2264 = vmatprep.subr.bf16.mxu0 0
    %2265 = vmatpush1.bf16.msra.mxu0 %v2248
    %2266 = vmatprep.subr.bf16.mxu0 0
    %2267 = vmatpush1.bf16.msra.mxu0 %v2249
    %2268 = vmatprep.subr.bf16.mxu0 0
    %2269 = vmatpush1.bf16.msra.mxu0 %v2250
    %2270 = vmatprep.subr.bf16.mxu0 0
    %2271 = vmatpush1.bf16.msra.mxu0 %v2251
    %2272 = vmatprep.subr.bf16.mxu0 0
    %2273 = vmatpush1.bf16.msra.mxu0 %v2252
    %2274 = vmatprep.subr.bf16.mxu0 0
    %2275 = vmatpush1.bf16.msra.mxu0 %v2253
    %2276 = vmatprep.subr.bf16.mxu0 0
    %2277 = vmatpush1.bf16.msra.mxu0 %v2254
    %2278 = vmatprep.subr.bf16.mxu0 0
    %2279 = vmatpush1.bf16.msra.mxu0 %v2255
    %2280 = vmatprep.subr.bf16.mxu0 0
    %2281 = vmatpush1.bf16.msra.mxu0 0
    %2282 = vmatprep.subr.bf16.mxu0 0
    %2283 = vmatpush1.bf16.msra.mxu0 0
    %2284 = vmatprep.subr.bf16.mxu0 0
    %2285 = vmatpush1.bf16.msra.mxu0 0
    %2286 = vmatprep.subr.bf16.mxu0 0
    %2287 = vmatpush1.bf16.msra.mxu0 0
    %2288 = vmatprep.subr.bf16.mxu0 0
    %2289 = vmatpush1.bf16.msra.mxu0 0
    %2290 = vmatprep.subr.bf16.mxu0 0
    %2291 = vmatpush1.bf16.msra.mxu0 0
    %2292 = vmatprep.subr.bf16.mxu0 0
    %2293 = vmatpush1.bf16.msra.mxu0 0
    %2294 = vmatprep.subr.bf16.mxu0 0
    %2295 = vmatpush1.bf16.msra.mxu0 0
    %2296 = vmatprep.mubr.bf16.mxu0 0
    %2297 = vmatmul.mubr.bf16.gmra.mrb[0].mxu0 %v1970
    %v2298 = vpop.f32.mrb[0].mxu0
    %v2299 = vadd.f32 %v2203, %v2298
    %v2300 = vpop.f32.mrb[0].mxu0
    %v2301 = vpop.f32.mrb[0].mxu0
    %v2302 = vadd.f32 %v2206, %v2301
    %v2303 = vpop.f32.mrb[0].mxu0
    %2304 = vmatprep.mubr.bf16.mxu0 0
    %2305 = vmatmul.mubr.bf16.gmra.mrb[0].mxu0 %v1971
    %v2306 = vpop.f32.mrb[0].mxu0
    %v2307 = vadd.f32 %v2211, %v2306
    %v2308 = vpop.f32.mrb[0].mxu0
    %v2309 = vpop.f32.mrb[0].mxu0
    %v2310 = vpop.f32.mrb[0].mxu0
    %2311 = vdwg.mxu0
    %v2312 = vlaneseq
    %v2313 = vshrl.u32 %v2312, 7
    %v2314 = vsub.s32 1, %v2313
    %v2315 = vrot.slane %v1561, %v2314
    %v2316 = vadd.f32 %v2299, %v2315
    %v2317 = vadd.f32 %v2302, %v2315
    %v2318 = vadd.f32 %v2307, %v2315
    %v2319 = vadd.f32 %v2316, %v1499
    %v2320 = vadd.f32 %v2317, %v1500
    %v2321 = vadd.f32 %v2318, %v1501
    %v2322 = vsel %vm276, %v2319, 0.0
    %2323 = vadd.xlane.f32.xlu0 %v2322
    %v2324 = vpop.xlane.xlu0 %2323
    %v2325 = vsel %vm276, %v2320, 0.0
    %2326 = vadd.xlane.f32.xlu0 %v2325
    %v2327 = vpop.xlane.xlu0 %2326
    %v2328 = vsel %vm283, %v2321, 0.0
    %2329 = vadd.xlane.f32.xlu0 %v2328
    %v2330 = vpop.xlane.xlu0 %2329
    %v2331 = vmul.f32 %v2324, %v287
    %v2332 = vmul.f32 %v2327, %v287
    %v2333 = vmul.f32 %v2330, %v287
    %v2334 = vmul.f32 %v2319, %v2319
    %v2335 = vmul.f32 %v2320, %v2320
    %v2336 = vmul.f32 %v2321, %v2321
    %v2337 = vsel %vm276, %v2334, 0.0
    %2338 = vadd.xlane.f32.xlu0 %v2337
    %v2339 = vpop.xlane.xlu0 %2338
    %v2340 = vsel %vm276, %v2335, 0.0
    %2341 = vadd.xlane.f32.xlu0 %v2340
    %v2342 = vpop.xlane.xlu0 %2341
    %v2343 = vsel %vm283, %v2336, 0.0
    %2344 = vadd.xlane.f32.xlu0 %v2343
    %v2345 = vpop.xlane.xlu0 %2344
    %v2346 = vmul.f32 %v2339, %v287
    %v2347 = vmul.f32 %v2342, %v287
    %v2348 = vmul.f32 %v2345, %v287
    %v2349 = vmul.f32 %v2331, %v2331
    %v2350 = vmul.f32 %v2332, %v2332
    %v2351 = vmul.f32 %v2333, %v2333
    %v2352 = vsub.f32 %v2346, %v2349
    %v2353 = vsub.f32 %v2347, %v2350
    %v2354 = vsub.f32 %v2348, %v2351
    %v2355 = vmax.f32 %v2352, 0.0
    %v2356 = vmax.f32 %v2353, 0.0
    %v2357 = vmax.f32 %v2354, 0.0
    %v2358 = vsub.f32 %v2319, %v2331
    %v2359 = vsub.f32 %v2320, %v2332
    %v2360 = vsub.f32 %v2321, %v2333
    %v2361 = vadd.f32 %v2355, 1e-12
    %v2362 = vadd.f32 %v2356, 1e-12
    %v2363 = vadd.f32 %v2357, 1e-12
    %v2364 = vrsqrt.pop %v2361
    %v2365 = vrsqrt.pop %v2362
    %v2366 = vrsqrt.pop %v2363
    %v2367 = vmul.f32 %v2358, %v2364
    %v2368 = vmul.f32 %v2359, %v2365
    %v2369 = vmul.f32 %v2360, %v2366
    %v2370 = vlaneseq
    %v2371 = vshrl.u32 %v2370, 7
    %v2372 = vsub.s32 2, %v2371
    %v2373 = vrot.slane %v1561, %v2372
    %v2374 = vmul.f32 %v2367, %v2373
    %v2375 = vmul.f32 %v2368, %v2373
    %v2376 = vmul.f32 %v2369, %v2373
    %v2377 = vlaneseq
    %v2378 = vshrl.u32 %v2377, 7
    %v2379 = vsub.s32 3, %v2378
    %v2380 = vrot.slane %v1561, %v2379
    %v2381 = vadd.f32 %v2374, %v2380
    %v2382 = vadd.f32 %v2375, %v2380
    %v2383 = vadd.f32 %v2376, %v2380
    %v2384 = vpack.c.bf16 %v2382, %v2381
    %v2385 = vpack.c.bf16 %v2383, %v2383
    %v2386 = vlaneseq
    %v2387 = vshrl.u32 %v2386, 7
    %v2388 = vsub.s32 4, %v2387
    %v2389 = vrot.slane %v1561, %v2388
    %v2394 = vunpack.c.l.b16 %v1506
    %v2395 = vunpack.c.l.b16 %v1510
    %v2396 = vunpack.c.l.b16 %v1514
    %v2397 = vunpack.c.l.b16 %v1518
    %v2398 = vpack.c.b16 %v2395, %v2394
    %v2399 = vpack.c.b16 %v2397, %v2396
    %v2403 = vsel %vm276, %v2384, 0
    %v2406 = vsel %vm276, %v2385, 0
    %2408 = vmatprep.subr.bf16.mxu0 0
    %2409 = vmatpush1.bf16.msra.mxu0 %v2398
    %2410 = vmatprep.subr.bf16.mxu0 0
    %2411 = vmatpush1.bf16.msra.mxu0 %v2399
    %2412 = vmatprep.subr.bf16.mxu0 0
    %2413 = vmatpush1.bf16.msra.mxu0 0
    %2414 = vmatprep.subr.bf16.mxu0 0
    %2415 = vmatpush1.bf16.msra.mxu0 0
    %2416 = vmatprep.subr.bf16.mxu0 0
    %2417 = vmatpush1.bf16.msra.mxu0 0
    %2418 = vmatprep.subr.bf16.mxu0 0
    %2419 = vmatpush1.bf16.msra.mxu0 0
    %2420 = vmatprep.subr.bf16.mxu0 0
    %2421 = vmatpush1.bf16.msra.mxu0 0
    %2422 = vmatprep.subr.bf16.mxu0 0
    %2423 = vmatpush1.bf16.msra.mxu0 0
    %2424 = vmatprep.subr.bf16.mxu0 0
    %2425 = vmatpush1.bf16.msra.mxu0 0
    %2426 = vmatprep.subr.bf16.mxu0 0
    %2427 = vmatpush1.bf16.msra.mxu0 0
    %2428 = vmatprep.subr.bf16.mxu0 0
    %2429 = vmatpush1.bf16.msra.mxu0 0
    %2430 = vmatprep.subr.bf16.mxu0 0
    %2431 = vmatpush1.bf16.msra.mxu0 0
    %2432 = vmatprep.subr.bf16.mxu0 0
    %2433 = vmatpush1.bf16.msra.mxu0 0
    %2434 = vmatprep.subr.bf16.mxu0 0
    %2435 = vmatpush1.bf16.msra.mxu0 0
    %2436 = vmatprep.subr.bf16.mxu0 0
    %2437 = vmatpush1.bf16.msra.mxu0 0
    %2438 = vmatprep.subr.bf16.mxu0 0
    %2439 = vmatpush1.bf16.msra.mxu0 0
    %2440 = vmatprep.mubr.bf16.mxu0 0
    %2441 = vmatmul.mubr.bf16.gmra.mrb[0].mxu0 %v2403
    %v2442 = vpop.f32.mrb[0].mxu0
    %v2443 = vadd.f32 %v2389, %v2442
    %v2444 = vpop.f32.mrb[0].mxu0
    %v2445 = vpop.f32.mrb[0].mxu0
    %v2446 = vadd.f32 %v2389, %v2445
    %v2447 = vpop.f32.mrb[0].mxu0
    %2448 = vmatprep.mubr.bf16.mxu0 0
    %2449 = vmatmul.mubr.bf16.gmra.mrb[0].mxu0 %v2406
    %v2450 = vpop.f32.mrb[0].mxu0
    %v2451 = vadd.f32 %v2389, %v2450
    %v2452 = vpop.f32.mrb[0].mxu0
    %v2453 = vpop.f32.mrb[0].mxu0
    %v2454 = vpop.f32.mrb[0].mxu0
    %2455 = vdwg.mxu0
    %v2456 = vmul.f32 %v2443, 0.5
    %v2457 = vmul.f32 %v2446, 0.5
    %v2458 = vmul.f32 %v2451, 0.5
    %v2459 = vmul.f32 %v2443, 0.044715
    %v2460 = vmul.f32 %v2446, 0.044715
    %v2461 = vmul.f32 %v2451, 0.044715
    %v2462 = vmul.f32 %v2459, %v2443
    %v2463 = vmul.f32 %v2460, %v2446
    %v2464 = vmul.f32 %v2461, %v2451
    %v2465 = vmul.f32 %v2462, %v2443
    %v2466 = vmul.f32 %v2463, %v2446
    %v2467 = vmul.f32 %v2464, %v2451
    %v2468 = vadd.f32 %v2443, %v2465
    %v2469 = vadd.f32 %v2446, %v2466
    %v2470 = vadd.f32 %v2451, %v2467
    %v2471 = vmul.f32 %v2468, 0.7978846
    %v2472 = vmul.f32 %v2469, 0.7978846
    %v2473 = vmul.f32 %v2470, 0.7978846
    %v2474 = vtanh.pop %v2471
    %v2475 = vtanh.pop %v2472
    %v2476 = vtanh.pop %v2473
    %v2477 = vadd.f32 %v2474, 1.0
    %v2478 = vadd.f32 %v2475, 1.0
    %v2479 = vadd.f32 %v2476, 1.0
    %v2480 = vmul.f32 %v2456, %v2477
    %v2481 = vmul.f32 %v2457, %v2478
    %v2482 = vmul.f32 %v2458, %v2479
    %v2483 = vpack.c.bf16 %v2481, %v2480
    %v2484 = vpack.c.bf16 %v2482, %v2482
    %v2485 = vlaneseq
    %v2486 = vshrl.u32 %v2485, 7
    %v2487 = vsub.s32 5, %v2486
    %v2488 = vrot.slane %v1561, %v2487
    %v2497 = vunpack.c.l.b16 %v1552
    %v2498 = vunpack.c.l.b16 %v1553
    %v2499 = vunpack.c.l.b16 %v1554
    %v2500 = vunpack.c.l.b16 %v1555
    %v2501 = vunpack.c.l.b16 %v1556
    %v2502 = vunpack.c.l.b16 %v1557
    %v2503 = vunpack.c.l.b16 %v1558
    %v2504 = vunpack.c.l.b16 %v1559
    %v2505 = vpack.c.b16 %v2498, %v2497
    %v2506 = vpack.c.b16 %v2500, %v2499
    %v2507 = vpack.c.b16 %v2502, %v2501
    %v2508 = vpack.c.b16 %v2504, %v2503
    %v2514 = vsel %vm115, %v2483, 0
    %v2517 = vsel %vm115, %v2484, 0
    %2519 = vmatprep.subr.bf16.mxu0 0
    %2520 = vmatpush1.bf16.msra.mxu0 %v2505
    %2521 = vmatprep.subr.bf16.mxu0 0
    %2522 = vmatpush1.bf16.msra.mxu0 %v2506
    %2523 = vmatprep.subr.bf16.mxu0 0
    %2524 = vmatpush1.bf16.msra.mxu0 %v2507
    %2525 = vmatprep.subr.bf16.mxu0 0
    %2526 = vmatpush1.bf16.msra.mxu0 %v2508
    %2527 = vmatprep.subr.bf16.mxu0 0
    %2528 = vmatpush1.bf16.msra.mxu0 0
    %2529 = vmatprep.subr.bf16.mxu0 0
    %2530 = vmatpush1.bf16.msra.mxu0 0
    %2531 = vmatprep.subr.bf16.mxu0 0
    %2532 = vmatpush1.bf16.msra.mxu0 0
    %2533 = vmatprep.subr.bf16.mxu0 0
    %2534 = vmatpush1.bf16.msra.mxu0 0
    %2535 = vmatprep.subr.bf16.mxu0 0
    %2536 = vmatpush1.bf16.msra.mxu0 0
    %2537 = vmatprep.subr.bf16.mxu0 0
    %2538 = vmatpush1.bf16.msra.mxu0 0
    %2539 = vmatprep.subr.bf16.mxu0 0
    %2540 = vmatpush1.bf16.msra.mxu0 0
    %2541 = vmatprep.subr.bf16.mxu0 0
    %2542 = vmatpush1.bf16.msra.mxu0 0
    %2543 = vmatprep.subr.bf16.mxu0 0
    %2544 = vmatpush1.bf16.msra.mxu0 0
    %2545 = vmatprep.subr.bf16.mxu0 0
    %2546 = vmatpush1.bf16.msra.mxu0 0
    %2547 = vmatprep.subr.bf16.mxu0 0
    %2548 = vmatpush1.bf16.msra.mxu0 0
    %2549 = vmatprep.subr.bf16.mxu0 0
    %2550 = vmatpush1.bf16.msra.mxu0 0
    %2551 = vmatprep.mubr.bf16.mxu0 0
    %2552 = vmatmul.mubr.bf16.gmra.mrb[0].mxu0 %v2514
    %v2553 = vpop.f32.mrb[0].mxu0
    %v2554 = vadd.f32 %v2488, %v2553
    %v2555 = vpop.f32.mrb[0].mxu0
    %v2556 = vpop.f32.mrb[0].mxu0
    %v2557 = vadd.f32 %v2488, %v2556
    %v2558 = vpop.f32.mrb[0].mxu0
    %2559 = vmatprep.mubr.bf16.mxu0 0
    %2560 = vmatmul.mubr.bf16.gmra.mrb[0].mxu0 %v2517
    %v2561 = vpop.f32.mrb[0].mxu0
    %v2562 = vadd.f32 %v2488, %v2561
    %v2563 = vpop.f32.mrb[0].mxu0
    %v2564 = vpop.f32.mrb[0].mxu0
    %v2565 = vpop.f32.mrb[0].mxu0
    %2566 = vdwg.mxu0
    %v2567 = vadd.f32 %v2554, %v2381
    %v2568 = vadd.f32 %v2557, %v2382
    %v2569 = vadd.f32 %v2562, %v2383
    %v2570 = vsel %vm276, %v2567, 0.0
    %2571 = vadd.xlane.f32.xlu0 %v2570
    %v2572 = vpop.xlane.xlu0 %2571
    %v2573 = vsel %vm276, %v2568, 0.0
    %2574 = vadd.xlane.f32.xlu0 %v2573
    %v2575 = vpop.xlane.xlu0 %2574
    %v2576 = vsel %vm283, %v2569, 0.0
    %2577 = vadd.xlane.f32.xlu0 %v2576
    %v2578 = vpop.xlane.xlu0 %2577
    %v2579 = vmul.f32 %v2572, %v287
    %v2580 = vmul.f32 %v2575, %v287
    %v2581 = vmul.f32 %v2578, %v287
    %v2582 = vmul.f32 %v2567, %v2567
    %v2583 = vmul.f32 %v2568, %v2568
    %v2584 = vmul.f32 %v2569, %v2569
    %v2585 = vsel %vm276, %v2582, 0.0
    %2586 = vadd.xlane.f32.xlu0 %v2585
    %v2587 = vpop.xlane.xlu0 %2586
    %v2588 = vsel %vm276, %v2583, 0.0
    %2589 = vadd.xlane.f32.xlu0 %v2588
    %v2590 = vpop.xlane.xlu0 %2589
    %v2591 = vsel %vm283, %v2584, 0.0
    %2592 = vadd.xlane.f32.xlu0 %v2591
    %v2593 = vpop.xlane.xlu0 %2592
    %v2594 = vmul.f32 %v2587, %v287
    %v2595 = vmul.f32 %v2590, %v287
    %v2596 = vmul.f32 %v2593, %v287
    %v2597 = vmul.f32 %v2579, %v2579
    %v2598 = vmul.f32 %v2580, %v2580
    %v2599 = vmul.f32 %v2581, %v2581
    %v2600 = vsub.f32 %v2594, %v2597
    %v2601 = vsub.f32 %v2595, %v2598
    %v2602 = vsub.f32 %v2596, %v2599
    %v2603 = vmax.f32 %v2600, 0.0
    %v2604 = vmax.f32 %v2601, 0.0
    %v2605 = vmax.f32 %v2602, 0.0
    %v2606 = vsub.f32 %v2567, %v2579
    %v2607 = vsub.f32 %v2568, %v2580
    %v2608 = vsub.f32 %v2569, %v2581
    %v2609 = vadd.f32 %v2603, 1e-12
    %v2610 = vadd.f32 %v2604, 1e-12
    %v2611 = vadd.f32 %v2605, 1e-12
    %v2612 = vrsqrt.pop %v2609
    %v2613 = vrsqrt.pop %v2610
    %v2614 = vrsqrt.pop %v2611
    %v2615 = vmul.f32 %v2606, %v2612
    %v2616 = vmul.f32 %v2607, %v2613
    %v2617 = vmul.f32 %v2608, %v2614
    %v2618 = vlaneseq
    %v2619 = vshrl.u32 %v2618, 7
    %v2620 = vsub.s32 6, %v2619
    %v2621 = vrot.slane %v1561, %v2620
    %v2622 = vmul.f32 %v2615, %v2621
    %v2623 = vmul.f32 %v2616, %v2621
    %v2624 = vmul.f32 %v2617, %v2621
    %v2625 = vlaneseq
    %v2626 = vshrl.u32 %v2625, 7
    %v2627 = vsub.s32 7, %v2626
    %v2628 = vrot.slane %v1561, %v2627
    %v2629 = vadd.f32 %v2622, %v2628
    %v2630 = vadd.f32 %v2623, %v2628
    %v2631 = vadd.f32 %v2624, %v2628
    %v2632 = vmul.u32 %v160, 9
    %vm2633 = vcmp.eq.s32.totalorder %v164, %v2632
    %vm2634 = vcmp.lt.s32.totalorder %v160, 2
    %vm2635 = vmand %vm2633, %vm2634
    %v2636 = vsel %vm2635, 1, 0
    %v2637 = vcvt.s32.f32 %v2636
    %v2639 = vsel %vm745, %v2637, 0
    %v2642 = vsel %vm189, %v2631, 0
    %2644 = vmatprep.subr.mxu0 0.0
    %2645 = vmatpush1.msra.mxu0 %v2629
    %2646 = vmatprep.subr.mxu0 0.0
    %2647 = vmatpush1.msra.mxu0 %v2630
    %2648 = vmatprep.subr.mxu0 0.0
    %2649 = vmatpush1.msra.mxu0 %v2642
    %2650 = vmatprep.subr.mxu0 0.0
    %2651 = vmatpush1.msra.mxu0 0.0
    %2652 = vmatprep.subr.mxu0 0.0
    %2653 = vmatpush1.msra.mxu0 0.0
    %2654 = vmatprep.subr.mxu0 0.0
    %2655 = vmatpush1.msra.mxu0 0.0
    %2656 = vmatprep.subr.mxu0 0.0
    %2657 = vmatpush1.msra.mxu0 0.0
    %2658 = vmatprep.subr.mxu0 0.0
    %2659 = vmatpush1.msra.mxu0 0.0
    %2660 = vmatprep.subr.mxu0 0.0
    %2661 = vmatpush1.msra.mxu0 0.0
    %2662 = vmatprep.subr.mxu0 0.0
    %2663 = vmatpush1.msra.mxu0 0.0
    %2664 = vmatprep.subr.mxu0 0.0
    %2665 = vmatpush1.msra.mxu0 0.0
    %2666 = vmatprep.subr.mxu0 0.0
    %2667 = vmatpush1.msra.mxu0 0.0
    %2668 = vmatprep.subr.mxu0 0.0
    %2669 = vmatpush1.msra.mxu0 0.0
    %2670 = vmatprep.subr.mxu0 0.0
    %2671 = vmatpush1.msra.mxu0 0.0
    %2672 = vmatprep.subr.mxu0 0.0
    %2673 = vmatpush1.msra.mxu0 0.0
    %2674 = vmatprep.subr.mxu0 0.0
    %2675 = vmatpush1.msra.mxu0 0.0
    %2676 = vmatprep.subr.mxu0 0.0
    %2677 = vmatpush1.msra.mxu0 0.0
    %2678 = vmatprep.subr.mxu0 0.0
    %2679 = vmatpush1.msra.mxu0 0.0
    %2680 = vmatprep.subr.mxu0 0.0
    %2681 = vmatpush1.msra.mxu0 0.0
    %2682 = vmatprep.subr.mxu0 0.0
    %2683 = vmatpush1.msra.mxu0 0.0
    %2684 = vmatprep.subr.mxu0 0.0
    %2685 = vmatpush1.msra.mxu0 0.0
    %2686 = vmatprep.subr.mxu0 0.0
    %2687 = vmatpush1.msra.mxu0 0.0
    %2688 = vmatprep.subr.mxu0 0.0
    %2689 = vmatpush1.msra.mxu0 0.0
    %2690 = vmatprep.subr.mxu0 0.0
    %2691 = vmatpush1.msra.mxu0 0.0
    %2692 = vmatprep.subr.mxu0 0.0
    %2693 = vmatpush1.msra.mxu0 0.0
    %2694 = vmatprep.subr.mxu0 0.0
    %2695 = vmatpush1.msra.mxu0 0.0
    %2696 = vmatprep.subr.mxu0 0.0
    %2697 = vmatpush1.msra.mxu0 0.0
    %2698 = vmatprep.subr.mxu0 0.0
    %2699 = vmatpush1.msra.mxu0 0.0
    %2700 = vmatprep.subr.mxu0 0.0
    %2701 = vmatpush1.msra.mxu0 0.0
    %2702 = vmatprep.subr.mxu0 0.0
    %2703 = vmatpush1.msra.mxu0 0.0
    %2704 = vmatprep.subr.mxu0 0.0
    %2705 = vmatpush1.msra.mxu0 0.0
    %2706 = vmatprep.subr.mxu0 0.0
    %2707 = vmatpush1.msra.mxu0 0.0
    %2708 = vmatprep.mubr.f32.mxu0 0.0
    %2709 = vmatmul.mubr.f32.gmra.mrb[0].mxu0 %v2639
    %v2710 = vpop.f32.mrb[0].mxu0
    %v2711 = vadd.f32 0.0, %v2710
    %v2712 = vpop.f32.mrb[0].mxu0
    %2713 = vdwg.mxu0
    %v2714 = vpack.c.bf16 %v2711, %v2711
    %v2715 = vlaneseq
    %v2716 = vshrl.u32 %v2715, 7
    %v2717 = vsub.s32 2, %v2716
    %v2718 = vrot.slane %v65, %v2717
    %v2723 = vunpack.c.l.b16 %v77
    %v2724 = vunpack.c.l.b16 %v78
    %v2725 = vunpack.c.l.b16 %v79
    %v2726 = vunpack.c.l.b16 %v80
    %v2727 = vpack.c.b16 %v2724, %v2723
    %v2728 = vpack.c.b16 %v2726, %v2725
    %v2732 = vsel %vm276, %v2714, 0
    %2734 = vmatprep.subr.bf16.mxu0 0
    %2735 = vmatpush1.bf16.msra.mxu0 %v2727
    %2736 = vmatprep.subr.bf16.mxu0 0
    %2737 = vmatpush1.bf16.msra.mxu0 %v2728
    %2738 = vmatprep.subr.bf16.mxu0 0
    %2739 = vmatpush1.bf16.msra.mxu0 0
    %2740 = vmatprep.subr.bf16.mxu0 0
    %2741 = vmatpush1.bf16.msra.mxu0 0
    %2742 = vmatprep.subr.bf16.mxu0 0
    %2743 = vmatpush1.bf16.msra.mxu0 0
    %2744 = vmatprep.subr.bf16.mxu0 0
    %2745 = vmatpush1.bf16.msra.mxu0 0
    %2746 = vmatprep.subr.bf16.mxu0 0
    %2747 = vmatpush1.bf16.msra.mxu0 0
    %2748 = vmatprep.subr.bf16.mxu0 0
    %2749 = vmatpush1.bf16.msra.mxu0 0
    %2750 = vmatprep.subr.bf16.mxu0 0
    %2751 = vmatpush1.bf16.msra.mxu0 0
    %2752 = vmatprep.subr.bf16.mxu0 0
    %2753 = vmatpush1.bf16.msra.mxu0 0
    %2754 = vmatprep.subr.bf16.mxu0 0
    %2755 = vmatpush1.bf16.msra.mxu0 0
    %2756 = vmatprep.subr.bf16.mxu0 0
    %2757 = vmatpush1.bf16.msra.mxu0 0
    %2758 = vmatprep.subr.bf16.mxu0 0
    %2759 = vmatpush1.bf16.msra.mxu0 0
    %2760 = vmatprep.subr.bf16.mxu0 0
    %2761 = vmatpush1.bf16.msra.mxu0 0
    %2762 = vmatprep.subr.bf16.mxu0 0
    %2763 = vmatpush1.bf16.msra.mxu0 0
    %2764 = vmatprep.subr.bf16.mxu0 0
    %2765 = vmatpush1.bf16.msra.mxu0 0
    %2766 = vmatprep.mubr.bf16.mxu0 0
    %2767 = vmatmul.mubr.bf16.gmra.mrb[0].mxu0 %v2732
    %v2768 = vpop.f32.mrb[0].mxu0
    %v2769 = vadd.f32 %v2718, %v2768
    %v2770 = vpop.f32.mrb[0].mxu0
    %v2771 = vpop.f32.mrb[0].mxu0
    %v2772 = vpop.f32.mrb[0].mxu0
    %2773 = vdwg.mxu0
    %v2774 = vtanh.pop %v2769
    %v2775 = vpack.c.bf16 %v2774, %v2774
    %v2776 = vlaneseq
    %v2777 = vshrl.u32 %v2776, 7
    %v2778 = vsub.s32 3, %v2777
    %v2779 = vrot.slane %v65, %v2778
    %v2780 = vlaneseq
    %v2781 = vshrl.u32 %v2780, 7
    %v2782 = vsub.s32 3, %v2781
    %v2783 = vrot.slane %v66, %v2782
    %v2784 = vlaneseq
    %v2785 = vshrl.u32 %v2784, 7
    %v2786 = vsub.s32 3, %v2785
    %v2787 = vrot.slane %v67, %v2786
    %v2788 = vlaneseq
    %v2789 = vshrl.u32 %v2788, 7
    %v2790 = vsub.s32 3, %v2789
    %v2791 = vrot.slane %v68, %v2790
    %v2800 = vunpack.c.l.b16 %v81
    %v2801 = vunpack.c.h.b16 %v81
    %v2802 = vunpack.c.l.b16 %v82
    %v2803 = vunpack.c.h.b16 %v82
    %v2804 = vunpack.c.l.b16 %v83
    %v2805 = vunpack.c.h.b16 %v83
    %v2806 = vunpack.c.l.b16 %v84
    %v2807 = vunpack.c.h.b16 %v84
    %v2808 = vunpack.c.l.b16 %v85
    %v2809 = vunpack.c.h.b16 %v85
    %v2810 = vunpack.c.l.b16 %v86
    %v2811 = vunpack.c.h.b16 %v86
    %v2812 = vunpack.c.l.b16 %v87
    %v2813 = vunpack.c.h.b16 %v87
    %v2814 = vunpack.c.l.b16 %v88
    %v2815 = vunpack.c.h.b16 %v88
    %v2816 = vpack.c.b16 %v2804, %v2800
    %v2817 = vpack.c.b16 %v2805, %v2801
    %v2818 = vpack.c.b16 %v2806, %v2802
    %v2819 = vpack.c.b16 %v2807, %v2803
    %v2820 = vpack.c.b16 %v2812, %v2808
    %v2821 = vpack.c.b16 %v2813, %v2809
    %v2822 = vpack.c.b16 %v2814, %v2810
    %v2823 = vpack.c.b16 %v2815, %v2811
    %v2833 = vsel %vm276, %v2775, 0
    %2835 = vmatprep.subr.bf16.mxu0 %v2817
    %2836 = vmatpush1.bf16.msra.mxu0 %v2816
    %2837 = vmatprep.subr.bf16.mxu0 %v2821
    %2838 = vmatpush1.bf16.msra.mxu0 %v2820
    %2839 = vmatprep.subr.bf16.mxu0 0
    %2840 = vmatpush1.bf16.msra.mxu0 0
    %2841 = vmatprep.subr.bf16.mxu0 0
    %2842 = vmatpush1.bf16.msra.mxu0 0
    %2843 = vmatprep.subr.bf16.mxu0 0
    %2844 = vmatpush1.bf16.msra.mxu0 0
    %2845 = vmatprep.subr.bf16.mxu0 0
    %2846 = vmatpush1.bf16.msra.mxu0 0
    %2847 = vmatprep.subr.bf16.mxu0 0
    %2848 = vmatpush1.bf16.msra.mxu0 0
    %2849 = vmatprep.subr.bf16.mxu0 0
    %2850 = vmatpush1.bf16.msra.mxu0 0
    %2851 = vmatprep.subr.bf16.mxu0 0
    %2852 = vmatpush1.bf16.msra.mxu0 0
    %2853 = vmatprep.subr.bf16.mxu0 0
    %2854 = vmatpush1.bf16.msra.mxu0 0
    %2855 = vmatprep.subr.bf16.mxu0 0
    %2856 = vmatpush1.bf16.msra.mxu0 0
    %2857 = vmatprep.subr.bf16.mxu0 0
    %2858 = vmatpush1.bf16.msra.mxu0 0
    %2859 = vmatprep.subr.bf16.mxu0 0
    %2860 = vmatpush1.bf16.msra.mxu0 0
    %2861 = vmatprep.subr.bf16.mxu0 0
    %2862 = vmatpush1.bf16.msra.mxu0 0
    %2863 = vmatprep.subr.bf16.mxu0 0
    %2864 = vmatpush1.bf16.msra.mxu0 0
    %2865 = vmatprep.subr.bf16.mxu0 0
    %2866 = vmatpush1.bf16.msra.mxu0 0
    %2867 = vmatprep.mubr.bf16.mxu0 0
    %2868 = vmatmul.mubr.bf16.gmra.mrb[0].mxu0 %v2833
    %v2869 = vpop.f32.mrb[0].mxu0
    %v2870 = vadd.f32 %v2779, %v2869
    %v2871 = vpop.f32.mrb[0].mxu0
    %v2872 = vadd.f32 %v2783, %v2871
    %v2873 = vpop.f32.mrb[0].mxu0
    %v2874 = vpop.f32.mrb[0].mxu0
    %2875 = vdwg.mxu0
    %2876 = vmatprep.subr.bf16.mxu0 %v2819
    %2877 = vmatpush1.bf16.msra.mxu0 %v2818
    %2878 = vmatprep.subr.bf16.mxu0 %v2823
    %2879 = vmatpush1.bf16.msra.mxu0 %v2822
    %2880 = vmatprep.subr.bf16.mxu0 0
    %2881 = vmatpush1.bf16.msra.mxu0 0
    %2882 = vmatprep.subr.bf16.mxu0 0
    %2883 = vmatpush1.bf16.msra.mxu0 0
    %2884 = vmatprep.subr.bf16.mxu0 0
    %2885 = vmatpush1.bf16.msra.mxu0 0
    %2886 = vmatprep.subr.bf16.mxu0 0
    %2887 = vmatpush1.bf16.msra.mxu0 0
    %2888 = vmatprep.subr.bf16.mxu0 0
    %2889 = vmatpush1.bf16.msra.mxu0 0
    %2890 = vmatprep.subr.bf16.mxu0 0
    %2891 = vmatpush1.bf16.msra.mxu0 0
    %2892 = vmatprep.subr.bf16.mxu0 0
    %2893 = vmatpush1.bf16.msra.mxu0 0
    %2894 = vmatprep.subr.bf16.mxu0 0
    %2895 = vmatpush1.bf16.msra.mxu0 0
    %2896 = vmatprep.subr.bf16.mxu0 0
    %2897 = vmatpush1.bf16.msra.mxu0 0
    %2898 = vmatprep.subr.bf16.mxu0 0
    %2899 = vmatpush1.bf16.msra.mxu0 0
    %2900 = vmatprep.subr.bf16.mxu0 0
    %2901 = vmatpush1.bf16.msra.mxu0 0
    %2902 = vmatprep.subr.bf16.mxu0 0
    %2903 = vmatpush1.bf16.msra.mxu0 0
    %2904 = vmatprep.subr.bf16.mxu0 0
    %2905 = vmatpush1.bf16.msra.mxu0 0
    %2906 = vmatprep.subr.bf16.mxu0 0
    %2907 = vmatpush1.bf16.msra.mxu0 0
    %2908 = vmatprep.mubr.bf16.mxu0 0
    %2909 = vmatmul.mubr.bf16.gmra.mrb[0].mxu0 %v2833
    %v2910 = vpop.f32.mrb[0].mxu0
    %v2911 = vadd.f32 %v2787, %v2910
    %v2912 = vpop.f32.mrb[0].mxu0
    %v2913 = vadd.f32 %v2791, %v2912
    %v2914 = vpop.f32.mrb[0].mxu0
    %v2915 = vpop.f32.mrb[0].mxu0
    %2916 = vdwg.mxu0
    %v2917 = vpack.c.bf16 %v2870, %v2870
    %v2918 = vpack.c.bf16 %v2872, %v2872
    %v2919 = vpack.c.bf16 %v2911, %v2911
    %v2920 = vpack.c.bf16 %v2913, %v2913
    %v2921 = vld [vmem:[%s8] sm:$0xff]
    %v2922 = vld [vmem:[%s8 + $0x8] sm:$0xff]
    %v2923 = vld [vmem:[%s8 + $0x10] sm:$0xff]
    %v2924 = vld [vmem:[%s8 + $0x18] sm:$0xff]
    %v2925 = vld [vmem:[%s8 + $0x20] sm:$0xff]
    %v2926 = vld [vmem:[%s8 + $0x28] sm:$0xff]
    %v2927 = vld [vmem:[%s8 + $0x30] sm:$0xff]
    %v2928 = vld [vmem:[%s8 + $0x38] sm:$0xff]
    %v2929 = vld [vmem:[%s8 + $0x40] sm:$0xff]
    %v2930 = vld [vmem:[%s8 + $0x48] sm:$0xff]
    %v2931 = vld [vmem:[%s8 + $0x50] sm:$0xff]
    %v2932 = vld [vmem:[%s8 + $0x58] sm:$0xff]
    %v2933 = vld [vmem:[%s8 + $0x60] sm:$0xff]
    %v2934 = vld [vmem:[%s8 + $0x68] sm:$0xff]
    %v2935 = vld [vmem:[%s8 + $0x70] sm:$0xff]
    %v2936 = vld [vmem:[%s8 + $0x78] sm:$0xff]
    %v2937 = vld [vmem:[%s8 + $0x80] sm:$0xff]
    %v2938 = vld [vmem:[%s8 + $0x88] sm:$0xff]
    %v2939 = vld [vmem:[%s8 + $0x90] sm:$0xff]
    %v2940 = vld [vmem:[%s8 + $0x98] sm:$0xff]
    %v2941 = vld [vmem:[%s8 + $0xa0] sm:$0xff]
    %v2942 = vld [vmem:[%s8 + $0xa8] sm:$0xff]
    %v2943 = vld [vmem:[%s8 + $0xb0] sm:$0xff]
    %v2944 = vld [vmem:[%s8 + $0xb8] sm:$0xff]
    %v2945 = vld [vmem:[%s8 + $0xc0] sm:$0xff]
    %v2946 = vld [vmem:[%s8 + $0xc8] sm:$0xff]
    %v2947 = vld [vmem:[%s8 + $0xd0] sm:$0xff]
    %v2948 = vld [vmem:[%s8 + $0xd8] sm:$0xff]
    %v2949 = vld [vmem:[%s8 + $0xe0] sm:$0xff]
    %v2950 = vld [vmem:[%s8 + $0xe8] sm:$0xff]
    %v2951 = vld [vmem:[%s8 + $0xf0] sm:$0xff]
    %v2952 = vld [vmem:[%s8 + $0xf8] sm:$0xff]
    %v2953 = vld [vmem:[%s8 + $0x100] sm:$0xff]
    %v2954 = vld [vmem:[%s8 + $0x108] sm:$0xff]
    %v2955 = vld [vmem:[%s8 + $0x110] sm:$0xff]
    %v2956 = vld [vmem:[%s8 + $0x118] sm:$0xff]
    %v2957 = vld [vmem:[%s8 + $0x120] sm:$0xff]
    %v2958 = vld [vmem:[%s8 + $0x128] sm:$0xff]
    %v2959 = vld [vmem:[%s8 + $0x130] sm:$0xff]
    %v2960 = vld [vmem:[%s8 + $0x138] sm:$0xff]
    %v2961 = vld [vmem:[%s8 + $0x140] sm:$0xff]
    %v2962 = vld [vmem:[%s8 + $0x148] sm:$0xff]
    %v2963 = vld [vmem:[%s8 + $0x150] sm:$0xff]
    %v2964 = vld [vmem:[%s8 + $0x158] sm:$0xff]
    %v2965 = vld [vmem:[%s8 + $0x160] sm:$0xff]
    %v2966 = vld [vmem:[%s8 + $0x168] sm:$0xff]
    %v2967 = vld [vmem:[%s8 + $0x170] sm:$0xff]
    %v2968 = vld [vmem:[%s8 + $0x178] sm:$0xff]
    %v2969 = vld [vmem:[%s8 + $0x180] sm:$0xff]
    %v2970 = vld [vmem:[%s8 + $0x188] sm:$0xff]
    %v2971 = vld [vmem:[%s8 + $0x190] sm:$0xff]
    %v2972 = vld [vmem:[%s8 + $0x198] sm:$0xff]
    %v2973 = vld [vmem:[%s8 + $0x1a0] sm:$0xff]
    %v2974 = vld [vmem:[%s8 + $0x1a8] sm:$0xff]
    %v2975 = vld [vmem:[%s8 + $0x1b0] sm:$0xff]
    %v2976 = vld [vmem:[%s8 + $0x1b8] sm:$0xff]
    %v2977 = vld [vmem:[%s8 + $0x1c0] sm:$0xff]
    %v2978 = vld [vmem:[%s8 + $0x1c8] sm:$0xff]
    %v2979 = vld [vmem:[%s8 + $0x1d0] sm:$0xff]
    %v2980 = vld [vmem:[%s8 + $0x1d8] sm:$0xff]
    %v2981 = vld [vmem:[%s8 + $0x1e0] sm:$0xff]
    %v2982 = vld [vmem:[%s8 + $0x1e8] sm:$0xff]
    %v2983 = vld [vmem:[%s8 + $0x1f0] sm:$0xff]
    %v2984 = vld [vmem:[%s8 + $0x1f8] sm:$0xff]
    %v2985 = vlaneseq
    %v2986 = vshrl.u32 %v2985, 7
    %v2987 = vsub.s32 4, %v2986
    %v2988 = vrot.slane %v65, %v2987
    %v2989 = vlaneseq
    %v2990 = vshrl.u32 %v2989, 7
    %v2991 = vsub.s32 4, %v2990
    %v2992 = vrot.slane %v66, %v2991
    %v3057 = vunpack.c.l.b16 %v2921
    %v3058 = vunpack.c.h.b16 %v2921
    %v3059 = vunpack.c.l.b16 %v2922
    %v3060 = vunpack.c.h.b16 %v2922
    %v3061 = vunpack.c.l.b16 %v2923
    %v3062 = vunpack.c.h.b16 %v2923
    %v3063 = vunpack.c.l.b16 %v2924
    %v3064 = vunpack.c.h.b16 %v2924
    %v3065 = vunpack.c.l.b16 %v2925
    %v3066 = vunpack.c.h.b16 %v2925
    %v3067 = vunpack.c.l.b16 %v2926
    %v3068 = vunpack.c.h.b16 %v2926
    %v3069 = vunpack.c.l.b16 %v2927
    %v3070 = vunpack.c.h.b16 %v2927
    %v3071 = vunpack.c.l.b16 %v2928
    %v3072 = vunpack.c.h.b16 %v2928
    %v3073 = vunpack.c.l.b16 %v2929
    %v3074 = vunpack.c.h.b16 %v2929
    %v3075 = vunpack.c.l.b16 %v2930
    %v3076 = vunpack.c.h.b16 %v2930
    %v3077 = vunpack.c.l.b16 %v2931
    %v3078 = vunpack.c.h.b16 %v2931
    %v3079 = vunpack.c.l.b16 %v2932
    %v3080 = vunpack.c.h.b16 %v2932
    %v3081 = vunpack.c.l.b16 %v2933
    %v3082 = vunpack.c.h.b16 %v2933
    %v3083 = vunpack.c.l.b16 %v2934
    %v3084 = vunpack.c.h.b16 %v2934
    %v3085 = vunpack.c.l.b16 %v2935
    %v3086 = vunpack.c.h.b16 %v2935
    %v3087 = vunpack.c.l.b16 %v2936
    %v3088 = vunpack.c.h.b16 %v2936
    %v3089 = vunpack.c.l.b16 %v2937
    %v3090 = vunpack.c.h.b16 %v2937
    %v3091 = vunpack.c.l.b16 %v2938
    %v3092 = vunpack.c.h.b16 %v2938
    %v3093 = vunpack.c.l.b16 %v2939
    %v3094 = vunpack.c.h.b16 %v2939
    %v3095 = vunpack.c.l.b16 %v2940
    %v3096 = vunpack.c.h.b16 %v2940
    %v3097 = vunpack.c.l.b16 %v2941
    %v3098 = vunpack.c.h.b16 %v2941
    %v3099 = vunpack.c.l.b16 %v2942
    %v3100 = vunpack.c.h.b16 %v2942
    %v3101 = vunpack.c.l.b16 %v2943
    %v3102 = vunpack.c.h.b16 %v2943
    %v3103 = vunpack.c.l.b16 %v2944
    %v3104 = vunpack.c.h.b16 %v2944
    %v3105 = vunpack.c.l.b16 %v2945
    %v3106 = vunpack.c.h.b16 %v2945
    %v3107 = vunpack.c.l.b16 %v2946
    %v3108 = vunpack.c.h.b16 %v2946
    %v3109 = vunpack.c.l.b16 %v2947
    %v3110 = vunpack.c.h.b16 %v2947
    %v3111 = vunpack.c.l.b16 %v2948
    %v3112 = vunpack.c.h.b16 %v2948
    %v3113 = vunpack.c.l.b16 %v2949
    %v3114 = vunpack.c.h.b16 %v2949
    %v3115 = vunpack.c.l.b16 %v2950
    %v3116 = vunpack.c.h.b16 %v2950
    %v3117 = vunpack.c.l.b16 %v2951
    %v3118 = vunpack.c.h.b16 %v2951
    %v3119 = vunpack.c.l.b16 %v2952
    %v3120 = vunpack.c.h.b16 %v2952
    %v3121 = vunpack.c.l.b16 %v2953
    %v3122 = vunpack.c.h.b16 %v2953
    %v3123 = vunpack.c.l.b16 %v2954
    %v3124 = vunpack.c.h.b16 %v2954
    %v3125 = vunpack.c.l.b16 %v2955
    %v3126 = vunpack.c.h.b16 %v2955
    %v3127 = vunpack.c.l.b16 %v2956
    %v3128 = vunpack.c.h.b16 %v2956
    %v3129 = vunpack.c.l.b16 %v2957
    %v3130 = vunpack.c.h.b16 %v2957
    %v3131 = vunpack.c.l.b16 %v2958
    %v3132 = vunpack.c.h.b16 %v2958
    %v3133 = vunpack.c.l.b16 %v2959
    %v3134 = vunpack.c.h.b16 %v2959
    %v3135 = vunpack.c.l.b16 %v2960
    %v3136 = vunpack.c.h.b16 %v2960
    %v3137 = vunpack.c.l.b16 %v2961
    %v3138 = vunpack.c.h.b16 %v2961
    %v3139 = vunpack.c.l.b16 %v2962
    %v3140 = vunpack.c.h.b16 %v2962
    %v3141 = vunpack.c.l.b16 %v2963
    %v3142 = vunpack.c.h.b16 %v2963
    %v3143 = vunpack.c.l.b16 %v2964
    %v3144 = vunpack.c.h.b16 %v2964
    %v3145 = vunpack.c.l.b16 %v2965
    %v3146 = vunpack.c.h.b16 %v2965
    %v3147 = vunpack.c.l.b16 %v2966
    %v3148 = vunpack.c.h.b16 %v2966
    %v3149 = vunpack.c.l.b16 %v2967
    %v3150 = vunpack.c.h.b16 %v2967
    %v3151 = vunpack.c.l.b16 %v2968
    %v3152 = vunpack.c.h.b16 %v2968
    %v3153 = vunpack.c.l.b16 %v2969
    %v3154 = vunpack.c.h.b16 %v2969
    %v3155 = vunpack.c.l.b16 %v2970
    %v3156 = vunpack.c.h.b16 %v2970
    %v3157 = vunpack.c.l.b16 %v2971
    %v3158 = vunpack.c.h.b16 %v2971
    %v3159 = vunpack.c.l.b16 %v2972
    %v3160 = vunpack.c.h.b16 %v2972
    %v3161 = vunpack.c.l.b16 %v2973
    %v3162 = vunpack.c.h.b16 %v2973
    %v3163 = vunpack.c.l.b16 %v2974
    %v3164 = vunpack.c.h.b16 %v2974
    %v3165 = vunpack.c.l.b16 %v2975
    %v3166 = vunpack.c.h.b16 %v2975
    %v3167 = vunpack.c.l.b16 %v2976
    %v3168 = vunpack.c.h.b16 %v2976
    %v3169 = vunpack.c.l.b16 %v2977
    %v3170 = vunpack.c.h.b16 %v2977
    %v3171 = vunpack.c.l.b16 %v2978
    %v3172 = vunpack.c.h.b16 %v2978
    %v3173 = vunpack.c.l.b16 %v2979
    %v3174 = vunpack.c.h.b16 %v2979
    %v3175 = vunpack.c.l.b16 %v2980
    %v3176 = vunpack.c.h.b16 %v2980
    %v3177 = vunpack.c.l.b16 %v2981
    %v3178 = vunpack.c.h.b16 %v2981
    %v3179 = vunpack.c.l.b16 %v2982
    %v3180 = vunpack.c.h.b16 %v2982
    %v3181 = vunpack.c.l.b16 %v2983
    %v3182 = vunpack.c.h.b16 %v2983
    %v3183 = vunpack.c.l.b16 %v2984
    %v3184 = vunpack.c.h.b16 %v2984
    %v3185 = vpack.c.b16 %v3059, %v3057
    %v3186 = vpack.c.b16 %v3060, %v3058
    %v3187 = vpack.c.b16 %v3063, %v3061
    %v3188 = vpack.c.b16 %v3064, %v3062
    %v3189 = vpack.c.b16 %v3067, %v3065
    %v3190 = vpack.c.b16 %v3068, %v3066
    %v3191 = vpack.c.b16 %v3071, %v3069
    %v3192 = vpack.c.b16 %v3072, %v3070
    %v3193 = vpack.c.b16 %v3075, %v3073
    %v3194 = vpack.c.b16 %v3076, %v3074
    %v3195 = vpack.c.b16 %v3079, %v3077
    %v3196 = vpack.c.b16 %v3080, %v3078
    %v3197 = vpack.c.b16 %v3083, %v3081
    %v3198 = vpack.c.b16 %v3084, %v3082
    %v3199 = vpack.c.b16 %v3087, %v3085
    %v3200 = vpack.c.b16 %v3088, %v3086
    %v3201 = vpack.c.b16 %v3091, %v3089
    %v3202 = vpack.c.b16 %v3092, %v3090
    %v3203 = vpack.c.b16 %v3095, %v3093
    %v3204 = vpack.c.b16 %v3096, %v3094
    %v3205 = vpack.c.b16 %v3099, %v3097
    %v3206 = vpack.c.b16 %v3100, %v3098
    %v3207 = vpack.c.b16 %v3103, %v3101
    %v3208 = vpack.c.b16 %v3104, %v3102
    %v3209 = vpack.c.b16 %v3107, %v3105
    %v3210 = vpack.c.b16 %v3108, %v3106
    %v3211 = vpack.c.b16 %v3111, %v3109
    %v3212 = vpack.c.b16 %v3112, %v3110
    %v3213 = vpack.c.b16 %v3115, %v3113
    %v3214 = vpack.c.b16 %v3116, %v3114
    %v3215 = vpack.c.b16 %v3119, %v3117
    %v3216 = vpack.c.b16 %v3120, %v3118
    %v3217 = vpack.c.b16 %v3123, %v3121
    %v3218 = vpack.c.b16 %v3124, %v3122
    %v3219 = vpack.c.b16 %v3127, %v3125
    %v3220 = vpack.c.b16 %v3128, %v3126
    %v3221 = vpack.c.b16 %v3131, %v3129
    %v3222 = vpack.c.b16 %v3132, %v3130
    %v3223 = vpack.c.b16 %v3135, %v3133
    %v3224 = vpack.c.b16 %v3136, %v3134
    %v3225 = vpack.c.b16 %v3139, %v3137
    %v3226 = vpack.c.b16 %v3140, %v3138
    %v3227 = vpack.c.b16 %v3143, %v3141
    %v3228 = vpack.c.b16 %v3144, %v3142
    %v3229 = vpack.c.b16 %v3147, %v3145
    %v3230 = vpack.c.b16 %v3148, %v3146
    %v3231 = vpack.c.b16 %v3151, %v3149
    %v3232 = vpack.c.b16 %v3152, %v3150
    %v3233 = vpack.c.b16 %v3155, %v3153
    %v3234 = vpack.c.b16 %v3156, %v3154
    %v3235 = vpack.c.b16 %v3159, %v3157
    %v3236 = vpack.c.b16 %v3160, %v3158
    %v3237 = vpack.c.b16 %v3163, %v3161
    %v3238 = vpack.c.b16 %v3164, %v3162
    %v3239 = vpack.c.b16 %v3167, %v3165
    %v3240 = vpack.c.b16 %v3168, %v3166
    %v3241 = vpack.c.b16 %v3171, %v3169
    %v3242 = vpack.c.b16 %v3172, %v3170
    %v3243 = vpack.c.b16 %v3175, %v3173
    %v3244 = vpack.c.b16 %v3176, %v3174
    %v3245 = vpack.c.b16 %v3179, %v3177
    %v3246 = vpack.c.b16 %v3180, %v3178
    %v3247 = vpack.c.b16 %v3183, %v3181
    %v3248 = vpack.c.b16 %v3184, %v3182
    %3313 = vmatprep.subr.bf16.mxu0 %v3186
    %3314 = vmatpush1.bf16.msra.mxu0 %v3185
    %3315 = vmatprep.subr.bf16.mxu0 %v3188
    %3316 = vmatpush1.bf16.msra.mxu0 %v3187
    %3317 = vmatprep.subr.bf16.mxu0 %v3190
    %3318 = vmatpush1.bf16.msra.mxu0 %v3189
    %3319 = vmatprep.subr.bf16.mxu0 %v3192
    %3320 = vmatpush1.bf16.msra.mxu0 %v3191
    %3321 = vmatprep.subr.bf16.mxu0 %v3194
    %3322 = vmatpush1.bf16.msra.mxu0 %v3193
    %3323 = vmatprep.subr.bf16.mxu0 %v3196
    %3324 = vmatpush1.bf16.msra.mxu0 %v3195
    %3325 = vmatprep.subr.bf16.mxu0 %v3198
    %3326 = vmatpush1.bf16.msra.mxu0 %v3197
    %3327 = vmatprep.subr.bf16.mxu0 %v3200
    %3328 = vmatpush1.bf16.msra.mxu0 %v3199
    %3329 = vmatprep.subr.bf16.mxu0 %v3202
    %3330 = vmatpush1.bf16.msra.mxu0 %v3201
    %3331 = vmatprep.subr.bf16.mxu0 %v3204
    %3332 = vmatpush1.bf16.msra.mxu0 %v3203
    %3333 = vmatprep.subr.bf16.mxu0 %v3206
    %3334 = vmatpush1.bf16.msra.mxu0 %v3205
    %3335 = vmatprep.subr.bf16.mxu0 %v3208
    %3336 = vmatpush1.bf16.msra.mxu0 %v3207
    %3337 = vmatprep.subr.bf16.mxu0 %v3210
    %3338 = vmatpush1.bf16.msra.mxu0 %v3209
    %3339 = vmatprep.subr.bf16.mxu0 %v3212
    %3340 = vmatpush1.bf16.msra.mxu0 %v3211
    %3341 = vmatprep.subr.bf16.mxu0 %v3214
    %3342 = vmatpush1.bf16.msra.mxu0 %v3213
    %3343 = vmatprep.subr.bf16.mxu0 %v3216
    %3344 = vmatpush1.bf16.msra.mxu0 %v3215
    %3345 = vmatprep.mubr.bf16.mxu0 %v2918
    %3346 = vmatmul.mubr.bf16.gmra.mrb[0].mxu0 %v2917
    %v3347 = vpop.f32.mrb[0].mxu0
    %v3348 = vadd.f32 %v2988, %v3347
    %v3349 = vpop.f32.mrb[0].mxu0
    %v3350 = vadd.f32 %v2992, %v3349
    %v3351 = vpop.f32.mrb[0].mxu0
    %v3352 = vpop.f32.mrb[0].mxu0
    %3353 = vdwg.mxu0
    %3354 = vmatprep.subr.bf16.mxu0 %v3218
    %3355 = vmatpush1.bf16.msra.mxu0 %v3217
    %3356 = vmatprep.subr.bf16.mxu0 %v3220
    %3357 = vmatpush1.bf16.msra.mxu0 %v3219
    %3358 = vmatprep.subr.bf16.mxu0 %v3222
    %3359 = vmatpush1.bf16.msra.mxu0 %v3221
    %3360 = vmatprep.subr.bf16.mxu0 %v3224
    %3361 = vmatpush1.bf16.msra.mxu0 %v3223
    %3362 = vmatprep.subr.bf16.mxu0 %v3226
    %3363 = vmatpush1.bf16.msra.mxu0 %v3225
    %3364 = vmatprep.subr.bf16.mxu0 %v3228
    %3365 = vmatpush1.bf16.msra.mxu0 %v3227
    %3366 = vmatprep.subr.bf16.mxu0 %v3230
    %3367 = vmatpush1.bf16.msra.mxu0 %v3229
    %3368 = vmatprep.subr.bf16.mxu0 %v3232
    %3369 = vmatpush1.bf16.msra.mxu0 %v3231
    %3370 = vmatprep.subr.bf16.mxu0 %v3234
    %3371 = vmatpush1.bf16.msra.mxu0 %v3233
    %3372 = vmatprep.subr.bf16.mxu0 %v3236
    %3373 = vmatpush1.bf16.msra.mxu0 %v3235
    %3374 = vmatprep.subr.bf16.mxu0 %v3238
    %3375 = vmatpush1.bf16.msra.mxu0 %v3237
    %3376 = vmatprep.subr.bf16.mxu0 %v3240
    %3377 = vmatpush1.bf16.msra.mxu0 %v3239
    %3378 = vmatprep.subr.bf16.mxu0 %v3242
    %3379 = vmatpush1.bf16.msra.mxu0 %v3241
    %3380 = vmatprep.subr.bf16.mxu0 %v3244
    %3381 = vmatpush1.bf16.msra.mxu0 %v3243
    %3382 = vmatprep.subr.bf16.mxu0 %v3246
    %3383 = vmatpush1.bf16.msra.mxu0 %v3245
    %3384 = vmatprep.subr.bf16.mxu0 %v3248
    %3385 = vmatpush1.bf16.msra.mxu0 %v3247
    %3386 = vmatprep.mubr.bf16.mxu0 %v2920
    %3387 = vmatmul.mubr.bf16.gmra.mrb[0].mxu0 %v2919
    %v3388 = vpop.f32.mrb[0].mxu0
    %v3389 = vadd.f32 %v3348, %v3388
    %v3390 = vpop.f32.mrb[0].mxu0
    %v3391 = vadd.f32 %v3350, %v3390
    %v3392 = vpop.f32.mrb[0].mxu0
    %v3393 = vpop.f32.mrb[0].mxu0
    %3394 = vdwg.mxu0
    %v3395 = vpack.c.bf16 %v3389, %v3389
    %v3396 = vpack.c.bf16 %v3391, %v3391
    %v3397 = vld [vmem:[%s9] sm:$0xf]
    %v3398 = vld [vmem:[%s9 + $0x4] sm:$0xf]
    %v3399 = vld [vmem:[%s9 + $0x8] sm:$0xf]
    %v3400 = vld [vmem:[%s9 + $0xc] sm:$0xf]
    %v3401 = vld [vmem:[%s9 + $0x10] sm:$0xf]
    %v3402 = vld [vmem:[%s9 + $0x14] sm:$0xf]
    %v3403 = vld [vmem:[%s9 + $0x18] sm:$0xf]
    %v3404 = vld [vmem:[%s9 + $0x1c] sm:$0xf]
    %v3405 = vld [vmem:[%s9 + $0x20] sm:$0xf]
    %v3406 = vld [vmem:[%s9 + $0x24] sm:$0xf]
    %v3407 = vld [vmem:[%s9 + $0x28] sm:$0xf]
    %v3408 = vld [vmem:[%s9 + $0x2c] sm:$0xf]
    %v3409 = vld [vmem:[%s9 + $0x30] sm:$0xf]
    %v3410 = vld [vmem:[%s9 + $0x34] sm:$0xf]
    %v3411 = vld [vmem:[%s9 + $0x38] sm:$0xf]
    %v3412 = vld [vmem:[%s9 + $0x3c] sm:$0xf]
    %v3413 = vld [vmem:[%s9 + $0x40] sm:$0xf]
    %v3414 = vld [vmem:[%s9 + $0x44] sm:$0xf]
    %v3415 = vld [vmem:[%s9 + $0x48] sm:$0xf]
    %v3416 = vld [vmem:[%s9 + $0x4c] sm:$0xf]
    %v3417 = vld [vmem:[%s9 + $0x50] sm:$0xf]
    %v3418 = vld [vmem:[%s9 + $0x54] sm:$0xf]
    %v3419 = vld [vmem:[%s9 + $0x58] sm:$0xf]
    %v3420 = vld [vmem:[%s9 + $0x5c] sm:$0xf]
    %v3421 = vld [vmem:[%s9 + $0x60] sm:$0xf]
    %v3422 = vld [vmem:[%s9 + $0x64] sm:$0xf]
    %v3423 = vld [vmem:[%s9 + $0x68] sm:$0xf]
    %v3424 = vld [vmem:[%s9 + $0x6c] sm:$0xf]
    %v3425 = vld [vmem:[%s9 + $0x70] sm:$0xf]
    %v3426 = vld [vmem:[%s9 + $0x74] sm:$0xf]
    %v3427 = vld [vmem:[%s9 + $0x78] sm:$0xf]
    %v3428 = vld [vmem:[%s9 + $0x7c] sm:$0xf]
    %v3429 = vlaneseq
    %v3430 = vshrl.u32 %v3429, 7
    %v3431 = vsub.s32 5, %v3430
    %v3432 = vrot.slane %v65, %v3431
    %v3465 = vunpack.c.l.b16 %v3397
    %v3466 = vunpack.c.l.b16 %v3398
    %v3467 = vunpack.c.l.b16 %v3399
    %v3468 = vunpack.c.l.b16 %v3400
    %v3469 = vunpack.c.l.b16 %v3401
    %v3470 = vunpack.c.l.b16 %v3402
    %v3471 = vunpack.c.l.b16 %v3403
    %v3472 = vunpack.c.l.b16 %v3404
    %v3473 = vunpack.c.l.b16 %v3405
    %v3474 = vunpack.c.l.b16 %v3406
    %v3475 = vunpack.c.l.b16 %v3407
    %v3476 = vunpack.c.l.b16 %v3408
    %v3477 = vunpack.c.l.b16 %v3409
    %v3478 = vunpack.c.l.b16 %v3410
    %v3479 = vunpack.c.l.b16 %v3411
    %v3480 = vunpack.c.l.b16 %v3412
    %v3481 = vunpack.c.l.b16 %v3413
    %v3482 = vunpack.c.l.b16 %v3414
    %v3483 = vunpack.c.l.b16 %v3415
    %v3484 = vunpack.c.l.b16 %v3416
    %v3485 = vunpack.c.l.b16 %v3417
    %v3486 = vunpack.c.l.b16 %v3418
    %v3487 = vunpack.c.l.b16 %v3419
    %v3488 = vunpack.c.l.b16 %v3420
    %v3489 = vunpack.c.l.b16 %v3421
    %v3490 = vunpack.c.l.b16 %v3422
    %v3491 = vunpack.c.l.b16 %v3423
    %v3492 = vunpack.c.l.b16 %v3424
    %v3493 = vunpack.c.l.b16 %v3425
    %v3494 = vunpack.c.l.b16 %v3426
    %v3495 = vunpack.c.l.b16 %v3427
    %v3496 = vunpack.c.l.b16 %v3428
    %v3497 = vpack.c.b16 %v3466, %v3465
    %v3498 = vpack.c.b16 %v3468, %v3467
    %v3499 = vpack.c.b16 %v3470, %v3469
    %v3500 = vpack.c.b16 %v3472, %v3471
    %v3501 = vpack.c.b16 %v3474, %v3473
    %v3502 = vpack.c.b16 %v3476, %v3475
    %v3503 = vpack.c.b16 %v3478, %v3477
    %v3504 = vpack.c.b16 %v3480, %v3479
    %v3505 = vpack.c.b16 %v3482, %v3481
    %v3506 = vpack.c.b16 %v3484, %v3483
    %v3507 = vpack.c.b16 %v3486, %v3485
    %v3508 = vpack.c.b16 %v3488, %v3487
    %v3509 = vpack.c.b16 %v3490, %v3489
    %v3510 = vpack.c.b16 %v3492, %v3491
    %v3511 = vpack.c.b16 %v3494, %v3493
    %v3512 = vpack.c.b16 %v3496, %v3495
    %3529 = vmatprep.subr.bf16.mxu0 0
    %3530 = vmatpush1.bf16.msra.mxu0 %v3497
    %3531 = vmatprep.subr.bf16.mxu0 0
    %3532 = vmatpush1.bf16.msra.mxu0 %v3498
    %3533 = vmatprep.subr.bf16.mxu0 0
    %3534 = vmatpush1.bf16.msra.mxu0 %v3499
    %3535 = vmatprep.subr.bf16.mxu0 0
    %3536 = vmatpush1.bf16.msra.mxu0 %v3500
    %3537 = vmatprep.subr.bf16.mxu0 0
    %3538 = vmatpush1.bf16.msra.mxu0 %v3501
    %3539 = vmatprep.subr.bf16.mxu0 0
    %3540 = vmatpush1.bf16.msra.mxu0 %v3502
    %3541 = vmatprep.subr.bf16.mxu0 0
    %3542 = vmatpush1.bf16.msra.mxu0 %v3503
    %3543 = vmatprep.subr.bf16.mxu0 0
    %3544 = vmatpush1.bf16.msra.mxu0 %v3504
    %3545 = vmatprep.subr.bf16.mxu0 0
    %3546 = vmatpush1.bf16.msra.mxu0 %v3505
    %3547 = vmatprep.subr.bf16.mxu0 0
    %3548 = vmatpush1.bf16.msra.mxu0 %v3506
    %3549 = vmatprep.subr.bf16.mxu0 0
    %3550 = vmatpush1.bf16.msra.mxu0 %v3507
    %3551 = vmatprep.subr.bf16.mxu0 0
    %3552 = vmatpush1.bf16.msra.mxu0 %v3508
    %3553 = vmatprep.subr.bf16.mxu0 0
    %3554 = vmatpush1.bf16.msra.mxu0 %v3509
    %3555 = vmatprep.subr.bf16.mxu0 0
    %3556 = vmatpush1.bf16.msra.mxu0 %v3510
    %3557 = vmatprep.subr.bf16.mxu0 0
    %3558 = vmatpush1.bf16.msra.mxu0 %v3511
    %3559 = vmatprep.subr.bf16.mxu0 0
    %3560 = vmatpush1.bf16.msra.mxu0 %v3512
    %3561 = vmatprep.mubr.bf16.mxu0 %v3396
    %3562 = vmatmul.mubr.bf16.gmra.mrb[0].mxu0 %v3395
    %v3563 = vpop.f32.mrb[0].mxu0
    %v3564 = vadd.f32 %v3432, %v3563
    %v3565 = vpop.f32.mrb[0].mxu0
    %v3566 = vpop.f32.mrb[0].mxu0
    %v3567 = vpop.f32.mrb[0].mxu0
    %3568 = vdwg.mxu0
    %3569 = vst [vmem:[%s11] sm:$0xff] %v3564
    // Predicated region
    $region54: #{_lambda_.1} parent=1 // pred_check
      _
    $region55: #{_lambda_.1} parent=1 // pred_check_branch
      %3571 = sbr.rel (0) target = $region57
    $region56: #{_lambda_.1} parent=1 // pred_region
      _
    $region57: #{_lambda_.1} parent=1 // pred_fallthru
      _
    // Predicated region
    $region58: #{_lambda_.1} parent=1 // pred_check
      _
    $region59: #{_lambda_.1} parent=1 // pred_check_branch
      %3573 = sbr.rel (0) target = $region61
    $region60: #{_lambda_.1} parent=1 // pred_region
      _
    $region61: #{_lambda_.1} parent=1 // pred_fallthru
      _
    %3574 = vsyncpa [#allocation3], 1
    %3575 = vsyncpa [#allocation5], 1

</llo_original>
